<compile_context>
chip_gen: v7x
topology: tpu7x:2x2x1
jax: 0.10.0
libtpu: 0.0.40
codegen_flags: <defaults>
</compile_context>

<pallas_src>
import jax
import jax.numpy as jnp
import numpy as np
from jax import lax
from jax.experimental import pallas as pl
from jax.experimental.pallas import tpu as pltpu

CP = 128  # channel padding to the TPU lane width


def residual_block_forward(x_nchw, w1, b1, w2, b2):
    """x_nchw: (N, C, H, W) f32; w*: (C, C, 3, 3) PyTorch OIHW; b*: (C,).

    Returns (N, C, H, W) f32 = x + conv2(relu(conv1(x))).
    """
    N, C, H, W = x_nchw.shape
    assert C <= CP

    WP = W + 2                       # width of the SAME-padded frame
    PADH = 4                         # top/bottom zero rows: keeps every flat tap slice in-bounds
    NROWS = (H + 2 * PADH) * WP      # flat rows of the padded input
    NE = (H + 4) * WP                # rows of the (extended) conv1 output frame
    NO = H * WP                      # rows of the conv2 / final output frame
    K = 9 * CP                       # im2col contraction depth

    # ---- operand prep (XLA side): NCHW -> flat padded NHWC, bf16 operands ----
    xh = jnp.transpose(x_nchw, (0, 2, 3, 1)).astype(jnp.bfloat16)     # (N,H,W,C)
    xh = jnp.pad(xh, ((0, 0), (0, 0), (0, 0), (0, CP - C)))           # channels -> CP
    xh = jnp.pad(xh, ((0, 0), (PADH, PADH), (1, 1), (0, 0)))          # spatial zero pad
    xf = xh.reshape(N, NROWS, CP)                                     # flatten (H, W) -> rows

    def prep_w(w):
        # (Cout, Cin, 3, 3) -> (kh, kw, Cin, Cout) -> (9, C, C) -> pad -> (9*CP, CP), bf16.
        wt = jnp.transpose(w, (2, 3, 1, 0)).reshape(9, C, C)
        wt = jnp.pad(wt, ((0, 0), (0, CP - C), (0, CP - C)))
        return wt.reshape(K, CP).astype(jnp.bfloat16)

    def prep_b(b):
        return jnp.pad(b, (0, CP - C)).reshape(1, CP).astype(jnp.float32)

    w1p, b1p, w2p, b2p = prep_w(w1), prep_b(b1), prep_w(w2), prep_b(b2)

    # Interior mask of the extended conv1 frame: 1 where the row/col is a real
    # image pixel, 0 on the SAME-padding ring / margin rows.
    u = jnp.arange(H + 4)[:, None]
    c = jnp.arange(WP)[None, :]
    interior = ((u >= 2) & (u < H + 2) & (c >= 1) & (c <= W)).astype(jnp.float32)
    mask = interior.reshape(NE, 1)

    # 3x3 tap (dy, dx) -> flat-row shift of the padded frame (same for both convs).
    shifts = [(dy + 1) * WP + dx - 1 for dy in range(3) for dx in range(3)]

    def kernel(xf_ref, mask_ref, w1_ref, b1_ref, w2_ref, b2_ref, out_ref, h_ref):
        # --- conv1: im2col (9 shifted flat slices, lane-concatenated) -> one deep matmul ---
        lhs1 = jnp.concatenate([xf_ref[0, s:s + NE, :] for s in shifts], axis=-1)  # (NE, 9*CP) bf16
        h = jnp.dot(lhs1, w1_ref[...], preferred_element_type=jnp.float32)         # (NE, CP) f32
        h = jnp.maximum(h + b1_ref[...], 0.0)                                      # bias + ReLU
        # Zero the padding ring / margin rows, then stage as bf16 (full aligned store).
        h_ref[...] = (h * mask_ref[...]).astype(jnp.bfloat16)

        # --- conv2: identical tap structure on the masked intermediate ---
        lhs2 = jnp.concatenate([h_ref[s:s + NO, :] for s in shifts], axis=-1)      # (NO, 9*CP) bf16
        y = jnp.dot(lhs2, w2_ref[...], preferred_element_type=jnp.float32)         # (NO, CP) f32
        y = y + b2_ref[...]

        # --- residual add: the real-image rows of the padded input start at flat row PADH*WP ---
        res = xf_ref[0, PADH * WP:PADH * WP + NO, :].astype(jnp.float32)
        out_ref[0, :, :] = res + y

    flops = 2 * N * (NE + NO) * K * CP
    bytes_accessed = (N * NROWS * CP * 2      # bf16 input
                      + N * NO * CP * 4       # f32 output
                      + 2 * K * CP * 2        # bf16 weights
                      + 2 * CP * 4            # f32 biases
                      + NE * 4)               # mask

    out = pl.pallas_call(
        kernel,
        out_shape=jax.ShapeDtypeStruct((N, NO, CP), jnp.float32),
        grid_spec=pltpu.PrefetchScalarGridSpec(
            num_scalar_prefetch=0,
            grid=(N,),
            in_specs=[
                pl.BlockSpec((1, NROWS, CP), lambda n: (n, 0, 0)),   # flat padded input
                pl.BlockSpec((NE, 1), lambda n: (0, 0)),             # interior mask
                pl.BlockSpec((K, CP), lambda n: (0, 0)),             # w1 (im2col layout)
                pl.BlockSpec((1, CP), lambda n: (0, 0)),             # b1
                pl.BlockSpec((K, CP), lambda n: (0, 0)),             # w2
                pl.BlockSpec((1, CP), lambda n: (0, 0)),             # b2
            ],
            out_specs=pl.BlockSpec((1, NO, CP), lambda n: (n, 0, 0)),
            scratch_shapes=[pltpu.VMEM((NE, CP), jnp.bfloat16)],     # staged intermediate
        ),
        compiler_params=pltpu.CompilerParams(
            dimension_semantics=("parallel",)),
        cost_estimate=pl.CostEstimate(
            flops=flops, transcendentals=0, bytes_accessed=bytes_accessed),
    )(xf, mask, w1p, b1p, w2p, b2p)

    # Flat padded frame -> NCHW with the original channel count.
    out = out.reshape(N, H, WP, CP)[:, :, 1:W + 1, :C]
    return jnp.transpose(out, (0, 3, 1, 2))


def _reference_forward(x, w1, b1, w2, b2):
    """Pure-JAX reference of x + conv2(relu(conv1(x))) in NCHW.

    Mirrors the kernel's mixed-precision policy (bf16 operands / bf16
    intermediate, f32 accumulation) so the comparison isolates kernel
    correctness rather than bf16 quantization.
    """
    dn = ('NCHW', 'OIHW', 'NCHW')
    h = lax.conv_general_dilated(x, w1, (1, 1), 'SAME', dimension_numbers=dn)
    h = jnp.maximum(h + b1[None, :, None, None], 0.0)
    h = h.astype(jnp.bfloat16).astype(jnp.float32)   # kernel feeds conv2 a bf16 intermediate
    y = lax.conv_general_dilated(h, w2, (1, 1), 'SAME', dimension_numbers=dn)
    y = y + b2[None, :, None, None]
    return x + y


if __name__ == "__main__":
    key = jax.random.PRNGKey(0)
    kx, kw1, kb1, kw2, kb2 = jax.random.split(key, 5)

    N, C, H, W = 2, 4, 16, 16  # small shapes consistent with an MNIST-style CNN block
    x = jax.random.normal(kx, (N, C, H, W), jnp.float32)
    # Deterministic parameter init (shapes follow Conv2d(C, C, 3, padding=1)).
    w1 = jax.random.normal(kw1, (C, C, 3, 3), jnp.float32) * 0.1
    b1 = jax.random.normal(kb1, (C,), jnp.float32) * 0.1
    w2 = jax.random.normal(kw2, (C, C, 3, 3), jnp.float32) * 0.1
    b2 = jax.random.normal(kb2, (C,), jnp.float32) * 0.1

    out = residual_block_forward(x, w1, b1, w2, b2)
    out = jax.block_until_ready(out)

    # Precision-matched reference: same bf16-rounded operands, f32 accumulation.
    bf = lambda a: a.astype(jnp.bfloat16).astype(jnp.float32)
    ref = _reference_forward(bf(x), bf(w1), b1, bf(w2), b2)
    np.testing.assert_allclose(np.asarray(out), np.asarray(ref), rtol=2e-3, atol=2e-3)

    print("KERNEL_OK")
</pallas_src>

<mosaic_0001>
module attributes {stable_mosaic.version = 11 : i64} {
  func.func @kernel(%arg0: i32, %arg1: memref<1x432x128xbf16, #tpu.memory_space<vmem>>, %arg2: memref<360x1xf32, #tpu.memory_space<vmem>>, %arg3: memref<1152x128xbf16, #tpu.memory_space<vmem>>, %arg4: memref<1x128xf32, #tpu.memory_space<vmem>>, %arg5: memref<1152x128xbf16, #tpu.memory_space<vmem>>, %arg6: memref<1x128xf32, #tpu.memory_space<vmem>>, %arg7: memref<1x288x128xf32, #tpu.memory_space<vmem>>, %arg8: memref<360x128xbf16, #tpu.memory_space<vmem>>) attributes {dimension_semantics = [#tpu.dimension_semantics<parallel>], iteration_bounds = array<i64: 2>, scalar_prefetch = 0 : i64, scratch_operands = 1 : i64, tpu.core_type = #tpu.core_type<tc>, window_params = [{transform_indices = @transform_0, window_bounds = array<i64: 1, 432, 128>}, {pipeline_mode = #tpu.pipeline_mode<synchronous>, transform_indices = @transform_1, window_bounds = array<i64: 360, 1>}, {pipeline_mode = #tpu.pipeline_mode<synchronous>, transform_indices = @transform_2, window_bounds = array<i64: 1152, 128>}, {pipeline_mode = #tpu.pipeline_mode<synchronous>, transform_indices = @transform_3, window_bounds = array<i64: 1, 128>}, {pipeline_mode = #tpu.pipeline_mode<synchronous>, transform_indices = @transform_4, window_bounds = array<i64: 1152, 128>}, {pipeline_mode = #tpu.pipeline_mode<synchronous>, transform_indices = @transform_5, window_bounds = array<i64: 1, 128>}, {transform_indices = @transform_6, window_bounds = array<i64: 1, 288, 128>}]} {
    %c0 = arith.constant 0 : index
    %c17 = arith.constant 17 : index
    %c0_0 = arith.constant 0 : index
    %0 = vector.load %arg1[%c0, %c17, %c0_0] : memref<1x432x128xbf16, #tpu.memory_space<vmem>>, vector<1x360x128xbf16>
    %1 = vector.shape_cast %0 : vector<1x360x128xbf16> to vector<360x128xbf16>
    %c0_1 = arith.constant 0 : index
    %c18 = arith.constant 18 : index
    %c0_2 = arith.constant 0 : index
    %2 = vector.load %arg1[%c0_1, %c18, %c0_2] : memref<1x432x128xbf16, #tpu.memory_space<vmem>>, vector<1x360x128xbf16>
    %3 = vector.shape_cast %2 : vector<1x360x128xbf16> to vector<360x128xbf16>
    %c0_3 = arith.constant 0 : index
    %c19 = arith.constant 19 : index
    %c0_4 = arith.constant 0 : index
    %4 = vector.load %arg1[%c0_3, %c19, %c0_4] : memref<1x432x128xbf16, #tpu.memory_space<vmem>>, vector<1x360x128xbf16>
    %5 = vector.shape_cast %4 : vector<1x360x128xbf16> to vector<360x128xbf16>
    %c0_5 = arith.constant 0 : index
    %c35 = arith.constant 35 : index
    %c0_6 = arith.constant 0 : index
    %6 = vector.load %arg1[%c0_5, %c35, %c0_6] : memref<1x432x128xbf16, #tpu.memory_space<vmem>>, vector<1x360x128xbf16>
    %7 = vector.shape_cast %6 : vector<1x360x128xbf16> to vector<360x128xbf16>
    %c0_7 = arith.constant 0 : index
    %c36 = arith.constant 36 : index
    %c0_8 = arith.constant 0 : index
    %8 = vector.load %arg1[%c0_7, %c36, %c0_8] : memref<1x432x128xbf16, #tpu.memory_space<vmem>>, vector<1x360x128xbf16>
    %9 = vector.shape_cast %8 : vector<1x360x128xbf16> to vector<360x128xbf16>
    %c0_9 = arith.constant 0 : index
    %c37 = arith.constant 37 : index
    %c0_10 = arith.constant 0 : index
    %10 = vector.load %arg1[%c0_9, %c37, %c0_10] : memref<1x432x128xbf16, #tpu.memory_space<vmem>>, vector<1x360x128xbf16>
    %11 = vector.shape_cast %10 : vector<1x360x128xbf16> to vector<360x128xbf16>
    %c0_11 = arith.constant 0 : index
    %c53 = arith.constant 53 : index
    %c0_12 = arith.constant 0 : index
    %12 = vector.load %arg1[%c0_11, %c53, %c0_12] : memref<1x432x128xbf16, #tpu.memory_space<vmem>>, vector<1x360x128xbf16>
    %13 = vector.shape_cast %12 : vector<1x360x128xbf16> to vector<360x128xbf16>
    %c0_13 = arith.constant 0 : index
    %c54 = arith.constant 54 : index
    %c0_14 = arith.constant 0 : index
    %14 = vector.load %arg1[%c0_13, %c54, %c0_14] : memref<1x432x128xbf16, #tpu.memory_space<vmem>>, vector<1x360x128xbf16>
    %15 = vector.shape_cast %14 : vector<1x360x128xbf16> to vector<360x128xbf16>
    %c0_15 = arith.constant 0 : index
    %c55 = arith.constant 55 : index
    %c0_16 = arith.constant 0 : index
    %16 = vector.load %arg1[%c0_15, %c55, %c0_16] : memref<1x432x128xbf16, #tpu.memory_space<vmem>>, vector<1x360x128xbf16>
    %17 = vector.shape_cast %16 : vector<1x360x128xbf16> to vector<360x128xbf16>
    %18 = tpu.concatenate %1, %3, %5, %7, %9, %11, %13, %15, %17 in 1 : vector<360x128xbf16>, vector<360x128xbf16>, vector<360x128xbf16>, vector<360x128xbf16>, vector<360x128xbf16>, vector<360x128xbf16>, vector<360x128xbf16>, vector<360x128xbf16>, vector<360x128xbf16> -> vector<360x1152xbf16>
    %c0_17 = arith.constant 0 : index
    %c0_18 = arith.constant 0 : index
    %19 = vector.load %arg3[%c0_17, %c0_18] : memref<1152x128xbf16, #tpu.memory_space<vmem>>, vector<1152x128xbf16>
    %cst = arith.constant dense<0.000000e+00> : vector<360x128xf32>
    %20 = tpu.matmul %18, %19, %cst {dimension_numbers = #tpu.dot_dimension_numbers<[1], [0], [0], [1], [0, 0, 1, 1], [], []>} : vector<360x1152xbf16>, vector<1152x128xbf16>, vector<360x128xf32> -> vector<360x128xf32>
    %c0_19 = arith.constant 0 : index
    %c0_20 = arith.constant 0 : index
    %21 = vector.load %arg4[%c0_19, %c0_20] : memref<1x128xf32, #tpu.memory_space<vmem>>, vector<1x128xf32>
    %22 = vector.broadcast %21 : vector<1x128xf32> to vector<360x128xf32>
    %23 = arith.addf %20, %22 : vector<360x128xf32>
    %cst_21 = arith.constant 0.000000e+00 : f32
    %24 = vector.broadcast %cst_21 : f32 to vector<360x128xf32>
    %25 = arith.maximumf %23, %24 : vector<360x128xf32>
    %c0_22 = arith.constant 0 : index
    %c0_23 = arith.constant 0 : index
    %26 = vector.load %arg2[%c0_22, %c0_23] : memref<360x1xf32, #tpu.memory_space<vmem>>, vector<360x1xf32>
    %27 = vector.broadcast %26 : vector<360x1xf32> to vector<360x128xf32>
    %28 = arith.mulf %25, %27 : vector<360x128xf32>
    %29 = arith.truncf %28 : vector<360x128xf32> to vector<360x128xbf16>
    %c0_24 = arith.constant 0 : index
    %c0_25 = arith.constant 0 : index
    %30 = vector.load %arg8[%c0_24, %c0_25] : memref<360x128xbf16, #tpu.memory_space<vmem>>, vector<360x128xbf16>
    tpu.vector_store %arg8[%c0_24, %c0_25], %29 {strides = array<i32>} : memref<360x128xbf16, #tpu.memory_space<vmem>>, vector<360x128xbf16>,
    %c17_26 = arith.constant 17 : index
    %c0_27 = arith.constant 0 : index
    %31 = vector.load %arg8[%c17_26, %c0_27] : memref<360x128xbf16, #tpu.memory_space<vmem>>, vector<288x128xbf16>
    %c18_28 = arith.constant 18 : index
    %c0_29 = arith.constant 0 : index
    %32 = vector.load %arg8[%c18_28, %c0_29] : memref<360x128xbf16, #tpu.memory_space<vmem>>, vector<288x128xbf16>
    %c19_30 = arith.constant 19 : index
    %c0_31 = arith.constant 0 : index
    %33 = vector.load %arg8[%c19_30, %c0_31] : memref<360x128xbf16, #tpu.memory_space<vmem>>, vector<288x128xbf16>
    %c35_32 = arith.constant 35 : index
    %c0_33 = arith.constant 0 : index
    %34 = vector.load %arg8[%c35_32, %c0_33] : memref<360x128xbf16, #tpu.memory_space<vmem>>, vector<288x128xbf16>
    %c36_34 = arith.constant 36 : index
    %c0_35 = arith.constant 0 : index
    %35 = vector.load %arg8[%c36_34, %c0_35] : memref<360x128xbf16, #tpu.memory_space<vmem>>, vector<288x128xbf16>
    %c37_36 = arith.constant 37 : index
    %c0_37 = arith.constant 0 : index
    %36 = vector.load %arg8[%c37_36, %c0_37] : memref<360x128xbf16, #tpu.memory_space<vmem>>, vector<288x128xbf16>
    %c53_38 = arith.constant 53 : index
    %c0_39 = arith.constant 0 : index
    %37 = vector.load %arg8[%c53_38, %c0_39] : memref<360x128xbf16, #tpu.memory_space<vmem>>, vector<288x128xbf16>
    %c54_40 = arith.constant 54 : index
    %c0_41 = arith.constant 0 : index
    %38 = vector.load %arg8[%c54_40, %c0_41] : memref<360x128xbf16, #tpu.memory_space<vmem>>, vector<288x128xbf16>
    %c55_42 = arith.constant 55 : index
    %c0_43 = arith.constant 0 : index
    %39 = vector.load %arg8[%c55_42, %c0_43] : memref<360x128xbf16, #tpu.memory_space<vmem>>, vector<288x128xbf16>
    %40 = tpu.concatenate %31, %32, %33, %34, %35, %36, %37, %38, %39 in 1 : vector<288x128xbf16>, vector<288x128xbf16>, vector<288x128xbf16>, vector<288x128xbf16>, vector<288x128xbf16>, vector<288x128xbf16>, vector<288x128xbf16>, vector<288x128xbf16>, vector<288x128xbf16> -> vector<288x1152xbf16>
    %c0_44 = arith.constant 0 : index
    %c0_45 = arith.constant 0 : index
    %41 = vector.load %arg5[%c0_44, %c0_45] : memref<1152x128xbf16, #tpu.memory_space<vmem>>, vector<1152x128xbf16>
    %cst_46 = arith.constant dense<0.000000e+00> : vector<288x128xf32>
    %42 = tpu.matmul %40, %41, %cst_46 {dimension_numbers = #tpu.dot_dimension_numbers<[1], [0], [0], [1], [0, 0, 1, 1], [], []>} : vector<288x1152xbf16>, vector<1152x128xbf16>, vector<288x128xf32> -> vector<288x128xf32>
    %c0_47 = arith.constant 0 : index
    %c0_48 = arith.constant 0 : index
    %43 = vector.load %arg6[%c0_47, %c0_48] : memref<1x128xf32, #tpu.memory_space<vmem>>, vector<1x128xf32>
    %44 = vector.broadcast %43 : vector<1x128xf32> to vector<288x128xf32>
    %45 = arith.addf %42, %44 : vector<288x128xf32>
    %c0_49 = arith.constant 0 : index
    %c72 = arith.constant 72 : index
    %c0_50 = arith.constant 0 : index
    %46 = vector.load %arg1[%c0_49, %c72, %c0_50] : memref<1x432x128xbf16, #tpu.memory_space<vmem>>, vector<1x288x128xbf16>
    %47 = vector.shape_cast %46 : vector<1x288x128xbf16> to vector<288x128xbf16>
    %48 = arith.extf %47 : vector<288x128xbf16> to vector<288x128xf32>
    %49 = arith.addf %48, %45 : vector<288x128xf32>
    %c0_51 = arith.constant 0 : index
    %c0_52 = arith.constant 0 : index
    %c0_53 = arith.constant 0 : index
    %50 = vector.load %arg7[%c0_51, %c0_52, %c0_53] : memref<1x288x128xf32, #tpu.memory_space<vmem>>, vector<1x288x128xf32>
    %51 = vector.shape_cast %50 : vector<1x288x128xf32> to vector<288x128xf32>
    %52 = vector.shape_cast %49 : vector<288x128xf32> to vector<1x288x128xf32>
    tpu.vector_store %arg7[%c0_51, %c0_52, %c0_53], %52 {strides = array<i32>} : memref<1x288x128xf32, #tpu.memory_space<vmem>>, vector<1x288x128xf32>,
    return
  }
  func.func @transform_0(%arg0: i32) -> (i32, i32, i32) {
    %c0_i32 = arith.constant 0 : i32
    %c0_i32_0 = arith.constant 0 : i32
    %c0_i32_1 = arith.constant 0 : i32
    return %arg0, %c0_i32, %c0_i32_0 : i32, i32, i32
  }
  func.func @transform_1(%arg0: i32) -> (i32, i32) {
    %c0_i32 = arith.constant 0 : i32
    %c0_i32_0 = arith.constant 0 : i32
    %c0_i32_1 = arith.constant 0 : i32
    return %c0_i32, %c0_i32_0 : i32, i32
  }
  func.func @transform_2(%arg0: i32) -> (i32, i32) {
    %c0_i32 = arith.constant 0 : i32
    %c0_i32_0 = arith.constant 0 : i32
    %c0_i32_1 = arith.constant 0 : i32
    return %c0_i32, %c0_i32_0 : i32, i32
  }
  func.func @transform_3(%arg0: i32) -> (i32, i32) {
    %c0_i32 = arith.constant 0 : i32
    %c0_i32_0 = arith.constant 0 : i32
    %c0_i32_1 = arith.constant 0 : i32
    return %c0_i32, %c0_i32_0 : i32, i32
  }
  func.func @transform_4(%arg0: i32) -> (i32, i32) {
    %c0_i32 = arith.constant 0 : i32
    %c0_i32_0 = arith.constant 0 : i32
    %c0_i32_1 = arith.constant 0 : i32
    return %c0_i32, %c0_i32_0 : i32, i32
  }
  func.func @transform_5(%arg0: i32) -> (i32, i32) {
    %c0_i32 = arith.constant 0 : i32
    %c0_i32_0 = arith.constant 0 : i32
    %c0_i32_1 = arith.constant 0 : i32
    return %c0_i32, %c0_i32_0 : i32, i32
  }
  func.func @transform_6(%arg0: i32) -> (i32, i32, i32) {
    %c0_i32 = arith.constant 0 : i32
    %c0_i32_0 = arith.constant 0 : i32
    %c0_i32_1 = arith.constant 0 : i32
    return %arg0, %c0_i32, %c0_i32_0 : i32, i32, i32
  }
}

</mosaic_0001>

<llo_original>
// kernel: tpu_custom_call.1
$region0: #{tpu_custom_call.1}
  #allocation0 [shape = 'u32[]', space=smem, size = 0x4, offset = 0x4, fixed_abs, tag = 'smem constant byte address 0x4 - core index']
  #allocation1 [shape = 'u32[144,128]{1,0:T(1,128)}', space=vmem, size = 0x12000, scoped, tag = 'internal scratch']
  #allocation2 [shape = 'bf16[360,128]{1,0:T(8,128)(2,1)}', space=vmem, size = 0x16800, scoped, tag = 'scratch operand']
  %s0 = inlined_call_operand.hbm [shape: bf16[2,432,128], index: 0, kind: input, shape index: {}]
  %s1 = inlined_call_operand.vmem [shape: f32[360,1], index: 1, kind: input, shape index: {}]
  %s2 = inlined_call_operand.hbm [shape: bf16[1152,128], index: 2, kind: input, shape index: {}]
  %s3 = inlined_call_operand.vmem [shape: f32[1,128], index: 3, kind: input, shape index: {}]
  %s4 = inlined_call_operand.hbm [shape: bf16[1152,128], index: 4, kind: input, shape index: {}]
  %s5 = inlined_call_operand.vmem [shape: f32[1,128], index: 5, kind: input, shape index: {}]
  %s6 = inlined_call_operand.hbm [shape: f32[2,288,128], index: 6, kind: output, shape index: {}]
  %s7 = sld [smem:[#allocation0]]
  $region69: #{tpu_custom_call.1} parent=0
    _
  %s9 = ssub.s32 1, %s7
  %s10 = scalar_select 0, %s9, %s7
  $region1: #{tpu_custom_call.1} parent=0
    #allocation3 [shape = 'u8[221184]{0}', space=vmem, size = 0x36000, scoped, tag = 'input window, operand 0']
    #allocation4 [shape = 's32[2]{0}', space=sflag, size = 0x8, scoped, tag = 'scoped memory for tpu_custom_call.1']
    #allocation5 [shape = 's32[2]{0}', space=sflag, size = 0x8, scoped, tag = 'scoped memory for tpu_custom_call.1']
    #allocation6 [shape = 'u8[294912]{0}', space=vmem, size = 0x48000, scoped, tag = 'input window, operand 2, single buffered']
    #allocation7 [shape = 's32[1]{0}', space=sflag, size = 0x4, scoped, tag = 'scoped memory for tpu_custom_call.1']
    #allocation8 [shape = 'u8[294912]{0}', space=vmem, size = 0x48000, scoped, tag = 'input window, operand 4, single buffered']
    #allocation9 [shape = 'u8[294912]{0}', space=vmem, size = 0x48000, scoped, tag = 'output window, operand 0']
    %11 = vsyncpa [#allocation4], 0
    %s12 = scalar_lea.sflag [#allocation4], 1
    %13 = vsyncpa %s12, 0
    %14 = vsyncpa [#allocation7], 0
    %15 = vsyncpa [#allocation5], 0
    %s16 = scalar_lea.sflag [#allocation5], 1
    %17 = vsyncpa %s16, 0
    loop: start=0, step=1, limit=4
    $region2: #{tpu_custom_call.1} parent=1 // loop_pre_header
      _
    $region3: #{tpu_custom_call.1} parent=1 // loop_header
      %s19 = sphi 0, %s23
      %p20 = scmp.ge.s32.totalorder %s19, 4
      %s29 = sphi 0, %s31
      %s32 = sphi 0, %s29
      %s33 = sphi 0, %s32
      %s49 = sphi 0, %s33
      %s53 = sphi 0, %s53
      %s55 = sphi 0, %s53
      %s56 = sphi 0, %s55
      %s70 = sphi 0, %s56
      %s74 = sphi 0, %s74
      %s76 = sphi 0, %s74
      %s77 = sphi 0, %s76
      %s91 = sphi 0, %s77
      %s95 = sphi 0, %s95
      %s97 = sphi 0, %s95
      %s98 = sphi 0, %s97
      %s112 = sphi 0, %s98
      %s116 = sphi 0, %s116
      %s118 = sphi 0, %s116
      %s119 = sphi 0, %s118
      %s133 = sphi 0, %s119
      %s137 = sphi 0, %s137
      %s139 = sphi 0, %s137
      %s140 = sphi 0, %s139
      %s154 = sphi 0, %s140
      %s160 = sphi 0, %s162
      %s163 = sphi 0, %s160
      %s164 = sphi 0, %s163
      %s180 = sphi 0, %s164
    $region4: #{tpu_custom_call.1} parent=1 // loop_header_branch
      %22 = sbr.rel (%p20) target = $region8
    $region5: #{tpu_custom_call.1} parent=1 // loop_body
      %s24 = ssub.s32 %s19, 1
      %s25 = ssub.s32 %s19, 2
      %s26 = sadd.s32 %s19, 1
      %s27 = ssub.s32 %s19, %s26
      %p28 = scmp.eq.s32.totalorder %s27, 0
      %s30 = sadd.s32 %s29, 1
      %s31 = scalar_select %p28, %s29, %s30
      %p34 = pneg %p28
      %p35 = scmp.eq.s32.totalorder %s19, 1
      %p36 = por %p34, %p35
      %p37 = scmp.ne.s32.totalorder %s29, %s32
      %p38 = scmp.eq.s32.totalorder %s19, 0
      %p39 = por %p37, %p38
      %p40 = scmp.ne.s32.totalorder %s29, %s32
      %p41 = scmp.eq.s32.totalorder %s24, 1
      %p42 = por %p40, %p41
      %p43 = scmp.ne.s32.totalorder %s32, %s33
      %p44 = scmp.eq.s32.totalorder %s24, 0
      %p45 = por %p43, %p44
      %p46 = scmp.ne.s32.totalorder %s32, %s33
      %p47 = scmp.eq.s32.totalorder %s25, 1
      %p48 = por %p46, %p47
      %p50 = scmp.ne.s32.totalorder %s33, %s49
      %p51 = scmp.eq.s32.totalorder %s25, 0
      %p52 = por %p50, %p51
      %s54 = sadd.s32 %s53, 1
      %p57 = scmp.eq.s32.totalorder %s19, 1
      %p58 = scmp.ne.s32.totalorder %s53, %s55
      %p59 = scmp.eq.s32.totalorder %s19, 0
      %p60 = por %p58, %p59
      %p61 = scmp.ne.s32.totalorder %s53, %s55
      %p62 = scmp.eq.s32.totalorder %s24, 1
      %p63 = por %p61, %p62
      %p64 = scmp.ne.s32.totalorder %s55, %s56
      %p65 = scmp.eq.s32.totalorder %s24, 0
      %p66 = por %p64, %p65
      %p67 = scmp.ne.s32.totalorder %s55, %s56
      %p68 = scmp.eq.s32.totalorder %s25, 1
      %p69 = por %p67, %p68
      %p71 = scmp.ne.s32.totalorder %s56, %s70
      %p72 = scmp.eq.s32.totalorder %s25, 0
      %p73 = por %p71, %p72
      %s75 = sadd.s32 %s74, 1
      %p78 = scmp.eq.s32.totalorder %s19, 1
      %p79 = scmp.ne.s32.totalorder %s74, %s76
      %p80 = scmp.eq.s32.totalorder %s19, 0
      %p81 = por %p79, %p80
      %p82 = scmp.ne.s32.totalorder %s74, %s76
      %p83 = scmp.eq.s32.totalorder %s24, 1
      %p84 = por %p82, %p83
      %p85 = scmp.ne.s32.totalorder %s76, %s77
      %p86 = scmp.eq.s32.totalorder %s24, 0
      %p87 = por %p85, %p86
      %p88 = scmp.ne.s32.totalorder %s76, %s77
      %p89 = scmp.eq.s32.totalorder %s25, 1
      %p90 = por %p88, %p89
      %p92 = scmp.ne.s32.totalorder %s77, %s91
      %p93 = scmp.eq.s32.totalorder %s25, 0
      %p94 = por %p92, %p93
      %s96 = sadd.s32 %s95, 1
      %p99 = scmp.eq.s32.totalorder %s19, 1
      %p100 = scmp.ne.s32.totalorder %s95, %s97
      %p101 = scmp.eq.s32.totalorder %s19, 0
      %p102 = por %p100, %p101
      %p103 = scmp.ne.s32.totalorder %s95, %s97
      %p104 = scmp.eq.s32.totalorder %s24, 1
      %p105 = por %p103, %p104
      %p106 = scmp.ne.s32.totalorder %s97, %s98
      %p107 = scmp.eq.s32.totalorder %s24, 0
      %p108 = por %p106, %p107
      %p109 = scmp.ne.s32.totalorder %s97, %s98
      %p110 = scmp.eq.s32.totalorder %s25, 1
      %p111 = por %p109, %p110
      %p113 = scmp.ne.s32.totalorder %s98, %s112
      %p114 = scmp.eq.s32.totalorder %s25, 0
      %p115 = por %p113, %p114
      %s117 = sadd.s32 %s116, 1
      %p120 = scmp.eq.s32.totalorder %s19, 1
      %p121 = scmp.ne.s32.totalorder %s116, %s118
      %p122 = scmp.eq.s32.totalorder %s19, 0
      %p123 = por %p121, %p122
      %p124 = scmp.ne.s32.totalorder %s116, %s118
      %p125 = scmp.eq.s32.totalorder %s24, 1
      %p126 = por %p124, %p125
      %p127 = scmp.ne.s32.totalorder %s118, %s119
      %p128 = scmp.eq.s32.totalorder %s24, 0
      %p129 = por %p127, %p128
      %p130 = scmp.ne.s32.totalorder %s118, %s119
      %p131 = scmp.eq.s32.totalorder %s25, 1
      %p132 = por %p130, %p131
      %p134 = scmp.ne.s32.totalorder %s119, %s133
      %p135 = scmp.eq.s32.totalorder %s25, 0
      %p136 = por %p134, %p135
      %s138 = sadd.s32 %s137, 1
      %p141 = scmp.eq.s32.totalorder %s19, 1
      %p142 = scmp.ne.s32.totalorder %s137, %s139
      %p143 = scmp.eq.s32.totalorder %s19, 0
      %p144 = por %p142, %p143
      %p145 = scmp.ne.s32.totalorder %s137, %s139
      %p146 = scmp.eq.s32.totalorder %s24, 1
      %p147 = por %p145, %p146
      %p148 = scmp.ne.s32.totalorder %s139, %s140
      %p149 = scmp.eq.s32.totalorder %s24, 0
      %p150 = por %p148, %p149
      %p151 = scmp.ne.s32.totalorder %s139, %s140
      %p152 = scmp.eq.s32.totalorder %s25, 1
      %p153 = por %p151, %p152
      %p155 = scmp.ne.s32.totalorder %s140, %s154
      %p156 = scmp.eq.s32.totalorder %s25, 0
      %p157 = por %p155, %p156
      %s158 = ssub.s32 %s19, %s26
      %p159 = scmp.eq.s32.totalorder %s158, 0
      %s161 = sadd.s32 %s160, 1
      %s162 = scalar_select %p159, %s160, %s161
      %p165 = pneg %p159
      %p166 = scmp.eq.s32.totalorder %s19, 1
      %p167 = por %p165, %p166
      %p168 = scmp.ne.s32.totalorder %s160, %s163
      %p169 = scmp.eq.s32.totalorder %s19, 0
      %p170 = por %p168, %p169
      %p171 = scmp.ne.s32.totalorder %s160, %s163
      %p172 = scmp.eq.s32.totalorder %s24, 1
      %p173 = por %p171, %p172
      %p174 = scmp.ne.s32.totalorder %s163, %s164
      %p175 = scmp.eq.s32.totalorder %s24, 0
      %p176 = por %p174, %p175
      %p177 = scmp.ne.s32.totalorder %s163, %s164
      %p178 = scmp.eq.s32.totalorder %s25, 1
      %p179 = por %p177, %p178
      %p181 = scmp.ne.s32.totalorder %s164, %s180
      %p182 = scmp.eq.s32.totalorder %s25, 0
      %p183 = por %p181, %p182
      %p184 = scmp.le.s32.totalorder 1, %s19
      %p185 = scmp.lt.s32.totalorder %s19, 3
      %p186 = pnand %p184, %p185
      %p187 = pneg %p186
      // Predicated region
      $region9: #{tpu_custom_call.1} parent=5 // pred_check
        _
      $region10: #{tpu_custom_call.1} parent=5 // pred_check_branch
        %189 = sbr.rel (%p186) target = $region12
      $region11: #{tpu_custom_call.1} parent=5 // pred_region
        %s190 = ssub.s32 %s19, 1
        // Predicated region
        $region13: #{tpu_custom_call.1} parent=11 // pred_check
          %p191 = pneg %p66
        $region14: #{tpu_custom_call.1} parent=11 // pred_check_branch
          %193 = sbr.rel (%p191) target = $region16
        $region15: #{tpu_custom_call.1} parent=11 // pred_region
          _
        $region16: #{tpu_custom_call.1} parent=11 // pred_fallthru
          _
        // Predicated region
        $region17: #{tpu_custom_call.1} parent=11 // pred_check
          %p194 = pneg %p87
        $region18: #{tpu_custom_call.1} parent=11 // pred_check_branch
          %196 = sbr.rel (%p194) target = $region20
        $region19: #{tpu_custom_call.1} parent=11 // pred_region
          %s198 = ssub.s32 9216, 9216
          %199 = vsyncadd [#allocation7], %s198
          %s200 = sshll.u32 [#allocation6], 4
          %s201 = int_to_ptr.vmem [resolvable:$true] %s200
          %206 = dma.hbm_to_vmem [thread:$0]  %s2, 9216, %s201, [#allocation7], 64, 64, 4
        $region20: #{tpu_custom_call.1} parent=11 // pred_fallthru
          _
        // Predicated region
        $region21: #{tpu_custom_call.1} parent=11 // pred_check
          %p207 = pneg %p108
        $region22: #{tpu_custom_call.1} parent=11 // pred_check_branch
          %209 = sbr.rel (%p207) target = $region24
        $region23: #{tpu_custom_call.1} parent=11 // pred_region
          _
        $region24: #{tpu_custom_call.1} parent=11 // pred_fallthru
          _
        // Predicated region
        $region25: #{tpu_custom_call.1} parent=11 // pred_check
          %p210 = pneg %p129
        $region26: #{tpu_custom_call.1} parent=11 // pred_check_branch
          %212 = sbr.rel (%p210) target = $region28
        $region27: #{tpu_custom_call.1} parent=11 // pred_region
          %s214 = ssub.s32 9216, 9216
          %215 = vsyncadd [#allocation7], %s214
          %s216 = sshll.u32 [#allocation8], 4
          %s217 = int_to_ptr.vmem [resolvable:$true] %s216
          %222 = dma.hbm_to_vmem [thread:$0]  %s4, 9216, %s217, [#allocation7], 64, 64, 4
        $region28: #{tpu_custom_call.1} parent=11 // pred_fallthru
          _
        // Predicated region
        $region29: #{tpu_custom_call.1} parent=11 // pred_check
          %p223 = pneg %p150
        $region30: #{tpu_custom_call.1} parent=11 // pred_check_branch
          %225 = sbr.rel (%p223) target = $region32
        $region31: #{tpu_custom_call.1} parent=11 // pred_region
          _
        $region32: #{tpu_custom_call.1} parent=11 // pred_fallthru
          _
      $region12: #{tpu_custom_call.1} parent=5 // pred_fallthru
        _
      %p226 = scmp.lt.s32.totalorder %s19, 2
      // Predicated region
      $region33: #{tpu_custom_call.1} parent=5 // pred_check
        %p227 = pneg %p226
      $region34: #{tpu_custom_call.1} parent=5 // pred_check_branch
        %229 = sbr.rel (%p227) target = $region36
      $region35: #{tpu_custom_call.1} parent=5 // pred_region
        // Predicated region
        $region37: #{tpu_custom_call.1} parent=35 // pred_check
          %p230 = pneg %p39
        $region38: #{tpu_custom_call.1} parent=35 // pred_check_branch
          %232 = sbr.rel (%p230) target = $region40
        $region39: #{tpu_custom_call.1} parent=35 // pred_region
          %s233 = sand.u32 %s29, 1
          %s234 = scalar_lea.sflag [#allocation4], %s233
          %s235 = sand.u32 %s29, 1
          %s236 = smul.addr %s235, 216
          %s237 = scalar_lea.vmem [#allocation3], %s236
          %s239 = ssub.s32 3456, 3456
          %240 = vsyncadd %s234, %s239
          %s241 = smul.addr %s19, 54
          %s242 = smul.addr %s241, 64
          %s243 = scalar_lea.hbm %s0, %s242
          %s244 = sshll.u32 %s237, 4
          %s245 = int_to_ptr.vmem [resolvable:$true] %s244
          %250 = dma.hbm_to_vmem [thread:$0]  %s243, 3456, %s245, %s234, 64, 64, 4
        $region40: #{tpu_custom_call.1} parent=35 // pred_fallthru
          _
      $region36: #{tpu_custom_call.1} parent=5 // pred_fallthru
        _
      %p251 = scmp.le.s32.totalorder 1, %s19
      %p252 = scmp.lt.s32.totalorder %s19, 3
      %p253 = pnand %p251, %p252
      %p254 = pneg %p253
      // Predicated region
      $region41: #{tpu_custom_call.1} parent=5 // pred_check
        _
      $region42: #{tpu_custom_call.1} parent=5 // pred_check_branch
        %256 = sbr.rel (%p253) target = $region44
      $region43: #{tpu_custom_call.1} parent=5 // pred_region
        %s257 = ssub.s32 %s19, 1
        %s258 = sand.u32 %s32, 1
        %s259 = scalar_lea.sflag [#allocation4], %s258
        %s260 = sand.u32 %s32, 1
        %s261 = smul.addr %s260, 216
        %s262 = scalar_lea.vmem [#allocation3], %s261
        // Predicated region
        $region45: #{tpu_custom_call.1} parent=43 // pred_check
          %p263 = pneg %p45
        $region46: #{tpu_custom_call.1} parent=43 // pred_check_branch
          %265 = sbr.rel (%p263) target = $region48
        $region47: #{tpu_custom_call.1} parent=43 // pred_region
          %266 = dma.done %s259, 3456
        $region48: #{tpu_custom_call.1} parent=43 // pred_fallthru
          _
        // Predicated region
        $region49: #{tpu_custom_call.1} parent=43 // pred_check
          %p267 = pneg %p87
        $region50: #{tpu_custom_call.1} parent=43 // pred_check_branch
          %269 = sbr.rel (%p267) target = $region52
        $region51: #{tpu_custom_call.1} parent=43 // pred_region
          %270 = dma.done [#allocation7], 9216
        $region52: #{tpu_custom_call.1} parent=43 // pred_fallthru
          _
        // Predicated region
        $region53: #{tpu_custom_call.1} parent=43 // pred_check
          %p271 = pneg %p129
        $region54: #{tpu_custom_call.1} parent=43 // pred_check_branch
          %273 = sbr.rel (%p271) target = $region56
        $region55: #{tpu_custom_call.1} parent=43 // pred_region
          %274 = dma.done [#allocation7], 9216
        $region56: #{tpu_custom_call.1} parent=43 // pred_fallthru
          _
        %s275 = sand.u32 %s32, 1
        %s276 = scalar_lea.sflag [#allocation4], %s275
        %s277 = sand.u32 %s32, 1
        %s278 = smul.addr %s277, 216
        %s279 = scalar_lea.vmem [#allocation3], %s278
        %p280 = pneg %p45
        %p281 = pneg %p42
        %p282 = pneg %p66
        %p283 = pneg %p63
        %p284 = pneg %p87
        %p285 = pneg %p84
        %p286 = pneg %p108
        %p287 = pneg %p105
        %p288 = pneg %p129
        %p289 = pneg %p126
        %p290 = pneg %p150
        %p291 = pneg %p147
        %p292 = pneg %p176
        %p293 = pneg %p173
        %s294 = sand.u32 %s163, 1
        %s295 = scalar_lea.sflag [#allocation5], %s294
        %s296 = sand.u32 %s163, 1
        %s297 = smul.addr %s296, 288
        %s298 = scalar_lea.vmem [#allocation9], %s297
        %v300 = vld [vmem:[%s262 + $0x8] sm:$0xf]
        %v301 = vld [vmem:[%s262 + $0xc] sm:$0xf]
        %v302 = vld [vmem:[%s262 + $0x10] sm:$0xf]
        %v303 = vld [vmem:[%s262 + $0x14] sm:$0xf]
        %v304 = vld [vmem:[%s262 + $0x18] sm:$0xf]
        %v305 = vld [vmem:[%s262 + $0x1c] sm:$0xf]
        %v306 = vld [vmem:[%s262 + $0x20] sm:$0xf]
        %v307 = vld [vmem:[%s262 + $0x24] sm:$0xf]
        %v308 = vld [vmem:[%s262 + $0x28] sm:$0xf]
        %v309 = vld [vmem:[%s262 + $0x2c] sm:$0xf]
        %v310 = vld [vmem:[%s262 + $0x30] sm:$0xf]
        %v311 = vld [vmem:[%s262 + $0x34] sm:$0xf]
        %v312 = vld [vmem:[%s262 + $0x38] sm:$0xf]
        %v313 = vld [vmem:[%s262 + $0x3c] sm:$0xf]
        %v314 = vld [vmem:[%s262 + $0x40] sm:$0xf]
        %v315 = vld [vmem:[%s262 + $0x44] sm:$0xf]
        %v316 = vld [vmem:[%s262 + $0x48] sm:$0xf]
        %v317 = vld [vmem:[%s262 + $0x4c] sm:$0xf]
        %v318 = vld [vmem:[%s262 + $0x50] sm:$0xf]
        %v319 = vld [vmem:[%s262 + $0x54] sm:$0xf]
        %v320 = vld [vmem:[%s262 + $0x58] sm:$0xf]
        %v321 = vld [vmem:[%s262 + $0x5c] sm:$0xf]
        %v322 = vld [vmem:[%s262 + $0x60] sm:$0xf]
        %v323 = vld [vmem:[%s262 + $0x64] sm:$0xf]
        %v324 = vld [vmem:[%s262 + $0x68] sm:$0xf]
        %v325 = vld [vmem:[%s262 + $0x6c] sm:$0xf]
        %v326 = vld [vmem:[%s262 + $0x70] sm:$0xf]
        %v327 = vld [vmem:[%s262 + $0x74] sm:$0xf]
        %v328 = vld [vmem:[%s262 + $0x78] sm:$0xf]
        %v329 = vld [vmem:[%s262 + $0x7c] sm:$0xf]
        %v330 = vld [vmem:[%s262 + $0x80] sm:$0xf]
        %v331 = vld [vmem:[%s262 + $0x84] sm:$0xf]
        %v332 = vld [vmem:[%s262 + $0x88] sm:$0xf]
        %v333 = vld [vmem:[%s262 + $0x8c] sm:$0xf]
        %v334 = vld [vmem:[%s262 + $0x90] sm:$0xf]
        %v335 = vld [vmem:[%s262 + $0x94] sm:$0xf]
        %v336 = vld [vmem:[%s262 + $0x98] sm:$0xf]
        %v337 = vld [vmem:[%s262 + $0x9c] sm:$0xf]
        %v338 = vld [vmem:[%s262 + $0xa0] sm:$0xf]
        %v339 = vld [vmem:[%s262 + $0xa4] sm:$0xf]
        %v340 = vld [vmem:[%s262 + $0xa8] sm:$0xf]
        %v341 = vld [vmem:[%s262 + $0xac] sm:$0xf]
        %v342 = vld [vmem:[%s262 + $0xb0] sm:$0xf]
        %v343 = vld [vmem:[%s262 + $0xb4] sm:$0xf]
        %v344 = vld [vmem:[%s262 + $0xb8] sm:$0xf]
        %v345 = vld [vmem:[%s262 + $0xbc] sm:$0x1]
        %v346 = vld [vmem:[%s262 + $0x8] sm:$0xe]
        %v347 = vld [vmem:[%s262 + $0xbc] sm:$0x3]
        %v348 = vld [vmem:[%s262 + $0x10] sm:$0xe]
        %v349 = vld [vmem:[%s262 + $0xbc] sm:$0xf]
        %v350 = vld [vmem:[%s262 + $0xc0] sm:$0xf]
        %v351 = vld [vmem:[%s262 + $0xc4] sm:$0x3]
        %v352 = vld [vmem:[%s262 + $0x10] sm:$0xc]
        %v353 = vld [vmem:[%s262 + $0xc4] sm:$0x7]
        %v354 = vld [vmem:[%s262 + $0x18] sm:$0xc]
        %v355 = vld [vmem:[%s262 + $0xc4] sm:$0xf]
        %v356 = vld [vmem:[%s262 + $0xc8] sm:$0xf]
        %v357 = vld [vmem:[%s262 + $0xcc] sm:$0x7]
        %v358 = vld [vmem:[%s262 + $0x18] sm:$0x8]
        %v359 = vld [vmem:[%s262 + $0xcc] sm:$0xf]
        %v406 = vunpack.c.l.b16 %v300
        %v407 = vunpack.c.l.b16 %v301
        %v408 = vunpack.c.l.b16 %v302
        %v409 = vunpack.c.l.b16 %v303
        %v410 = vunpack.c.l.b16 %v304
        %v411 = vunpack.c.l.b16 %v305
        %v412 = vunpack.c.l.b16 %v306
        %v413 = vunpack.c.l.b16 %v307
        %v414 = vunpack.c.l.b16 %v308
        %v415 = vunpack.c.l.b16 %v309
        %v416 = vunpack.c.l.b16 %v310
        %v417 = vunpack.c.l.b16 %v311
        %v418 = vunpack.c.l.b16 %v312
        %v419 = vunpack.c.l.b16 %v313
        %v420 = vunpack.c.l.b16 %v314
        %v421 = vunpack.c.l.b16 %v315
        %v422 = vunpack.c.l.b16 %v316
        %v423 = vunpack.c.l.b16 %v317
        %v424 = vunpack.c.l.b16 %v318
        %v425 = vunpack.c.l.b16 %v319
        %v426 = vunpack.c.l.b16 %v320
        %v427 = vunpack.c.l.b16 %v321
        %v428 = vunpack.c.l.b16 %v322
        %v429 = vunpack.c.l.b16 %v323
        %v430 = vunpack.c.l.b16 %v324
        %v431 = vunpack.c.l.b16 %v325
        %v432 = vunpack.c.l.b16 %v326
        %v433 = vunpack.c.l.b16 %v327
        %v434 = vunpack.c.l.b16 %v328
        %v435 = vunpack.c.l.b16 %v329
        %v436 = vunpack.c.l.b16 %v330
        %v437 = vunpack.c.l.b16 %v331
        %v438 = vunpack.c.l.b16 %v332
        %v439 = vunpack.c.l.b16 %v333
        %v440 = vunpack.c.l.b16 %v334
        %v441 = vunpack.c.l.b16 %v335
        %v442 = vunpack.c.l.b16 %v336
        %v443 = vunpack.c.l.b16 %v337
        %v444 = vunpack.c.l.b16 %v338
        %v445 = vunpack.c.l.b16 %v339
        %v446 = vunpack.c.l.b16 %v340
        %v447 = vunpack.c.l.b16 %v341
        %v448 = vunpack.c.l.b16 %v342
        %v449 = vunpack.c.l.b16 %v343
        %v450 = vunpack.c.l.b16 %v344
        %v451 = vunpack.c.l.b16 %v345
        %v452 = vpack.c.b16 %v407, %v406
        %v453 = vpack.c.b16 %v409, %v408
        %v454 = vpack.c.b16 %v411, %v410
        %v455 = vpack.c.b16 %v413, %v412
        %v456 = vpack.c.b16 %v415, %v414
        %v457 = vpack.c.b16 %v417, %v416
        %v458 = vpack.c.b16 %v419, %v418
        %v459 = vpack.c.b16 %v421, %v420
        %v460 = vpack.c.b16 %v423, %v422
        %v461 = vpack.c.b16 %v425, %v424
        %v462 = vpack.c.b16 %v427, %v426
        %v463 = vpack.c.b16 %v429, %v428
        %v464 = vpack.c.b16 %v431, %v430
        %v465 = vpack.c.b16 %v433, %v432
        %v466 = vpack.c.b16 %v435, %v434
        %v467 = vpack.c.b16 %v437, %v436
        %v468 = vpack.c.b16 %v439, %v438
        %v469 = vpack.c.b16 %v441, %v440
        %v470 = vpack.c.b16 %v443, %v442
        %v471 = vpack.c.b16 %v445, %v444
        %v472 = vpack.c.b16 %v447, %v446
        %v473 = vpack.c.b16 %v449, %v448
        %v474 = vpack.c.b16 %v451, %v450
        %v476 = vunpack.c.l.b16 %v346
        %v477 = vpack.c.b16 %v407, %v476
        %vm478 = vsmask.f32 7424
        %v480 = vshrl.u32 %v477, 16
        %v482 = vshll.u32 %v477, 16
        %v484 = vrot.slane %v482, 1
        %v485 = vor.u32 %v480, %v484
        %v487 = vshll.u32 %v453, 16
        %v489 = vrot.slane %v487, 1
        %v490 = vsel %vm478, %v485, %v489
        %v491 = vshrl.u32 %v453, 16
        %v493 = vor.u32 %v491, %v489
        %v495 = vshll.u32 %v454, 16
        %v497 = vrot.slane %v495, 1
        %v498 = vsel %vm478, %v493, %v497
        %v499 = vshrl.u32 %v454, 16
        %v501 = vor.u32 %v499, %v497
        %v503 = vshll.u32 %v455, 16
        %v505 = vrot.slane %v503, 1
        %v506 = vsel %vm478, %v501, %v505
        %v507 = vshrl.u32 %v455, 16
        %v509 = vor.u32 %v507, %v505
        %v511 = vshll.u32 %v456, 16
        %v513 = vrot.slane %v511, 1
        %v514 = vsel %vm478, %v509, %v513
        %v515 = vshrl.u32 %v456, 16
        %v517 = vor.u32 %v515, %v513
        %v519 = vshll.u32 %v457, 16
        %v521 = vrot.slane %v519, 1
        %v522 = vsel %vm478, %v517, %v521
        %v523 = vshrl.u32 %v457, 16
        %v525 = vor.u32 %v523, %v521
        %v527 = vshll.u32 %v458, 16
        %v529 = vrot.slane %v527, 1
        %v530 = vsel %vm478, %v525, %v529
        %v531 = vshrl.u32 %v458, 16
        %v533 = vor.u32 %v531, %v529
        %v535 = vshll.u32 %v459, 16
        %v537 = vrot.slane %v535, 1
        %v538 = vsel %vm478, %v533, %v537
        %v539 = vshrl.u32 %v459, 16
        %v541 = vor.u32 %v539, %v537
        %v543 = vshll.u32 %v460, 16
        %v545 = vrot.slane %v543, 1
        %v546 = vsel %vm478, %v541, %v545
        %v547 = vshrl.u32 %v460, 16
        %v549 = vor.u32 %v547, %v545
        %v551 = vshll.u32 %v461, 16
        %v553 = vrot.slane %v551, 1
        %v554 = vsel %vm478, %v549, %v553
        %v555 = vshrl.u32 %v461, 16
        %v557 = vor.u32 %v555, %v553
        %v559 = vshll.u32 %v462, 16
        %v561 = vrot.slane %v559, 1
        %v562 = vsel %vm478, %v557, %v561
        %v563 = vshrl.u32 %v462, 16
        %v565 = vor.u32 %v563, %v561
        %v567 = vshll.u32 %v463, 16
        %v569 = vrot.slane %v567, 1
        %v570 = vsel %vm478, %v565, %v569
        %v571 = vshrl.u32 %v463, 16
        %v573 = vor.u32 %v571, %v569
        %v575 = vshll.u32 %v464, 16
        %v577 = vrot.slane %v575, 1
        %v578 = vsel %vm478, %v573, %v577
        %v579 = vshrl.u32 %v464, 16
        %v581 = vor.u32 %v579, %v577
        %v583 = vshll.u32 %v465, 16
        %v585 = vrot.slane %v583, 1
        %v586 = vsel %vm478, %v581, %v585
        %v587 = vshrl.u32 %v465, 16
        %v589 = vor.u32 %v587, %v585
        %v591 = vshll.u32 %v466, 16
        %v593 = vrot.slane %v591, 1
        %v594 = vsel %vm478, %v589, %v593
        %v595 = vshrl.u32 %v466, 16
        %v597 = vor.u32 %v595, %v593
        %v599 = vshll.u32 %v467, 16
        %v601 = vrot.slane %v599, 1
        %v602 = vsel %vm478, %v597, %v601
        %v603 = vshrl.u32 %v467, 16
        %v605 = vor.u32 %v603, %v601
        %v607 = vshll.u32 %v468, 16
        %v609 = vrot.slane %v607, 1
        %v610 = vsel %vm478, %v605, %v609
        %v611 = vshrl.u32 %v468, 16
        %v613 = vor.u32 %v611, %v609
        %v615 = vshll.u32 %v469, 16
        %v617 = vrot.slane %v615, 1
        %v618 = vsel %vm478, %v613, %v617
        %v619 = vshrl.u32 %v469, 16
        %v621 = vor.u32 %v619, %v617
        %v623 = vshll.u32 %v470, 16
        %v625 = vrot.slane %v623, 1
        %v626 = vsel %vm478, %v621, %v625
        %v627 = vshrl.u32 %v470, 16
        %v629 = vor.u32 %v627, %v625
        %v631 = vshll.u32 %v471, 16
        %v633 = vrot.slane %v631, 1
        %v634 = vsel %vm478, %v629, %v633
        %v635 = vshrl.u32 %v471, 16
        %v637 = vor.u32 %v635, %v633
        %v639 = vshll.u32 %v472, 16
        %v641 = vrot.slane %v639, 1
        %v642 = vsel %vm478, %v637, %v641
        %v643 = vshrl.u32 %v472, 16
        %v645 = vor.u32 %v643, %v641
        %v647 = vshll.u32 %v473, 16
        %v649 = vrot.slane %v647, 1
        %v650 = vsel %vm478, %v645, %v649
        %v651 = vshrl.u32 %v473, 16
        %v653 = vor.u32 %v651, %v649
        %v655 = vshll.u32 %v474, 16
        %v657 = vrot.slane %v655, 1
        %v658 = vsel %vm478, %v653, %v657
        %v659 = vshrl.u32 %v474, 16
        %v661 = vor.u32 %v659, %v657
        %v663 = vunpack.c.l.b16 %v347
        %v664 = vpack.c.b16 %v663, %v450
        %vm665 = vcmask 1046528
        %v666 = vrot.slane %v477, 1
        %v667 = vrot.slane %v453, 1
        %v668 = vsel %vm665, %v666, %v667
        %v669 = vrot.slane %v454, 1
        %v670 = vsel %vm665, %v667, %v669
        %v671 = vrot.slane %v455, 1
        %v672 = vsel %vm665, %v669, %v671
        %v673 = vrot.slane %v456, 1
        %v674 = vsel %vm665, %v671, %v673
        %v675 = vrot.slane %v457, 1
        %v676 = vsel %vm665, %v673, %v675
        %v677 = vrot.slane %v458, 1
        %v678 = vsel %vm665, %v675, %v677
        %v679 = vrot.slane %v459, 1
        %v680 = vsel %vm665, %v677, %v679
        %v681 = vrot.slane %v460, 1
        %v682 = vsel %vm665, %v679, %v681
        %v683 = vrot.slane %v461, 1
        %v684 = vsel %vm665, %v681, %v683
        %v685 = vrot.slane %v462, 1
        %v686 = vsel %vm665, %v683, %v685
        %v687 = vrot.slane %v463, 1
        %v688 = vsel %vm665, %v685, %v687
        %v689 = vrot.slane %v464, 1
        %v690 = vsel %vm665, %v687, %v689
        %v691 = vrot.slane %v465, 1
        %v692 = vsel %vm665, %v689, %v691
        %v693 = vrot.slane %v466, 1
        %v694 = vsel %vm665, %v691, %v693
        %v695 = vrot.slane %v467, 1
        %v696 = vsel %vm665, %v693, %v695
        %v697 = vrot.slane %v468, 1
        %v698 = vsel %vm665, %v695, %v697
        %v699 = vrot.slane %v469, 1
        %v700 = vsel %vm665, %v697, %v699
        %v701 = vrot.slane %v470, 1
        %v702 = vsel %vm665, %v699, %v701
        %v703 = vrot.slane %v471, 1
        %v704 = vsel %vm665, %v701, %v703
        %v705 = vrot.slane %v472, 1
        %v706 = vsel %vm665, %v703, %v705
        %v707 = vrot.slane %v473, 1
        %v708 = vsel %vm665, %v705, %v707
        %v709 = vrot.slane %v664, 1
        %v710 = vsel %vm665, %v707, %v709
        %v715 = vunpack.c.l.b16 %v348
        %v716 = vunpack.c.l.b16 %v349
        %v717 = vunpack.c.l.b16 %v350
        %v718 = vunpack.c.l.b16 %v351
        %v719 = vpack.c.b16 %v409, %v715
        %v720 = vpack.c.b16 %v716, %v450
        %v721 = vpack.c.b16 %v718, %v717
        %v722 = vrot.slane %v719, 1
        %v723 = vsel %vm665, %v722, %v669
        %v724 = vrot.slane %v720, 1
        %v725 = vsel %vm665, %v707, %v724
        %v726 = vrot.slane %v721, 1
        %v727 = vsel %vm665, %v724, %v726
        %v729 = vunpack.c.l.b16 %v352
        %v730 = vpack.c.b16 %v409, %v729
        %vm731 = vsmask.f32 6400
        %v733 = vshrl.u32 %v730, 16
        %v735 = vrot.slane %v733, 1
        %v736 = vshll.u32 %v730, 16
        %v738 = vrot.slane %v736, 2
        %v739 = vor.u32 %v735, %v738
        %v740 = vrot.slane %v499, 1
        %v741 = vrot.slane %v495, 2
        %v742 = vor.u32 %v740, %v741
        %v743 = vsel %vm731, %v739, %v742
        %v744 = vrot.slane %v507, 1
        %v745 = vrot.slane %v503, 2
        %v746 = vor.u32 %v744, %v745
        %v747 = vsel %vm731, %v742, %v746
        %v748 = vrot.slane %v515, 1
        %v749 = vrot.slane %v511, 2
        %v750 = vor.u32 %v748, %v749
        %v751 = vsel %vm731, %v746, %v750
        %v752 = vrot.slane %v523, 1
        %v753 = vrot.slane %v519, 2
        %v754 = vor.u32 %v752, %v753
        %v755 = vsel %vm731, %v750, %v754
        %v756 = vrot.slane %v531, 1
        %v757 = vrot.slane %v527, 2
        %v758 = vor.u32 %v756, %v757
        %v759 = vsel %vm731, %v754, %v758
        %v760 = vrot.slane %v539, 1
        %v761 = vrot.slane %v535, 2
        %v762 = vor.u32 %v760, %v761
        %v763 = vsel %vm731, %v758, %v762
        %v764 = vrot.slane %v547, 1
        %v765 = vrot.slane %v543, 2
        %v766 = vor.u32 %v764, %v765
        %v767 = vsel %vm731, %v762, %v766
        %v768 = vrot.slane %v555, 1
        %v769 = vrot.slane %v551, 2
        %v770 = vor.u32 %v768, %v769
        %v771 = vsel %vm731, %v766, %v770
        %v772 = vrot.slane %v563, 1
        %v773 = vrot.slane %v559, 2
        %v774 = vor.u32 %v772, %v773
        %v775 = vsel %vm731, %v770, %v774
        %v776 = vrot.slane %v571, 1
        %v777 = vrot.slane %v567, 2
        %v778 = vor.u32 %v776, %v777
        %v779 = vsel %vm731, %v774, %v778
        %v780 = vrot.slane %v579, 1
        %v781 = vrot.slane %v575, 2
        %v782 = vor.u32 %v780, %v781
        %v783 = vsel %vm731, %v778, %v782
        %v784 = vrot.slane %v587, 1
        %v785 = vrot.slane %v583, 2
        %v786 = vor.u32 %v784, %v785
        %v787 = vsel %vm731, %v782, %v786
        %v788 = vrot.slane %v595, 1
        %v789 = vrot.slane %v591, 2
        %v790 = vor.u32 %v788, %v789
        %v791 = vsel %vm731, %v786, %v790
        %v792 = vrot.slane %v603, 1
        %v793 = vrot.slane %v599, 2
        %v794 = vor.u32 %v792, %v793
        %v795 = vsel %vm731, %v790, %v794
        %v796 = vrot.slane %v611, 1
        %v797 = vrot.slane %v607, 2
        %v798 = vor.u32 %v796, %v797
        %v799 = vsel %vm731, %v794, %v798
        %v800 = vrot.slane %v619, 1
        %v801 = vrot.slane %v615, 2
        %v802 = vor.u32 %v800, %v801
        %v803 = vsel %vm731, %v798, %v802
        %v804 = vrot.slane %v627, 1
        %v805 = vrot.slane %v623, 2
        %v806 = vor.u32 %v804, %v805
        %v807 = vsel %vm731, %v802, %v806
        %v808 = vrot.slane %v635, 1
        %v809 = vrot.slane %v631, 2
        %v810 = vor.u32 %v808, %v809
        %v811 = vsel %vm731, %v806, %v810
        %v812 = vrot.slane %v643, 1
        %v813 = vrot.slane %v639, 2
        %v814 = vor.u32 %v812, %v813
        %v815 = vsel %vm731, %v810, %v814
        %v816 = vrot.slane %v651, 1
        %v817 = vrot.slane %v647, 2
        %v818 = vor.u32 %v816, %v817
        %v819 = vsel %vm731, %v814, %v818
        %v821 = vshrl.u32 %v720, 16
        %v823 = vrot.slane %v821, 1
        %v824 = vshll.u32 %v720, 16
        %v826 = vrot.slane %v824, 2
        %v827 = vor.u32 %v823, %v826
        %v828 = vsel %vm731, %v818, %v827
        %v830 = vshrl.u32 %v721, 16
        %v832 = vrot.slane %v830, 1
        %v833 = vshll.u32 %v721, 16
        %v835 = vrot.slane %v833, 2
        %v836 = vor.u32 %v832, %v835
        %v837 = vsel %vm731, %v827, %v836
        %v839 = vunpack.c.l.b16 %v353
        %v840 = vpack.c.b16 %v839, %v717
        %vm841 = vcmask 1045504
        %v842 = vrot.slane %v730, 2
        %v843 = vrot.slane %v454, 2
        %v844 = vsel %vm841, %v842, %v843
        %v845 = vrot.slane %v455, 2
        %v846 = vsel %vm841, %v843, %v845
        %v847 = vrot.slane %v456, 2
        %v848 = vsel %vm841, %v845, %v847
        %v849 = vrot.slane %v457, 2
        %v850 = vsel %vm841, %v847, %v849
        %v851 = vrot.slane %v458, 2
        %v852 = vsel %vm841, %v849, %v851
        %v853 = vrot.slane %v459, 2
        %v854 = vsel %vm841, %v851, %v853
        %v855 = vrot.slane %v460, 2
        %v856 = vsel %vm841, %v853, %v855
        %v857 = vrot.slane %v461, 2
        %v858 = vsel %vm841, %v855, %v857
        %v859 = vrot.slane %v462, 2
        %v860 = vsel %vm841, %v857, %v859
        %v861 = vrot.slane %v463, 2
        %v862 = vsel %vm841, %v859, %v861
        %v863 = vrot.slane %v464, 2
        %v864 = vsel %vm841, %v861, %v863
        %v865 = vrot.slane %v465, 2
        %v866 = vsel %vm841, %v863, %v865
        %v867 = vrot.slane %v466, 2
        %v868 = vsel %vm841, %v865, %v867
        %v869 = vrot.slane %v467, 2
        %v870 = vsel %vm841, %v867, %v869
        %v871 = vrot.slane %v468, 2
        %v872 = vsel %vm841, %v869, %v871
        %v873 = vrot.slane %v469, 2
        %v874 = vsel %vm841, %v871, %v873
        %v875 = vrot.slane %v470, 2
        %v876 = vsel %vm841, %v873, %v875
        %v877 = vrot.slane %v471, 2
        %v878 = vsel %vm841, %v875, %v877
        %v879 = vrot.slane %v472, 2
        %v880 = vsel %vm841, %v877, %v879
        %v881 = vrot.slane %v473, 2
        %v882 = vsel %vm841, %v879, %v881
        %v883 = vrot.slane %v720, 2
        %v884 = vsel %vm841, %v881, %v883
        %v885 = vrot.slane %v840, 2
        %v886 = vsel %vm841, %v883, %v885
        %v891 = vunpack.c.l.b16 %v354
        %v892 = vunpack.c.l.b16 %v355
        %v893 = vunpack.c.l.b16 %v356
        %v894 = vunpack.c.l.b16 %v357
        %v895 = vpack.c.b16 %v411, %v891
        %v896 = vpack.c.b16 %v892, %v717
        %v897 = vpack.c.b16 %v894, %v893
        %v898 = vrot.slane %v895, 2
        %v899 = vsel %vm841, %v898, %v845
        %v900 = vrot.slane %v896, 2
        %v901 = vsel %vm841, %v883, %v900
        %v902 = vrot.slane %v897, 2
        %v903 = vsel %vm841, %v900, %v902
        %v905 = vunpack.c.l.b16 %v358
        %v906 = vpack.c.b16 %v411, %v905
        %vm907 = vsmask.f32 5376
        %v909 = vshrl.u32 %v906, 16
        %v911 = vrot.slane %v909, 2
        %v912 = vshll.u32 %v906, 16
        %v914 = vrot.slane %v912, 3
        %v915 = vor.u32 %v911, %v914
        %v916 = vrot.slane %v507, 2
        %v917 = vrot.slane %v503, 3
        %v918 = vor.u32 %v916, %v917
        %v919 = vsel %vm907, %v915, %v918
        %v920 = vrot.slane %v515, 2
        %v921 = vrot.slane %v511, 3
        %v922 = vor.u32 %v920, %v921
        %v923 = vsel %vm907, %v918, %v922
        %v924 = vrot.slane %v523, 2
        %v925 = vrot.slane %v519, 3
        %v926 = vor.u32 %v924, %v925
        %v927 = vsel %vm907, %v922, %v926
        %v928 = vrot.slane %v531, 2
        %v929 = vrot.slane %v527, 3
        %v930 = vor.u32 %v928, %v929
        %v931 = vsel %vm907, %v926, %v930
        %v932 = vrot.slane %v539, 2
        %v933 = vrot.slane %v535, 3
        %v934 = vor.u32 %v932, %v933
        %v935 = vsel %vm907, %v930, %v934
        %v936 = vrot.slane %v547, 2
        %v937 = vrot.slane %v543, 3
        %v938 = vor.u32 %v936, %v937
        %v939 = vsel %vm907, %v934, %v938
        %v940 = vrot.slane %v555, 2
        %v941 = vrot.slane %v551, 3
        %v942 = vor.u32 %v940, %v941
        %v943 = vsel %vm907, %v938, %v942
        %v944 = vrot.slane %v563, 2
        %v945 = vrot.slane %v559, 3
        %v946 = vor.u32 %v944, %v945
        %v947 = vsel %vm907, %v942, %v946
        %v948 = vrot.slane %v571, 2
        %v949 = vrot.slane %v567, 3
        %v950 = vor.u32 %v948, %v949
        %v951 = vsel %vm907, %v946, %v950
        %v952 = vrot.slane %v579, 2
        %v953 = vrot.slane %v575, 3
        %v954 = vor.u32 %v952, %v953
        %v955 = vsel %vm907, %v950, %v954
        %v956 = vrot.slane %v587, 2
        %v957 = vrot.slane %v583, 3
        %v958 = vor.u32 %v956, %v957
        %v959 = vsel %vm907, %v954, %v958
        %v960 = vrot.slane %v595, 2
        %v961 = vrot.slane %v591, 3
        %v962 = vor.u32 %v960, %v961
        %v963 = vsel %vm907, %v958, %v962
        %v964 = vrot.slane %v603, 2
        %v965 = vrot.slane %v599, 3
        %v966 = vor.u32 %v964, %v965
        %v967 = vsel %vm907, %v962, %v966
        %v968 = vrot.slane %v611, 2
        %v969 = vrot.slane %v607, 3
        %v970 = vor.u32 %v968, %v969
        %v971 = vsel %vm907, %v966, %v970
        %v972 = vrot.slane %v619, 2
        %v973 = vrot.slane %v615, 3
        %v974 = vor.u32 %v972, %v973
        %v975 = vsel %vm907, %v970, %v974
        %v976 = vrot.slane %v627, 2
        %v977 = vrot.slane %v623, 3
        %v978 = vor.u32 %v976, %v977
        %v979 = vsel %vm907, %v974, %v978
        %v980 = vrot.slane %v635, 2
        %v981 = vrot.slane %v631, 3
        %v982 = vor.u32 %v980, %v981
        %v983 = vsel %vm907, %v978, %v982
        %v984 = vrot.slane %v643, 2
        %v985 = vrot.slane %v639, 3
        %v986 = vor.u32 %v984, %v985
        %v987 = vsel %vm907, %v982, %v986
        %v988 = vrot.slane %v651, 2
        %v989 = vrot.slane %v647, 3
        %v990 = vor.u32 %v988, %v989
        %v991 = vsel %vm907, %v986, %v990
        %v992 = vrot.slane %v821, 2
        %v993 = vrot.slane %v824, 3
        %v994 = vor.u32 %v992, %v993
        %v995 = vsel %vm907, %v990, %v994
        %v997 = vshrl.u32 %v896, 16
        %v999 = vrot.slane %v997, 2
        %v1000 = vshll.u32 %v896, 16
        %v1002 = vrot.slane %v1000, 3
        %v1003 = vor.u32 %v999, %v1002
        %v1004 = vsel %vm907, %v994, %v1003
        %v1006 = vshrl.u32 %v897, 16
        %v1008 = vrot.slane %v1006, 2
        %v1009 = vshll.u32 %v897, 16
        %v1011 = vrot.slane %v1009, 3
        %v1012 = vor.u32 %v1008, %v1011
        %v1013 = vsel %vm907, %v1003, %v1012
        %v1015 = vunpack.c.l.b16 %v359
        %v1016 = vpack.c.b16 %v1015, %v893
        %vm1017 = vcmask 1044480
        %v1018 = vrot.slane %v906, 3
        %v1019 = vrot.slane %v455, 3
        %v1020 = vsel %vm1017, %v1018, %v1019
        %v1021 = vrot.slane %v456, 3
        %v1022 = vsel %vm1017, %v1019, %v1021
        %v1023 = vrot.slane %v457, 3
        %v1024 = vsel %vm1017, %v1021, %v1023
        %v1025 = vrot.slane %v458, 3
        %v1026 = vsel %vm1017, %v1023, %v1025
        %v1027 = vrot.slane %v459, 3
        %v1028 = vsel %vm1017, %v1025, %v1027
        %v1029 = vrot.slane %v460, 3
        %v1030 = vsel %vm1017, %v1027, %v1029
        %v1031 = vrot.slane %v461, 3
        %v1032 = vsel %vm1017, %v1029, %v1031
        %v1033 = vrot.slane %v462, 3
        %v1034 = vsel %vm1017, %v1031, %v1033
        %v1035 = vrot.slane %v463, 3
        %v1036 = vsel %vm1017, %v1033, %v1035
        %v1037 = vrot.slane %v464, 3
        %v1038 = vsel %vm1017, %v1035, %v1037
        %v1039 = vrot.slane %v465, 3
        %v1040 = vsel %vm1017, %v1037, %v1039
        %v1041 = vrot.slane %v466, 3
        %v1042 = vsel %vm1017, %v1039, %v1041
        %v1043 = vrot.slane %v467, 3
        %v1044 = vsel %vm1017, %v1041, %v1043
        %v1045 = vrot.slane %v468, 3
        %v1046 = vsel %vm1017, %v1043, %v1045
        %v1047 = vrot.slane %v469, 3
        %v1048 = vsel %vm1017, %v1045, %v1047
        %v1049 = vrot.slane %v470, 3
        %v1050 = vsel %vm1017, %v1047, %v1049
        %v1051 = vrot.slane %v471, 3
        %v1052 = vsel %vm1017, %v1049, %v1051
        %v1053 = vrot.slane %v472, 3
        %v1054 = vsel %vm1017, %v1051, %v1053
        %v1055 = vrot.slane %v473, 3
        %v1056 = vsel %vm1017, %v1053, %v1055
        %v1057 = vrot.slane %v720, 3
        %v1058 = vsel %vm1017, %v1055, %v1057
        %v1059 = vrot.slane %v896, 3
        %v1060 = vsel %vm1017, %v1057, %v1059
        %v1061 = vrot.slane %v1016, 3
        %v1062 = vsel %vm1017, %v1059, %v1061
        %v1063 = vld [vmem:[#allocation6] sm:$0xf]
        %v1064 = vld [vmem:[#allocation6 + $0x4] sm:$0xf]
        %v1065 = vld [vmem:[#allocation6 + $0x8] sm:$0xf]
        %v1066 = vld [vmem:[#allocation6 + $0xc] sm:$0xf]
        %v1067 = vld [vmem:[#allocation6 + $0x10] sm:$0xf]
        %v1068 = vld [vmem:[#allocation6 + $0x14] sm:$0xf]
        %v1069 = vld [vmem:[#allocation6 + $0x18] sm:$0xf]
        %v1070 = vld [vmem:[#allocation6 + $0x1c] sm:$0xf]
        %v1071 = vld [vmem:[#allocation6 + $0x20] sm:$0xf]
        %v1072 = vld [vmem:[#allocation6 + $0x24] sm:$0xf]
        %v1073 = vld [vmem:[#allocation6 + $0x28] sm:$0xf]
        %v1074 = vld [vmem:[#allocation6 + $0x2c] sm:$0xf]
        %v1075 = vld [vmem:[#allocation6 + $0x30] sm:$0xf]
        %v1076 = vld [vmem:[#allocation6 + $0x34] sm:$0xf]
        %v1077 = vld [vmem:[#allocation6 + $0x38] sm:$0xf]
        %v1078 = vld [vmem:[#allocation6 + $0x3c] sm:$0xf]
        %v1079 = vld [vmem:[#allocation6 + $0x40] sm:$0xf]
        %v1080 = vld [vmem:[#allocation6 + $0x44] sm:$0xf]
        %v1081 = vld [vmem:[#allocation6 + $0x48] sm:$0xf]
        %v1082 = vld [vmem:[#allocation6 + $0x4c] sm:$0xf]
        %v1083 = vld [vmem:[#allocation6 + $0x50] sm:$0xf]
        %v1084 = vld [vmem:[#allocation6 + $0x54] sm:$0xf]
        %v1085 = vld [vmem:[#allocation6 + $0x58] sm:$0xf]
        %v1086 = vld [vmem:[#allocation6 + $0x5c] sm:$0xf]
        %v1087 = vld [vmem:[#allocation6 + $0x60] sm:$0xf]
        %v1088 = vld [vmem:[#allocation6 + $0x64] sm:$0xf]
        %v1089 = vld [vmem:[#allocation6 + $0x68] sm:$0xf]
        %v1090 = vld [vmem:[#allocation6 + $0x6c] sm:$0xf]
        %v1091 = vld [vmem:[#allocation6 + $0x70] sm:$0xf]
        %v1092 = vld [vmem:[#allocation6 + $0x74] sm:$0xf]
        %v1093 = vld [vmem:[#allocation6 + $0x78] sm:$0xf]
        %v1094 = vld [vmem:[#allocation6 + $0x7c] sm:$0xf]
        %v1095 = vld [vmem:[#allocation6 + $0x80] sm:$0xf]
        %v1096 = vld [vmem:[#allocation6 + $0x84] sm:$0xf]
        %v1097 = vld [vmem:[#allocation6 + $0x88] sm:$0xf]
        %v1098 = vld [vmem:[#allocation6 + $0x8c] sm:$0xf]
        %v1099 = vld [vmem:[#allocation6 + $0x90] sm:$0xf]
        %v1100 = vld [vmem:[#allocation6 + $0x94] sm:$0xf]
        %v1101 = vld [vmem:[#allocation6 + $0x98] sm:$0xf]
        %v1102 = vld [vmem:[#allocation6 + $0x9c] sm:$0xf]
        %v1103 = vld [vmem:[#allocation6 + $0xa0] sm:$0xf]
        %v1104 = vld [vmem:[#allocation6 + $0xa4] sm:$0xf]
        %v1105 = vld [vmem:[#allocation6 + $0xa8] sm:$0xf]
        %v1106 = vld [vmem:[#allocation6 + $0xac] sm:$0xf]
        %v1107 = vld [vmem:[#allocation6 + $0xb0] sm:$0xf]
        %v1108 = vld [vmem:[#allocation6 + $0xb4] sm:$0xf]
        %v1109 = vld [vmem:[#allocation6 + $0xb8] sm:$0xf]
        %v1110 = vld [vmem:[#allocation6 + $0xbc] sm:$0xf]
        %v1111 = vld [vmem:[#allocation6 + $0xc0] sm:$0xf]
        %v1112 = vld [vmem:[#allocation6 + $0xc4] sm:$0xf]
        %v1113 = vld [vmem:[#allocation6 + $0xc8] sm:$0xf]
        %v1114 = vld [vmem:[#allocation6 + $0xcc] sm:$0xf]
        %v1115 = vld [vmem:[#allocation6 + $0xd0] sm:$0xf]
        %v1116 = vld [vmem:[#allocation6 + $0xd4] sm:$0xf]
        %v1117 = vld [vmem:[#allocation6 + $0xd8] sm:$0xf]
        %v1118 = vld [vmem:[#allocation6 + $0xdc] sm:$0xf]
        %v1119 = vld [vmem:[#allocation6 + $0xe0] sm:$0xf]
        %v1120 = vld [vmem:[#allocation6 + $0xe4] sm:$0xf]
        %v1121 = vld [vmem:[#allocation6 + $0xe8] sm:$0xf]
        %v1122 = vld [vmem:[#allocation6 + $0xec] sm:$0xf]
        %v1123 = vld [vmem:[#allocation6 + $0xf0] sm:$0xf]
        %v1124 = vld [vmem:[#allocation6 + $0xf4] sm:$0xf]
        %v1125 = vld [vmem:[#allocation6 + $0xf8] sm:$0xf]
        %v1126 = vld [vmem:[#allocation6 + $0xfc] sm:$0xf]
        %v1127 = vld [vmem:[#allocation6 + $0x100] sm:$0xf]
        %v1128 = vld [vmem:[#allocation6 + $0x104] sm:$0xf]
        %v1129 = vld [vmem:[#allocation6 + $0x108] sm:$0xf]
        %v1130 = vld [vmem:[#allocation6 + $0x10c] sm:$0xf]
        %v1131 = vld [vmem:[#allocation6 + $0x110] sm:$0xf]
        %v1132 = vld [vmem:[#allocation6 + $0x114] sm:$0xf]
        %v1133 = vld [vmem:[#allocation6 + $0x118] sm:$0xf]
        %v1134 = vld [vmem:[#allocation6 + $0x11c] sm:$0xf]
        %v1135 = vld [vmem:[#allocation6 + $0x120] sm:$0xf]
        %v1136 = vld [vmem:[#allocation6 + $0x124] sm:$0xf]
        %v1137 = vld [vmem:[#allocation6 + $0x128] sm:$0xf]
        %v1138 = vld [vmem:[#allocation6 + $0x12c] sm:$0xf]
        %v1139 = vld [vmem:[#allocation6 + $0x130] sm:$0xf]
        %v1140 = vld [vmem:[#allocation6 + $0x134] sm:$0xf]
        %v1141 = vld [vmem:[#allocation6 + $0x138] sm:$0xf]
        %v1142 = vld [vmem:[#allocation6 + $0x13c] sm:$0xf]
        %v1143 = vld [vmem:[#allocation6 + $0x140] sm:$0xf]
        %v1144 = vld [vmem:[#allocation6 + $0x144] sm:$0xf]
        %v1145 = vld [vmem:[#allocation6 + $0x148] sm:$0xf]
        %v1146 = vld [vmem:[#allocation6 + $0x14c] sm:$0xf]
        %v1147 = vld [vmem:[#allocation6 + $0x150] sm:$0xf]
        %v1148 = vld [vmem:[#allocation6 + $0x154] sm:$0xf]
        %v1149 = vld [vmem:[#allocation6 + $0x158] sm:$0xf]
        %v1150 = vld [vmem:[#allocation6 + $0x15c] sm:$0xf]
        %v1151 = vld [vmem:[#allocation6 + $0x160] sm:$0xf]
        %v1152 = vld [vmem:[#allocation6 + $0x164] sm:$0xf]
        %v1153 = vld [vmem:[#allocation6 + $0x168] sm:$0xf]
        %v1154 = vld [vmem:[#allocation6 + $0x16c] sm:$0xf]
        %v1155 = vld [vmem:[#allocation6 + $0x170] sm:$0xf]
        %v1156 = vld [vmem:[#allocation6 + $0x174] sm:$0xf]
        %v1157 = vld [vmem:[#allocation6 + $0x178] sm:$0xf]
        %v1158 = vld [vmem:[#allocation6 + $0x17c] sm:$0xf]
        %v1159 = vld [vmem:[#allocation6 + $0x180] sm:$0xf]
        %v1160 = vld [vmem:[#allocation6 + $0x184] sm:$0xf]
        %v1161 = vld [vmem:[#allocation6 + $0x188] sm:$0xf]
        %v1162 = vld [vmem:[#allocation6 + $0x18c] sm:$0xf]
        %v1163 = vld [vmem:[#allocation6 + $0x190] sm:$0xf]
        %v1164 = vld [vmem:[#allocation6 + $0x194] sm:$0xf]
        %v1165 = vld [vmem:[#allocation6 + $0x198] sm:$0xf]
        %v1166 = vld [vmem:[#allocation6 + $0x19c] sm:$0xf]
        %v1167 = vld [vmem:[#allocation6 + $0x1a0] sm:$0xf]
        %v1168 = vld [vmem:[#allocation6 + $0x1a4] sm:$0xf]
        %v1169 = vld [vmem:[#allocation6 + $0x1a8] sm:$0xf]
        %v1170 = vld [vmem:[#allocation6 + $0x1ac] sm:$0xf]
        %v1171 = vld [vmem:[#allocation6 + $0x1b0] sm:$0xf]
        %v1172 = vld [vmem:[#allocation6 + $0x1b4] sm:$0xf]
        %v1173 = vld [vmem:[#allocation6 + $0x1b8] sm:$0xf]
        %v1174 = vld [vmem:[#allocation6 + $0x1bc] sm:$0xf]
        %v1175 = vld [vmem:[#allocation6 + $0x1c0] sm:$0xf]
        %v1176 = vld [vmem:[#allocation6 + $0x1c4] sm:$0xf]
        %v1177 = vld [vmem:[#allocation6 + $0x1c8] sm:$0xf]
        %v1178 = vld [vmem:[#allocation6 + $0x1cc] sm:$0xf]
        %v1179 = vld [vmem:[#allocation6 + $0x1d0] sm:$0xf]
        %v1180 = vld [vmem:[#allocation6 + $0x1d4] sm:$0xf]
        %v1181 = vld [vmem:[#allocation6 + $0x1d8] sm:$0xf]
        %v1182 = vld [vmem:[#allocation6 + $0x1dc] sm:$0xf]
        %v1183 = vld [vmem:[#allocation6 + $0x1e0] sm:$0xf]
        %v1184 = vld [vmem:[#allocation6 + $0x1e4] sm:$0xf]
        %v1185 = vld [vmem:[#allocation6 + $0x1e8] sm:$0xf]
        %v1186 = vld [vmem:[#allocation6 + $0x1ec] sm:$0xf]
        %v1187 = vld [vmem:[#allocation6 + $0x1f0] sm:$0xf]
        %v1188 = vld [vmem:[#allocation6 + $0x1f4] sm:$0xf]
        %v1189 = vld [vmem:[#allocation6 + $0x1f8] sm:$0xf]
        %v1190 = vld [vmem:[#allocation6 + $0x1fc] sm:$0xf]
        %v1191 = vld [vmem:[#allocation6 + $0x200] sm:$0xf]
        %v1192 = vld [vmem:[#allocation6 + $0x204] sm:$0xf]
        %v1193 = vld [vmem:[#allocation6 + $0x208] sm:$0xf]
        %v1194 = vld [vmem:[#allocation6 + $0x20c] sm:$0xf]
        %v1195 = vld [vmem:[#allocation6 + $0x210] sm:$0xf]
        %v1196 = vld [vmem:[#allocation6 + $0x214] sm:$0xf]
        %v1197 = vld [vmem:[#allocation6 + $0x218] sm:$0xf]
        %v1198 = vld [vmem:[#allocation6 + $0x21c] sm:$0xf]
        %v1199 = vld [vmem:[#allocation6 + $0x220] sm:$0xf]
        %v1200 = vld [vmem:[#allocation6 + $0x224] sm:$0xf]
        %v1201 = vld [vmem:[#allocation6 + $0x228] sm:$0xf]
        %v1202 = vld [vmem:[#allocation6 + $0x22c] sm:$0xf]
        %v1203 = vld [vmem:[#allocation6 + $0x230] sm:$0xf]
        %v1204 = vld [vmem:[#allocation6 + $0x234] sm:$0xf]
        %v1205 = vld [vmem:[#allocation6 + $0x238] sm:$0xf]
        %v1206 = vld [vmem:[#allocation6 + $0x23c] sm:$0xf]
        %v1207 = vld [vmem:[%s3] sm:$0x1]
        %v1209 = vlaneseq
        %v1210 = vshrl.u32 %v1209, 7
        %v1211 = vsub.s32 0, %v1210
        %v1212 = vrot.slane %v1207, %v1211
        %v1215 = vshrl.u32 %v452, 16
        %v1217 = vshll.u32 %v452, 16
        %v1219 = vrot.slane %v1217, 1
        %v1220 = vor.u32 %v1215, %v1219
        %v1221 = vsel %vm478, %v1220, %v489
        %v1223 = vshrl.u32 %v490, 16
        %v1225 = vshll.u32 %v490, 16
        %v1227 = vrot.slane %v1225, 1
        %v1228 = vor.u32 %v1223, %v1227
        %v1230 = vshll.u32 %v498, 16
        %v1232 = vrot.slane %v1230, 1
        %v1233 = vsel %vm478, %v1228, %v1232
        %v1235 = vshrl.u32 %v668, 16
        %v1237 = vshll.u32 %v668, 16
        %v1239 = vrot.slane %v1237, 1
        %v1240 = vor.u32 %v1235, %v1239
        %v1242 = vshll.u32 %v670, 16
        %v1244 = vrot.slane %v1242, 1
        %v1245 = vsel %vm478, %v1240, %v1244
        %v1247 = vshrl.u32 %v723, 16
        %v1249 = vshll.u32 %v723, 16
        %v1251 = vrot.slane %v1249, 1
        %v1252 = vor.u32 %v1247, %v1251
        %v1254 = vshll.u32 %v672, 16
        %v1256 = vrot.slane %v1254, 1
        %v1257 = vsel %vm478, %v1252, %v1256
        %v1259 = vshrl.u32 %v743, 16
        %v1261 = vshll.u32 %v743, 16
        %v1263 = vrot.slane %v1261, 1
        %v1264 = vor.u32 %v1259, %v1263
        %v1266 = vshll.u32 %v747, 16
        %v1268 = vrot.slane %v1266, 1
        %v1269 = vsel %vm478, %v1264, %v1268
        %v1271 = vshrl.u32 %v844, 16
        %v1273 = vshll.u32 %v844, 16
        %v1275 = vrot.slane %v1273, 1
        %v1276 = vor.u32 %v1271, %v1275
        %v1278 = vshll.u32 %v846, 16
        %v1280 = vrot.slane %v1278, 1
        %v1281 = vsel %vm478, %v1276, %v1280
        %v1283 = vshrl.u32 %v899, 16
        %v1285 = vshll.u32 %v899, 16
        %v1287 = vrot.slane %v1285, 1
        %v1288 = vor.u32 %v1283, %v1287
        %v1290 = vshll.u32 %v848, 16
        %v1292 = vrot.slane %v1290, 1
        %v1293 = vsel %vm478, %v1288, %v1292
        %v1295 = vshrl.u32 %v919, 16
        %v1297 = vshll.u32 %v919, 16
        %v1299 = vrot.slane %v1297, 1
        %v1300 = vor.u32 %v1295, %v1299
        %v1302 = vshll.u32 %v923, 16
        %v1304 = vrot.slane %v1302, 1
        %v1305 = vsel %vm478, %v1300, %v1304
        %v1307 = vshrl.u32 %v1020, 16
        %v1309 = vshll.u32 %v1020, 16
        %v1311 = vrot.slane %v1309, 1
        %v1312 = vor.u32 %v1307, %v1311
        %v1314 = vshll.u32 %v1022, 16
        %v1316 = vrot.slane %v1314, 1
        %v1317 = vsel %vm478, %v1312, %v1316
        %v1318 = vshrl.u32 %v498, 16
        %v1320 = vor.u32 %v1318, %v1232
        %v1322 = vshll.u32 %v506, 16
        %v1324 = vrot.slane %v1322, 1
        %v1325 = vsel %vm478, %v1320, %v1324
        %v1326 = vshrl.u32 %v670, 16
        %v1328 = vor.u32 %v1326, %v1244
        %v1329 = vsel %vm478, %v1328, %v1256
        %v1330 = vshrl.u32 %v672, 16
        %v1332 = vor.u32 %v1330, %v1256
        %v1334 = vshll.u32 %v674, 16
        %v1336 = vrot.slane %v1334, 1
        %v1337 = vsel %vm478, %v1332, %v1336
        %v1338 = vshrl.u32 %v747, 16
        %v1340 = vor.u32 %v1338, %v1268
        %v1342 = vshll.u32 %v751, 16
        %v1344 = vrot.slane %v1342, 1
        %v1345 = vsel %vm478, %v1340, %v1344
        %v1346 = vshrl.u32 %v846, 16
        %v1348 = vor.u32 %v1346, %v1280
        %v1349 = vsel %vm478, %v1348, %v1292
        %v1350 = vshrl.u32 %v848, 16
        %v1352 = vor.u32 %v1350, %v1292
        %v1354 = vshll.u32 %v850, 16
        %v1356 = vrot.slane %v1354, 1
        %v1357 = vsel %vm478, %v1352, %v1356
        %v1358 = vshrl.u32 %v923, 16
        %v1360 = vor.u32 %v1358, %v1304
        %v1362 = vshll.u32 %v927, 16
        %v1364 = vrot.slane %v1362, 1
        %v1365 = vsel %vm478, %v1360, %v1364
        %v1366 = vshrl.u32 %v1022, 16
        %v1368 = vor.u32 %v1366, %v1316
        %v1370 = vshll.u32 %v1024, 16
        %v1372 = vrot.slane %v1370, 1
        %v1373 = vsel %vm478, %v1368, %v1372
        %v1374 = vshrl.u32 %v506, 16
        %v1376 = vor.u32 %v1374, %v1324
        %v1378 = vshll.u32 %v514, 16
        %v1380 = vrot.slane %v1378, 1
        %v1381 = vsel %vm478, %v1376, %v1380
        %v1382 = vshrl.u32 %v674, 16
        %v1384 = vor.u32 %v1382, %v1336
        %v1386 = vshll.u32 %v676, 16
        %v1388 = vrot.slane %v1386, 1
        %v1389 = vsel %vm478, %v1384, %v1388
        %v1390 = vshrl.u32 %v751, 16
        %v1392 = vor.u32 %v1390, %v1344
        %v1394 = vshll.u32 %v755, 16
        %v1396 = vrot.slane %v1394, 1
        %v1397 = vsel %vm478, %v1392, %v1396
        %v1398 = vshrl.u32 %v850, 16
        %v1400 = vor.u32 %v1398, %v1356
        %v1402 = vshll.u32 %v852, 16
        %v1404 = vrot.slane %v1402, 1
        %v1405 = vsel %vm478, %v1400, %v1404
        %v1406 = vshrl.u32 %v927, 16
        %v1408 = vor.u32 %v1406, %v1364
        %v1410 = vshll.u32 %v931, 16
        %v1412 = vrot.slane %v1410, 1
        %v1413 = vsel %vm478, %v1408, %v1412
        %v1414 = vshrl.u32 %v1024, 16
        %v1416 = vor.u32 %v1414, %v1372
        %v1418 = vshll.u32 %v1026, 16
        %v1420 = vrot.slane %v1418, 1
        %v1421 = vsel %vm478, %v1416, %v1420
        %v1422 = vshrl.u32 %v514, 16
        %v1424 = vor.u32 %v1422, %v1380
        %v1426 = vshll.u32 %v522, 16
        %v1428 = vrot.slane %v1426, 1
        %v1429 = vsel %vm478, %v1424, %v1428
        %v1430 = vshrl.u32 %v676, 16
        %v1432 = vor.u32 %v1430, %v1388
        %v1434 = vshll.u32 %v678, 16
        %v1436 = vrot.slane %v1434, 1
        %v1437 = vsel %vm478, %v1432, %v1436
        %v1438 = vshrl.u32 %v755, 16
        %v1440 = vor.u32 %v1438, %v1396
        %v1442 = vshll.u32 %v759, 16
        %v1444 = vrot.slane %v1442, 1
        %v1445 = vsel %vm478, %v1440, %v1444
        %v1446 = vshrl.u32 %v852, 16
        %v1448 = vor.u32 %v1446, %v1404
        %v1450 = vshll.u32 %v854, 16
        %v1452 = vrot.slane %v1450, 1
        %v1453 = vsel %vm478, %v1448, %v1452
        %v1454 = vshrl.u32 %v931, 16
        %v1456 = vor.u32 %v1454, %v1412
        %v1458 = vshll.u32 %v935, 16
        %v1460 = vrot.slane %v1458, 1
        %v1461 = vsel %vm478, %v1456, %v1460
        %v1462 = vshrl.u32 %v1026, 16
        %v1464 = vor.u32 %v1462, %v1420
        %v1466 = vshll.u32 %v1028, 16
        %v1468 = vrot.slane %v1466, 1
        %v1469 = vsel %vm478, %v1464, %v1468
        %v1470 = vshrl.u32 %v522, 16
        %v1472 = vor.u32 %v1470, %v1428
        %v1474 = vshll.u32 %v530, 16
        %v1476 = vrot.slane %v1474, 1
        %v1477 = vsel %vm478, %v1472, %v1476
        %v1478 = vshrl.u32 %v678, 16
        %v1480 = vor.u32 %v1478, %v1436
        %v1482 = vshll.u32 %v680, 16
        %v1484 = vrot.slane %v1482, 1
        %v1485 = vsel %vm478, %v1480, %v1484
        %v1486 = vshrl.u32 %v759, 16
        %v1488 = vor.u32 %v1486, %v1444
        %v1490 = vshll.u32 %v763, 16
        %v1492 = vrot.slane %v1490, 1
        %v1493 = vsel %vm478, %v1488, %v1492
        %v1494 = vshrl.u32 %v854, 16
        %v1496 = vor.u32 %v1494, %v1452
        %v1498 = vshll.u32 %v856, 16
        %v1500 = vrot.slane %v1498, 1
        %v1501 = vsel %vm478, %v1496, %v1500
        %v1502 = vshrl.u32 %v935, 16
        %v1504 = vor.u32 %v1502, %v1460
        %v1506 = vshll.u32 %v939, 16
        %v1508 = vrot.slane %v1506, 1
        %v1509 = vsel %vm478, %v1504, %v1508
        %v1510 = vshrl.u32 %v1028, 16
        %v1512 = vor.u32 %v1510, %v1468
        %v1514 = vshll.u32 %v1030, 16
        %v1516 = vrot.slane %v1514, 1
        %v1517 = vsel %vm478, %v1512, %v1516
        %v1518 = vshrl.u32 %v530, 16
        %v1520 = vor.u32 %v1518, %v1476
        %v1522 = vshll.u32 %v538, 16
        %v1524 = vrot.slane %v1522, 1
        %v1525 = vsel %vm478, %v1520, %v1524
        %v1526 = vshrl.u32 %v680, 16
        %v1528 = vor.u32 %v1526, %v1484
        %v1530 = vshll.u32 %v682, 16
        %v1532 = vrot.slane %v1530, 1
        %v1533 = vsel %vm478, %v1528, %v1532
        %v1534 = vshrl.u32 %v763, 16
        %v1536 = vor.u32 %v1534, %v1492
        %v1538 = vshll.u32 %v767, 16
        %v1540 = vrot.slane %v1538, 1
        %v1541 = vsel %vm478, %v1536, %v1540
        %v1542 = vshrl.u32 %v856, 16
        %v1544 = vor.u32 %v1542, %v1500
        %v1546 = vshll.u32 %v858, 16
        %v1548 = vrot.slane %v1546, 1
        %v1549 = vsel %vm478, %v1544, %v1548
        %v1550 = vshrl.u32 %v939, 16
        %v1552 = vor.u32 %v1550, %v1508
        %v1554 = vshll.u32 %v943, 16
        %v1556 = vrot.slane %v1554, 1
        %v1557 = vsel %vm478, %v1552, %v1556
        %v1558 = vshrl.u32 %v1030, 16
        %v1560 = vor.u32 %v1558, %v1516
        %v1562 = vshll.u32 %v1032, 16
        %v1564 = vrot.slane %v1562, 1
        %v1565 = vsel %vm478, %v1560, %v1564
        %v1566 = vshrl.u32 %v538, 16
        %v1568 = vor.u32 %v1566, %v1524
        %v1570 = vshll.u32 %v546, 16
        %v1572 = vrot.slane %v1570, 1
        %v1573 = vsel %vm478, %v1568, %v1572
        %v1574 = vshrl.u32 %v682, 16
        %v1576 = vor.u32 %v1574, %v1532
        %v1578 = vshll.u32 %v684, 16
        %v1580 = vrot.slane %v1578, 1
        %v1581 = vsel %vm478, %v1576, %v1580
        %v1582 = vshrl.u32 %v767, 16
        %v1584 = vor.u32 %v1582, %v1540
        %v1586 = vshll.u32 %v771, 16
        %v1588 = vrot.slane %v1586, 1
        %v1589 = vsel %vm478, %v1584, %v1588
        %v1590 = vshrl.u32 %v858, 16
        %v1592 = vor.u32 %v1590, %v1548
        %v1594 = vshll.u32 %v860, 16
        %v1596 = vrot.slane %v1594, 1
        %v1597 = vsel %vm478, %v1592, %v1596
        %v1598 = vshrl.u32 %v943, 16
        %v1600 = vor.u32 %v1598, %v1556
        %v1602 = vshll.u32 %v947, 16
        %v1604 = vrot.slane %v1602, 1
        %v1605 = vsel %vm478, %v1600, %v1604
        %v1606 = vshrl.u32 %v1032, 16
        %v1608 = vor.u32 %v1606, %v1564
        %v1610 = vshll.u32 %v1034, 16
        %v1612 = vrot.slane %v1610, 1
        %v1613 = vsel %vm478, %v1608, %v1612
        %v1614 = vshrl.u32 %v546, 16
        %v1616 = vor.u32 %v1614, %v1572
        %v1618 = vshll.u32 %v554, 16
        %v1620 = vrot.slane %v1618, 1
        %v1621 = vsel %vm478, %v1616, %v1620
        %v1622 = vshrl.u32 %v684, 16
        %v1624 = vor.u32 %v1622, %v1580
        %v1626 = vshll.u32 %v686, 16
        %v1628 = vrot.slane %v1626, 1
        %v1629 = vsel %vm478, %v1624, %v1628
        %v1630 = vshrl.u32 %v771, 16
        %v1632 = vor.u32 %v1630, %v1588
        %v1634 = vshll.u32 %v775, 16
        %v1636 = vrot.slane %v1634, 1
        %v1637 = vsel %vm478, %v1632, %v1636
        %v1638 = vshrl.u32 %v860, 16
        %v1640 = vor.u32 %v1638, %v1596
        %v1642 = vshll.u32 %v862, 16
        %v1644 = vrot.slane %v1642, 1
        %v1645 = vsel %vm478, %v1640, %v1644
        %v1646 = vshrl.u32 %v947, 16
        %v1648 = vor.u32 %v1646, %v1604
        %v1650 = vshll.u32 %v951, 16
        %v1652 = vrot.slane %v1650, 1
        %v1653 = vsel %vm478, %v1648, %v1652
        %v1654 = vshrl.u32 %v1034, 16
        %v1656 = vor.u32 %v1654, %v1612
        %v1658 = vshll.u32 %v1036, 16
        %v1660 = vrot.slane %v1658, 1
        %v1661 = vsel %vm478, %v1656, %v1660
        %v1662 = vshrl.u32 %v554, 16
        %v1664 = vor.u32 %v1662, %v1620
        %v1666 = vshll.u32 %v562, 16
        %v1668 = vrot.slane %v1666, 1
        %v1669 = vsel %vm478, %v1664, %v1668
        %v1670 = vshrl.u32 %v686, 16
        %v1672 = vor.u32 %v1670, %v1628
        %v1674 = vshll.u32 %v688, 16
        %v1676 = vrot.slane %v1674, 1
        %v1677 = vsel %vm478, %v1672, %v1676
        %v1678 = vshrl.u32 %v775, 16
        %v1680 = vor.u32 %v1678, %v1636
        %v1682 = vshll.u32 %v779, 16
        %v1684 = vrot.slane %v1682, 1
        %v1685 = vsel %vm478, %v1680, %v1684
        %v1686 = vshrl.u32 %v862, 16
        %v1688 = vor.u32 %v1686, %v1644
        %v1690 = vshll.u32 %v864, 16
        %v1692 = vrot.slane %v1690, 1
        %v1693 = vsel %vm478, %v1688, %v1692
        %v1694 = vshrl.u32 %v951, 16
        %v1696 = vor.u32 %v1694, %v1652
        %v1698 = vshll.u32 %v955, 16
        %v1700 = vrot.slane %v1698, 1
        %v1701 = vsel %vm478, %v1696, %v1700
        %v1702 = vshrl.u32 %v1036, 16
        %v1704 = vor.u32 %v1702, %v1660
        %v1706 = vshll.u32 %v1038, 16
        %v1708 = vrot.slane %v1706, 1
        %v1709 = vsel %vm478, %v1704, %v1708
        %v1710 = vshrl.u32 %v562, 16
        %v1712 = vor.u32 %v1710, %v1668
        %v1714 = vshll.u32 %v570, 16
        %v1716 = vrot.slane %v1714, 1
        %v1717 = vsel %vm478, %v1712, %v1716
        %v1718 = vshrl.u32 %v688, 16
        %v1720 = vor.u32 %v1718, %v1676
        %v1722 = vshll.u32 %v690, 16
        %v1724 = vrot.slane %v1722, 1
        %v1725 = vsel %vm478, %v1720, %v1724
        %v1726 = vshrl.u32 %v779, 16
        %v1728 = vor.u32 %v1726, %v1684
        %v1730 = vshll.u32 %v783, 16
        %v1732 = vrot.slane %v1730, 1
        %v1733 = vsel %vm478, %v1728, %v1732
        %v1734 = vshrl.u32 %v864, 16
        %v1736 = vor.u32 %v1734, %v1692
        %v1738 = vshll.u32 %v866, 16
        %v1740 = vrot.slane %v1738, 1
        %v1741 = vsel %vm478, %v1736, %v1740
        %v1742 = vshrl.u32 %v955, 16
        %v1744 = vor.u32 %v1742, %v1700
        %v1746 = vshll.u32 %v959, 16
        %v1748 = vrot.slane %v1746, 1
        %v1749 = vsel %vm478, %v1744, %v1748
        %v1750 = vshrl.u32 %v1038, 16
        %v1752 = vor.u32 %v1750, %v1708
        %v1754 = vshll.u32 %v1040, 16
        %v1756 = vrot.slane %v1754, 1
        %v1757 = vsel %vm478, %v1752, %v1756
        %v1758 = vshrl.u32 %v570, 16
        %v1760 = vor.u32 %v1758, %v1716
        %v1762 = vshll.u32 %v578, 16
        %v1764 = vrot.slane %v1762, 1
        %v1765 = vsel %vm478, %v1760, %v1764
        %v1766 = vshrl.u32 %v690, 16
        %v1768 = vor.u32 %v1766, %v1724
        %v1770 = vshll.u32 %v692, 16
        %v1772 = vrot.slane %v1770, 1
        %v1773 = vsel %vm478, %v1768, %v1772
        %v1774 = vshrl.u32 %v783, 16
        %v1776 = vor.u32 %v1774, %v1732
        %v1778 = vshll.u32 %v787, 16
        %v1780 = vrot.slane %v1778, 1
        %v1781 = vsel %vm478, %v1776, %v1780
        %v1782 = vshrl.u32 %v866, 16
        %v1784 = vor.u32 %v1782, %v1740
        %v1786 = vshll.u32 %v868, 16
        %v1788 = vrot.slane %v1786, 1
        %v1789 = vsel %vm478, %v1784, %v1788
        %v1790 = vshrl.u32 %v959, 16
        %v1792 = vor.u32 %v1790, %v1748
        %v1794 = vshll.u32 %v963, 16
        %v1796 = vrot.slane %v1794, 1
        %v1797 = vsel %vm478, %v1792, %v1796
        %v1798 = vshrl.u32 %v1040, 16
        %v1800 = vor.u32 %v1798, %v1756
        %v1802 = vshll.u32 %v1042, 16
        %v1804 = vrot.slane %v1802, 1
        %v1805 = vsel %vm478, %v1800, %v1804
        %v1806 = vshrl.u32 %v578, 16
        %v1808 = vor.u32 %v1806, %v1764
        %v1810 = vshll.u32 %v586, 16
        %v1812 = vrot.slane %v1810, 1
        %v1813 = vsel %vm478, %v1808, %v1812
        %v1814 = vshrl.u32 %v692, 16
        %v1816 = vor.u32 %v1814, %v1772
        %v1818 = vshll.u32 %v694, 16
        %v1820 = vrot.slane %v1818, 1
        %v1821 = vsel %vm478, %v1816, %v1820
        %v1822 = vshrl.u32 %v787, 16
        %v1824 = vor.u32 %v1822, %v1780
        %v1826 = vshll.u32 %v791, 16
        %v1828 = vrot.slane %v1826, 1
        %v1829 = vsel %vm478, %v1824, %v1828
        %v1830 = vshrl.u32 %v868, 16
        %v1832 = vor.u32 %v1830, %v1788
        %v1834 = vshll.u32 %v870, 16
        %v1836 = vrot.slane %v1834, 1
        %v1837 = vsel %vm478, %v1832, %v1836
        %v1838 = vshrl.u32 %v963, 16
        %v1840 = vor.u32 %v1838, %v1796
        %v1842 = vshll.u32 %v967, 16
        %v1844 = vrot.slane %v1842, 1
        %v1845 = vsel %vm478, %v1840, %v1844
        %v1846 = vshrl.u32 %v1042, 16
        %v1848 = vor.u32 %v1846, %v1804
        %v1850 = vshll.u32 %v1044, 16
        %v1852 = vrot.slane %v1850, 1
        %v1853 = vsel %vm478, %v1848, %v1852
        %v1854 = vshrl.u32 %v586, 16
        %v1856 = vor.u32 %v1854, %v1812
        %v1858 = vshll.u32 %v594, 16
        %v1860 = vrot.slane %v1858, 1
        %v1861 = vsel %vm478, %v1856, %v1860
        %v1862 = vshrl.u32 %v694, 16
        %v1864 = vor.u32 %v1862, %v1820
        %v1866 = vshll.u32 %v696, 16
        %v1868 = vrot.slane %v1866, 1
        %v1869 = vsel %vm478, %v1864, %v1868
        %v1870 = vshrl.u32 %v791, 16
        %v1872 = vor.u32 %v1870, %v1828
        %v1874 = vshll.u32 %v795, 16
        %v1876 = vrot.slane %v1874, 1
        %v1877 = vsel %vm478, %v1872, %v1876
        %v1878 = vshrl.u32 %v870, 16
        %v1880 = vor.u32 %v1878, %v1836
        %v1882 = vshll.u32 %v872, 16
        %v1884 = vrot.slane %v1882, 1
        %v1885 = vsel %vm478, %v1880, %v1884
        %v1886 = vshrl.u32 %v967, 16
        %v1888 = vor.u32 %v1886, %v1844
        %v1890 = vshll.u32 %v971, 16
        %v1892 = vrot.slane %v1890, 1
        %v1893 = vsel %vm478, %v1888, %v1892
        %v1894 = vshrl.u32 %v1044, 16
        %v1896 = vor.u32 %v1894, %v1852
        %v1898 = vshll.u32 %v1046, 16
        %v1900 = vrot.slane %v1898, 1
        %v1901 = vsel %vm478, %v1896, %v1900
        %v1902 = vshrl.u32 %v594, 16
        %v1904 = vor.u32 %v1902, %v1860
        %v1906 = vshll.u32 %v602, 16
        %v1908 = vrot.slane %v1906, 1
        %v1909 = vsel %vm478, %v1904, %v1908
        %v1910 = vshrl.u32 %v696, 16
        %v1912 = vor.u32 %v1910, %v1868
        %v1914 = vshll.u32 %v698, 16
        %v1916 = vrot.slane %v1914, 1
        %v1917 = vsel %vm478, %v1912, %v1916
        %v1918 = vshrl.u32 %v795, 16
        %v1920 = vor.u32 %v1918, %v1876
        %v1922 = vshll.u32 %v799, 16
        %v1924 = vrot.slane %v1922, 1
        %v1925 = vsel %vm478, %v1920, %v1924
        %v1926 = vshrl.u32 %v872, 16
        %v1928 = vor.u32 %v1926, %v1884
        %v1930 = vshll.u32 %v874, 16
        %v1932 = vrot.slane %v1930, 1
        %v1933 = vsel %vm478, %v1928, %v1932
        %v1934 = vshrl.u32 %v971, 16
        %v1936 = vor.u32 %v1934, %v1892
        %v1938 = vshll.u32 %v975, 16
        %v1940 = vrot.slane %v1938, 1
        %v1941 = vsel %vm478, %v1936, %v1940
        %v1942 = vshrl.u32 %v1046, 16
        %v1944 = vor.u32 %v1942, %v1900
        %v1946 = vshll.u32 %v1048, 16
        %v1948 = vrot.slane %v1946, 1
        %v1949 = vsel %vm478, %v1944, %v1948
        %v1950 = vshrl.u32 %v602, 16
        %v1952 = vor.u32 %v1950, %v1908
        %v1954 = vshll.u32 %v610, 16
        %v1956 = vrot.slane %v1954, 1
        %v1957 = vsel %vm478, %v1952, %v1956
        %v1958 = vshrl.u32 %v698, 16
        %v1960 = vor.u32 %v1958, %v1916
        %v1962 = vshll.u32 %v700, 16
        %v1964 = vrot.slane %v1962, 1
        %v1965 = vsel %vm478, %v1960, %v1964
        %v1966 = vshrl.u32 %v799, 16
        %v1968 = vor.u32 %v1966, %v1924
        %v1970 = vshll.u32 %v803, 16
        %v1972 = vrot.slane %v1970, 1
        %v1973 = vsel %vm478, %v1968, %v1972
        %v1974 = vshrl.u32 %v874, 16
        %v1976 = vor.u32 %v1974, %v1932
        %v1978 = vshll.u32 %v876, 16
        %v1980 = vrot.slane %v1978, 1
        %v1981 = vsel %vm478, %v1976, %v1980
        %v1982 = vshrl.u32 %v975, 16
        %v1984 = vor.u32 %v1982, %v1940
        %v1986 = vshll.u32 %v979, 16
        %v1988 = vrot.slane %v1986, 1
        %v1989 = vsel %vm478, %v1984, %v1988
        %v1990 = vshrl.u32 %v1048, 16
        %v1992 = vor.u32 %v1990, %v1948
        %v1994 = vshll.u32 %v1050, 16
        %v1996 = vrot.slane %v1994, 1
        %v1997 = vsel %vm478, %v1992, %v1996
        %v1998 = vshrl.u32 %v610, 16
        %v2000 = vor.u32 %v1998, %v1956
        %v2002 = vshll.u32 %v618, 16
        %v2004 = vrot.slane %v2002, 1
        %v2005 = vsel %vm478, %v2000, %v2004
        %v2006 = vshrl.u32 %v700, 16
        %v2008 = vor.u32 %v2006, %v1964
        %v2010 = vshll.u32 %v702, 16
        %v2012 = vrot.slane %v2010, 1
        %v2013 = vsel %vm478, %v2008, %v2012
        %v2014 = vshrl.u32 %v803, 16
        %v2016 = vor.u32 %v2014, %v1972
        %v2018 = vshll.u32 %v807, 16
        %v2020 = vrot.slane %v2018, 1
        %v2021 = vsel %vm478, %v2016, %v2020
        %v2022 = vshrl.u32 %v876, 16
        %v2024 = vor.u32 %v2022, %v1980
        %v2026 = vshll.u32 %v878, 16
        %v2028 = vrot.slane %v2026, 1
        %v2029 = vsel %vm478, %v2024, %v2028
        %v2030 = vshrl.u32 %v979, 16
        %v2032 = vor.u32 %v2030, %v1988
        %v2034 = vshll.u32 %v983, 16
        %v2036 = vrot.slane %v2034, 1
        %v2037 = vsel %vm478, %v2032, %v2036
        %v2038 = vshrl.u32 %v1050, 16
        %v2040 = vor.u32 %v2038, %v1996
        %v2042 = vshll.u32 %v1052, 16
        %v2044 = vrot.slane %v2042, 1
        %v2045 = vsel %vm478, %v2040, %v2044
        %v2046 = vshrl.u32 %v618, 16
        %v2048 = vor.u32 %v2046, %v2004
        %v2050 = vshll.u32 %v626, 16
        %v2052 = vrot.slane %v2050, 1
        %v2053 = vsel %vm478, %v2048, %v2052
        %v2054 = vshrl.u32 %v702, 16
        %v2056 = vor.u32 %v2054, %v2012
        %v2058 = vshll.u32 %v704, 16
        %v2060 = vrot.slane %v2058, 1
        %v2061 = vsel %vm478, %v2056, %v2060
        %v2062 = vshrl.u32 %v807, 16
        %v2064 = vor.u32 %v2062, %v2020
        %v2066 = vshll.u32 %v811, 16
        %v2068 = vrot.slane %v2066, 1
        %v2069 = vsel %vm478, %v2064, %v2068
        %v2070 = vshrl.u32 %v878, 16
        %v2072 = vor.u32 %v2070, %v2028
        %v2074 = vshll.u32 %v880, 16
        %v2076 = vrot.slane %v2074, 1
        %v2077 = vsel %vm478, %v2072, %v2076
        %v2078 = vshrl.u32 %v983, 16
        %v2080 = vor.u32 %v2078, %v2036
        %v2082 = vshll.u32 %v987, 16
        %v2084 = vrot.slane %v2082, 1
        %v2085 = vsel %vm478, %v2080, %v2084
        %v2086 = vshrl.u32 %v1052, 16
        %v2088 = vor.u32 %v2086, %v2044
        %v2090 = vshll.u32 %v1054, 16
        %v2092 = vrot.slane %v2090, 1
        %v2093 = vsel %vm478, %v2088, %v2092
        %v2094 = vshrl.u32 %v626, 16
        %v2096 = vor.u32 %v2094, %v2052
        %v2098 = vshll.u32 %v634, 16
        %v2100 = vrot.slane %v2098, 1
        %v2101 = vsel %vm478, %v2096, %v2100
        %v2102 = vshrl.u32 %v704, 16
        %v2104 = vor.u32 %v2102, %v2060
        %v2106 = vshll.u32 %v706, 16
        %v2108 = vrot.slane %v2106, 1
        %v2109 = vsel %vm478, %v2104, %v2108
        %v2110 = vshrl.u32 %v811, 16
        %v2112 = vor.u32 %v2110, %v2068
        %v2114 = vshll.u32 %v815, 16
        %v2116 = vrot.slane %v2114, 1
        %v2117 = vsel %vm478, %v2112, %v2116
        %v2118 = vshrl.u32 %v880, 16
        %v2120 = vor.u32 %v2118, %v2076
        %v2122 = vshll.u32 %v882, 16
        %v2124 = vrot.slane %v2122, 1
        %v2125 = vsel %vm478, %v2120, %v2124
        %v2126 = vshrl.u32 %v987, 16
        %v2128 = vor.u32 %v2126, %v2084
        %v2130 = vshll.u32 %v991, 16
        %v2132 = vrot.slane %v2130, 1
        %v2133 = vsel %vm478, %v2128, %v2132
        %v2134 = vshrl.u32 %v1054, 16
        %v2136 = vor.u32 %v2134, %v2092
        %v2138 = vshll.u32 %v1056, 16
        %v2140 = vrot.slane %v2138, 1
        %v2141 = vsel %vm478, %v2136, %v2140
        %v2142 = vshrl.u32 %v634, 16
        %v2144 = vor.u32 %v2142, %v2100
        %v2146 = vshll.u32 %v642, 16
        %v2148 = vrot.slane %v2146, 1
        %v2149 = vsel %vm478, %v2144, %v2148
        %v2150 = vshrl.u32 %v706, 16
        %v2152 = vor.u32 %v2150, %v2108
        %v2154 = vshll.u32 %v708, 16
        %v2156 = vrot.slane %v2154, 1
        %v2157 = vsel %vm478, %v2152, %v2156
        %v2158 = vshrl.u32 %v815, 16
        %v2160 = vor.u32 %v2158, %v2116
        %v2162 = vshll.u32 %v819, 16
        %v2164 = vrot.slane %v2162, 1
        %v2165 = vsel %vm478, %v2160, %v2164
        %v2166 = vshrl.u32 %v882, 16
        %v2168 = vor.u32 %v2166, %v2124
        %v2170 = vshll.u32 %v884, 16
        %v2172 = vrot.slane %v2170, 1
        %v2173 = vsel %vm478, %v2168, %v2172
        %v2174 = vshrl.u32 %v991, 16
        %v2176 = vor.u32 %v2174, %v2132
        %v2178 = vshll.u32 %v995, 16
        %v2180 = vrot.slane %v2178, 1
        %v2181 = vsel %vm478, %v2176, %v2180
        %v2182 = vshrl.u32 %v1056, 16
        %v2184 = vor.u32 %v2182, %v2140
        %v2186 = vshll.u32 %v1058, 16
        %v2188 = vrot.slane %v2186, 1
        %v2189 = vsel %vm478, %v2184, %v2188
        %v2190 = vshrl.u32 %v642, 16
        %v2192 = vor.u32 %v2190, %v2148
        %v2194 = vshll.u32 %v650, 16
        %v2196 = vrot.slane %v2194, 1
        %v2197 = vsel %vm478, %v2192, %v2196
        %v2198 = vshrl.u32 %v708, 16
        %v2200 = vor.u32 %v2198, %v2156
        %v2202 = vshll.u32 %v725, 16
        %v2204 = vrot.slane %v2202, 1
        %v2205 = vsel %vm478, %v2200, %v2204
        %v2206 = vshrl.u32 %v819, 16
        %v2208 = vor.u32 %v2206, %v2164
        %v2210 = vshll.u32 %v828, 16
        %v2212 = vrot.slane %v2210, 1
        %v2213 = vsel %vm478, %v2208, %v2212
        %v2214 = vshrl.u32 %v884, 16
        %v2216 = vor.u32 %v2214, %v2172
        %v2218 = vshll.u32 %v901, 16
        %v2220 = vrot.slane %v2218, 1
        %v2221 = vsel %vm478, %v2216, %v2220
        %v2222 = vshrl.u32 %v995, 16
        %v2224 = vor.u32 %v2222, %v2180
        %v2226 = vshll.u32 %v1004, 16
        %v2228 = vrot.slane %v2226, 1
        %v2229 = vsel %vm478, %v2224, %v2228
        %v2230 = vshrl.u32 %v1058, 16
        %v2232 = vor.u32 %v2230, %v2188
        %v2234 = vshll.u32 %v1060, 16
        %v2236 = vrot.slane %v2234, 1
        %v2237 = vsel %vm478, %v2232, %v2236
        %v2238 = vshrl.u32 %v650, 16
        %v2240 = vor.u32 %v2238, %v2196
        %v2242 = vshll.u32 %v658, 16
        %v2244 = vrot.slane %v2242, 1
        %v2245 = vsel %vm478, %v2240, %v2244
        %v2247 = vshll.u32 %v710, 16
        %v2249 = vrot.slane %v2247, 1
        %v2250 = vsel %vm478, %v2200, %v2249
        %v2251 = vshrl.u32 %v725, 16
        %v2253 = vor.u32 %v2251, %v2204
        %v2255 = vshll.u32 %v727, 16
        %v2257 = vrot.slane %v2255, 1
        %v2258 = vsel %vm478, %v2253, %v2257
        %v2259 = vshrl.u32 %v828, 16
        %v2261 = vor.u32 %v2259, %v2212
        %v2263 = vshll.u32 %v837, 16
        %v2265 = vrot.slane %v2263, 1
        %v2266 = vsel %vm478, %v2261, %v2265
        %v2268 = vshll.u32 %v886, 16
        %v2270 = vrot.slane %v2268, 1
        %v2271 = vsel %vm478, %v2216, %v2270
        %v2272 = vshrl.u32 %v901, 16
        %v2274 = vor.u32 %v2272, %v2220
        %v2276 = vshll.u32 %v903, 16
        %v2278 = vrot.slane %v2276, 1
        %v2279 = vsel %vm478, %v2274, %v2278
        %v2280 = vshrl.u32 %v1004, 16
        %v2282 = vor.u32 %v2280, %v2228
        %v2284 = vshll.u32 %v1013, 16
        %v2286 = vrot.slane %v2284, 1
        %v2287 = vsel %vm478, %v2282, %v2286
        %v2288 = vshrl.u32 %v1060, 16
        %v2290 = vor.u32 %v2288, %v2236
        %v2292 = vshll.u32 %v1062, 16
        %v2294 = vrot.slane %v2292, 1
        %v2295 = vsel %vm478, %v2290, %v2294
        %v2296 = vshrl.u32 %v658, 16
        %v2298 = vor.u32 %v2296, %v2244
        %v2300 = vshll.u32 %v661, 16
        %v2302 = vrot.slane %v2300, 1
        %v2303 = vsel %vm478, %v2298, %v2302
        %v2304 = vshrl.u32 %v710, 16
        %v2306 = vor.u32 %v2304, %v2249
        %v2308 = vshll.u32 %v709, 16
        %v2310 = vrot.slane %v2308, 1
        %v2311 = vsel %vm478, %v2306, %v2310
        %v2312 = vshrl.u32 %v727, 16
        %v2314 = vor.u32 %v2312, %v2257
        %v2316 = vshll.u32 %v726, 16
        %v2318 = vrot.slane %v2316, 1
        %v2319 = vsel %vm478, %v2314, %v2318
        %v2320 = vshrl.u32 %v837, 16
        %v2322 = vor.u32 %v2320, %v2265
        %v2324 = vshll.u32 %v836, 16
        %v2326 = vrot.slane %v2324, 1
        %v2327 = vsel %vm478, %v2322, %v2326
        %v2328 = vshrl.u32 %v886, 16
        %v2330 = vor.u32 %v2328, %v2270
        %v2332 = vshll.u32 %v885, 16
        %v2334 = vrot.slane %v2332, 1
        %v2335 = vsel %vm478, %v2330, %v2334
        %v2336 = vshrl.u32 %v903, 16
        %v2338 = vor.u32 %v2336, %v2278
        %v2340 = vshll.u32 %v902, 16
        %v2342 = vrot.slane %v2340, 1
        %v2343 = vsel %vm478, %v2338, %v2342
        %v2344 = vshrl.u32 %v1013, 16
        %v2346 = vor.u32 %v2344, %v2286
        %v2348 = vshll.u32 %v1012, 16
        %v2350 = vrot.slane %v2348, 1
        %v2351 = vsel %vm478, %v2346, %v2350
        %v2352 = vshrl.u32 %v1062, 16
        %v2354 = vor.u32 %v2352, %v2294
        %v2356 = vshll.u32 %v1061, 16
        %v2358 = vrot.slane %v2356, 1
        %v2359 = vsel %vm478, %v2354, %v2358
        %v2360 = vshrl.u32 %v661, 16
        %v2362 = vor.u32 %v2360, %v2302
        %v2363 = vshrl.u32 %v709, 16
        %v2365 = vor.u32 %v2363, %v2310
        %v2366 = vshrl.u32 %v726, 16
        %v2368 = vor.u32 %v2366, %v2318
        %v2369 = vshrl.u32 %v836, 16
        %v2371 = vor.u32 %v2369, %v2326
        %v2372 = vshrl.u32 %v885, 16
        %v2374 = vor.u32 %v2372, %v2334
        %v2375 = vshrl.u32 %v902, 16
        %v2377 = vor.u32 %v2375, %v2342
        %v2378 = vshrl.u32 %v1012, 16
        %v2380 = vor.u32 %v2378, %v2350
        %v2381 = vshrl.u32 %v1061, 16
        %v2383 = vor.u32 %v2381, %v2358
        %v2699 = vunpack.c.l.b16 %v1063
        %v2700 = vunpack.c.l.b16 %v1064
        %v2701 = vunpack.c.l.b16 %v1065
        %v2702 = vunpack.c.l.b16 %v1066
        %v2703 = vunpack.c.l.b16 %v1067
        %v2704 = vunpack.c.l.b16 %v1068
        %v2705 = vunpack.c.l.b16 %v1069
        %v2706 = vunpack.c.l.b16 %v1070
        %v2707 = vunpack.c.l.b16 %v1071
        %v2708 = vunpack.c.l.b16 %v1072
        %v2709 = vunpack.c.l.b16 %v1073
        %v2710 = vunpack.c.l.b16 %v1074
        %v2711 = vunpack.c.l.b16 %v1075
        %v2712 = vunpack.c.l.b16 %v1076
        %v2713 = vunpack.c.l.b16 %v1077
        %v2714 = vunpack.c.l.b16 %v1078
        %v2715 = vunpack.c.l.b16 %v1079
        %v2716 = vunpack.c.l.b16 %v1080
        %v2717 = vunpack.c.l.b16 %v1081
        %v2718 = vunpack.c.l.b16 %v1082
        %v2719 = vunpack.c.l.b16 %v1083
        %v2720 = vunpack.c.l.b16 %v1084
        %v2721 = vunpack.c.l.b16 %v1085
        %v2722 = vunpack.c.l.b16 %v1086
        %v2723 = vunpack.c.l.b16 %v1087
        %v2724 = vunpack.c.l.b16 %v1088
        %v2725 = vunpack.c.l.b16 %v1089
        %v2726 = vunpack.c.l.b16 %v1090
        %v2727 = vunpack.c.l.b16 %v1091
        %v2728 = vunpack.c.l.b16 %v1092
        %v2729 = vunpack.c.l.b16 %v1093
        %v2730 = vunpack.c.l.b16 %v1094
        %v2731 = vunpack.c.l.b16 %v1095
        %v2732 = vunpack.c.l.b16 %v1096
        %v2733 = vunpack.c.l.b16 %v1097
        %v2734 = vunpack.c.l.b16 %v1098
        %v2735 = vunpack.c.l.b16 %v1099
        %v2736 = vunpack.c.l.b16 %v1100
        %v2737 = vunpack.c.l.b16 %v1101
        %v2738 = vunpack.c.l.b16 %v1102
        %v2739 = vunpack.c.l.b16 %v1103
        %v2740 = vunpack.c.l.b16 %v1104
        %v2741 = vunpack.c.l.b16 %v1105
        %v2742 = vunpack.c.l.b16 %v1106
        %v2743 = vunpack.c.l.b16 %v1107
        %v2744 = vunpack.c.l.b16 %v1108
        %v2745 = vunpack.c.l.b16 %v1109
        %v2746 = vunpack.c.l.b16 %v1110
        %v2747 = vunpack.c.l.b16 %v1111
        %v2748 = vunpack.c.l.b16 %v1112
        %v2749 = vunpack.c.l.b16 %v1113
        %v2750 = vunpack.c.l.b16 %v1114
        %v2751 = vunpack.c.l.b16 %v1115
        %v2752 = vunpack.c.l.b16 %v1116
        %v2753 = vunpack.c.l.b16 %v1117
        %v2754 = vunpack.c.l.b16 %v1118
        %v2755 = vunpack.c.l.b16 %v1119
        %v2756 = vunpack.c.l.b16 %v1120
        %v2757 = vunpack.c.l.b16 %v1121
        %v2758 = vunpack.c.l.b16 %v1122
        %v2759 = vunpack.c.l.b16 %v1123
        %v2760 = vunpack.c.l.b16 %v1124
        %v2761 = vunpack.c.l.b16 %v1125
        %v2762 = vunpack.c.l.b16 %v1126
        %v2763 = vunpack.c.l.b16 %v1127
        %v2764 = vunpack.c.l.b16 %v1128
        %v2765 = vunpack.c.l.b16 %v1129
        %v2766 = vunpack.c.l.b16 %v1130
        %v2767 = vunpack.c.l.b16 %v1131
        %v2768 = vunpack.c.l.b16 %v1132
        %v2769 = vunpack.c.l.b16 %v1133
        %v2770 = vunpack.c.l.b16 %v1134
        %v2771 = vunpack.c.l.b16 %v1135
        %v2772 = vunpack.c.l.b16 %v1136
        %v2773 = vunpack.c.l.b16 %v1137
        %v2774 = vunpack.c.l.b16 %v1138
        %v2775 = vunpack.c.l.b16 %v1139
        %v2776 = vunpack.c.l.b16 %v1140
        %v2777 = vunpack.c.l.b16 %v1141
        %v2778 = vunpack.c.l.b16 %v1142
        %v2779 = vunpack.c.l.b16 %v1143
        %v2780 = vunpack.c.l.b16 %v1144
        %v2781 = vunpack.c.l.b16 %v1145
        %v2782 = vunpack.c.l.b16 %v1146
        %v2783 = vunpack.c.l.b16 %v1147
        %v2784 = vunpack.c.l.b16 %v1148
        %v2785 = vunpack.c.l.b16 %v1149
        %v2786 = vunpack.c.l.b16 %v1150
        %v2787 = vunpack.c.l.b16 %v1151
        %v2788 = vunpack.c.l.b16 %v1152
        %v2789 = vunpack.c.l.b16 %v1153
        %v2790 = vunpack.c.l.b16 %v1154
        %v2791 = vunpack.c.l.b16 %v1155
        %v2792 = vunpack.c.l.b16 %v1156
        %v2793 = vunpack.c.l.b16 %v1157
        %v2794 = vunpack.c.l.b16 %v1158
        %v2795 = vunpack.c.l.b16 %v1159
        %v2796 = vunpack.c.l.b16 %v1160
        %v2797 = vunpack.c.l.b16 %v1161
        %v2798 = vunpack.c.l.b16 %v1162
        %v2799 = vunpack.c.l.b16 %v1163
        %v2800 = vunpack.c.l.b16 %v1164
        %v2801 = vunpack.c.l.b16 %v1165
        %v2802 = vunpack.c.l.b16 %v1166
        %v2803 = vunpack.c.l.b16 %v1167
        %v2804 = vunpack.c.l.b16 %v1168
        %v2805 = vunpack.c.l.b16 %v1169
        %v2806 = vunpack.c.l.b16 %v1170
        %v2807 = vunpack.c.l.b16 %v1171
        %v2808 = vunpack.c.l.b16 %v1172
        %v2809 = vunpack.c.l.b16 %v1173
        %v2810 = vunpack.c.l.b16 %v1174
        %v2811 = vunpack.c.l.b16 %v1175
        %v2812 = vunpack.c.l.b16 %v1176
        %v2813 = vunpack.c.l.b16 %v1177
        %v2814 = vunpack.c.l.b16 %v1178
        %v2815 = vunpack.c.l.b16 %v1179
        %v2816 = vunpack.c.l.b16 %v1180
        %v2817 = vunpack.c.l.b16 %v1181
        %v2818 = vunpack.c.l.b16 %v1182
        %v2819 = vunpack.c.l.b16 %v1183
        %v2820 = vunpack.c.l.b16 %v1184
        %v2821 = vunpack.c.l.b16 %v1185
        %v2822 = vunpack.c.l.b16 %v1186
        %v2823 = vunpack.c.l.b16 %v1187
        %v2824 = vunpack.c.l.b16 %v1188
        %v2825 = vunpack.c.l.b16 %v1189
        %v2826 = vunpack.c.l.b16 %v1190
        %v2827 = vunpack.c.l.b16 %v1191
        %v2828 = vunpack.c.l.b16 %v1192
        %v2829 = vunpack.c.l.b16 %v1193
        %v2830 = vunpack.c.l.b16 %v1194
        %v2831 = vunpack.c.l.b16 %v1195
        %v2832 = vunpack.c.l.b16 %v1196
        %v2833 = vunpack.c.l.b16 %v1197
        %v2834 = vunpack.c.l.b16 %v1198
        %v2835 = vunpack.c.l.b16 %v1199
        %v2836 = vunpack.c.l.b16 %v1200
        %v2837 = vunpack.c.l.b16 %v1201
        %v2838 = vunpack.c.l.b16 %v1202
        %v2839 = vunpack.c.l.b16 %v1203
        %v2840 = vunpack.c.l.b16 %v1204
        %v2841 = vunpack.c.l.b16 %v1205
        %v2842 = vunpack.c.l.b16 %v1206
        %v2843 = vpack.c.b16 %v2700, %v2699
        %v2844 = vpack.c.b16 %v2702, %v2701
        %v2845 = vpack.c.b16 %v2704, %v2703
        %v2846 = vpack.c.b16 %v2706, %v2705
        %v2847 = vpack.c.b16 %v2708, %v2707
        %v2848 = vpack.c.b16 %v2710, %v2709
        %v2849 = vpack.c.b16 %v2712, %v2711
        %v2850 = vpack.c.b16 %v2714, %v2713
        %v2851 = vpack.c.b16 %v2716, %v2715
        %v2852 = vpack.c.b16 %v2718, %v2717
        %v2853 = vpack.c.b16 %v2720, %v2719
        %v2854 = vpack.c.b16 %v2722, %v2721
        %v2855 = vpack.c.b16 %v2724, %v2723
        %v2856 = vpack.c.b16 %v2726, %v2725
        %v2857 = vpack.c.b16 %v2728, %v2727
        %v2858 = vpack.c.b16 %v2730, %v2729
        %v2859 = vpack.c.b16 %v2732, %v2731
        %v2860 = vpack.c.b16 %v2734, %v2733
        %v2861 = vpack.c.b16 %v2736, %v2735
        %v2862 = vpack.c.b16 %v2738, %v2737
        %v2863 = vpack.c.b16 %v2740, %v2739
        %v2864 = vpack.c.b16 %v2742, %v2741
        %v2865 = vpack.c.b16 %v2744, %v2743
        %v2866 = vpack.c.b16 %v2746, %v2745
        %v2867 = vpack.c.b16 %v2748, %v2747
        %v2868 = vpack.c.b16 %v2750, %v2749
        %v2869 = vpack.c.b16 %v2752, %v2751
        %v2870 = vpack.c.b16 %v2754, %v2753
        %v2871 = vpack.c.b16 %v2756, %v2755
        %v2872 = vpack.c.b16 %v2758, %v2757
        %v2873 = vpack.c.b16 %v2760, %v2759
        %v2874 = vpack.c.b16 %v2762, %v2761
        %v2875 = vpack.c.b16 %v2764, %v2763
        %v2876 = vpack.c.b16 %v2766, %v2765
        %v2877 = vpack.c.b16 %v2768, %v2767
        %v2878 = vpack.c.b16 %v2770, %v2769
        %v2879 = vpack.c.b16 %v2772, %v2771
        %v2880 = vpack.c.b16 %v2774, %v2773
        %v2881 = vpack.c.b16 %v2776, %v2775
        %v2882 = vpack.c.b16 %v2778, %v2777
        %v2883 = vpack.c.b16 %v2780, %v2779
        %v2884 = vpack.c.b16 %v2782, %v2781
        %v2885 = vpack.c.b16 %v2784, %v2783
        %v2886 = vpack.c.b16 %v2786, %v2785
        %v2887 = vpack.c.b16 %v2788, %v2787
        %v2888 = vpack.c.b16 %v2790, %v2789
        %v2889 = vpack.c.b16 %v2792, %v2791
        %v2890 = vpack.c.b16 %v2794, %v2793
        %v2891 = vpack.c.b16 %v2796, %v2795
        %v2892 = vpack.c.b16 %v2798, %v2797
        %v2893 = vpack.c.b16 %v2800, %v2799
        %v2894 = vpack.c.b16 %v2802, %v2801
        %v2895 = vpack.c.b16 %v2804, %v2803
        %v2896 = vpack.c.b16 %v2806, %v2805
        %v2897 = vpack.c.b16 %v2808, %v2807
        %v2898 = vpack.c.b16 %v2810, %v2809
        %v2899 = vpack.c.b16 %v2812, %v2811
        %v2900 = vpack.c.b16 %v2814, %v2813
        %v2901 = vpack.c.b16 %v2816, %v2815
        %v2902 = vpack.c.b16 %v2818, %v2817
        %v2903 = vpack.c.b16 %v2820, %v2819
        %v2904 = vpack.c.b16 %v2822, %v2821
        %v2905 = vpack.c.b16 %v2824, %v2823
        %v2906 = vpack.c.b16 %v2826, %v2825
        %v2907 = vpack.c.b16 %v2828, %v2827
        %v2908 = vpack.c.b16 %v2830, %v2829
        %v2909 = vpack.c.b16 %v2832, %v2831
        %v2910 = vpack.c.b16 %v2834, %v2833
        %v2911 = vpack.c.b16 %v2836, %v2835
        %v2912 = vpack.c.b16 %v2838, %v2837
        %v2913 = vpack.c.b16 %v2840, %v2839
        %v2914 = vpack.c.b16 %v2842, %v2841
        %2987 = vmatprep.subr.bf16.mxu0 0
        %2988 = vmatpush1.bf16.msra.mxu0 %v2843
        %2989 = vmatprep.subr.bf16.mxu0 0
        %2990 = vmatpush1.bf16.msra.mxu0 %v2844
        %2991 = vmatprep.subr.bf16.mxu0 0
        %2992 = vmatpush1.bf16.msra.mxu0 %v2845
        %2993 = vmatprep.subr.bf16.mxu0 0
        %2994 = vmatpush1.bf16.msra.mxu0 %v2846
        %2995 = vmatprep.subr.bf16.mxu0 0
        %2996 = vmatpush1.bf16.msra.mxu0 %v2847
        %2997 = vmatprep.subr.bf16.mxu0 0
        %2998 = vmatpush1.bf16.msra.mxu0 %v2848
        %2999 = vmatprep.subr.bf16.mxu0 0
        %3000 = vmatpush1.bf16.msra.mxu0 %v2849
        %3001 = vmatprep.subr.bf16.mxu0 0
        %3002 = vmatpush1.bf16.msra.mxu0 %v2850
        %3003 = vmatprep.subr.bf16.mxu0 0
        %3004 = vmatpush1.bf16.msra.mxu0 %v2851
        %3005 = vmatprep.subr.bf16.mxu0 0
        %3006 = vmatpush1.bf16.msra.mxu0 %v2852
        %3007 = vmatprep.subr.bf16.mxu0 0
        %3008 = vmatpush1.bf16.msra.mxu0 %v2853
        %3009 = vmatprep.subr.bf16.mxu0 0
        %3010 = vmatpush1.bf16.msra.mxu0 %v2854
        %3011 = vmatprep.subr.bf16.mxu0 0
        %3012 = vmatpush1.bf16.msra.mxu0 %v2855
        %3013 = vmatprep.subr.bf16.mxu0 0
        %3014 = vmatpush1.bf16.msra.mxu0 %v2856
        %3015 = vmatprep.subr.bf16.mxu0 0
        %3016 = vmatpush1.bf16.msra.mxu0 %v2857
        %3017 = vmatprep.subr.bf16.mxu0 0
        %3018 = vmatpush1.bf16.msra.mxu0 %v2858
        %3019 = vmatprep.mubr.bf16.mxu0 %v1233
        %3020 = vmatmul.mubr.bf16.gmra.mrb[0].mxu0 %v1221
        %v3021 = vpop.f32.mrb[0].mxu0
        %v3022 = vadd.f32 %v1212, %v3021
        %v3023 = vpop.f32.mrb[0].mxu0
        %v3024 = vpop.f32.mrb[0].mxu0
        %v3025 = vadd.f32 %v1212, %v3024
        %v3026 = vpop.f32.mrb[0].mxu0
        %3027 = vmatprep.mubr.bf16.mxu0 %v1325
        %3028 = vmatmul.mubr.bf16.gmra.mrb[0].mxu0 %v498
        %v3029 = vpop.f32.mrb[0].mxu0
        %v3030 = vadd.f32 %v1212, %v3029
        %v3031 = vpop.f32.mrb[0].mxu0
        %v3032 = vpop.f32.mrb[0].mxu0
        %v3033 = vadd.f32 %v1212, %v3032
        %v3034 = vpop.f32.mrb[0].mxu0
        %3035 = vmatprep.mubr.bf16.mxu0 %v1381
        %3036 = vmatmul.mubr.bf16.gmra.mrb[0].mxu0 %v506
        %v3037 = vpop.f32.mrb[0].mxu0
        %v3038 = vadd.f32 %v1212, %v3037
        %v3039 = vpop.f32.mrb[0].mxu0
        %v3040 = vpop.f32.mrb[0].mxu0
        %v3041 = vadd.f32 %v1212, %v3040
        %v3042 = vpop.f32.mrb[0].mxu0
        %3043 = vmatprep.mubr.bf16.mxu0 %v1429
        %3044 = vmatmul.mubr.bf16.gmra.mrb[0].mxu0 %v514
        %v3045 = vpop.f32.mrb[0].mxu0
        %v3046 = vadd.f32 %v1212, %v3045
        %v3047 = vpop.f32.mrb[0].mxu0
        %v3048 = vpop.f32.mrb[0].mxu0
        %v3049 = vadd.f32 %v1212, %v3048
        %v3050 = vpop.f32.mrb[0].mxu0
        %3051 = vmatprep.mubr.bf16.mxu0 %v1477
        %3052 = vmatmul.mubr.bf16.gmra.mrb[0].mxu0 %v522
        %v3053 = vpop.f32.mrb[0].mxu0
        %v3054 = vadd.f32 %v1212, %v3053
        %v3055 = vpop.f32.mrb[0].mxu0
        %v3056 = vpop.f32.mrb[0].mxu0
        %v3057 = vadd.f32 %v1212, %v3056
        %v3058 = vpop.f32.mrb[0].mxu0
        %3059 = vmatprep.mubr.bf16.mxu0 %v1525
        %3060 = vmatmul.mubr.bf16.gmra.mrb[0].mxu0 %v530
        %v3061 = vpop.f32.mrb[0].mxu0
        %v3062 = vadd.f32 %v1212, %v3061
        %v3063 = vpop.f32.mrb[0].mxu0
        %v3064 = vpop.f32.mrb[0].mxu0
        %v3065 = vadd.f32 %v1212, %v3064
        %v3066 = vpop.f32.mrb[0].mxu0
        %3067 = vmatprep.mubr.bf16.mxu0 %v1573
        %3068 = vmatmul.mubr.bf16.gmra.mrb[0].mxu0 %v538
        %v3069 = vpop.f32.mrb[0].mxu0
        %v3070 = vadd.f32 %v1212, %v3069
        %v3071 = vpop.f32.mrb[0].mxu0
        %v3072 = vpop.f32.mrb[0].mxu0
        %v3073 = vadd.f32 %v1212, %v3072
        %v3074 = vpop.f32.mrb[0].mxu0
        %3075 = vmatprep.mubr.bf16.mxu0 %v1621
        %3076 = vmatmul.mubr.bf16.gmra.mrb[0].mxu0 %v546
        %v3077 = vpop.f32.mrb[0].mxu0
        %v3078 = vadd.f32 %v1212, %v3077
        %v3079 = vpop.f32.mrb[0].mxu0
        %v3080 = vpop.f32.mrb[0].mxu0
        %v3081 = vadd.f32 %v1212, %v3080
        %v3082 = vpop.f32.mrb[0].mxu0
        %3083 = vmatprep.mubr.bf16.mxu0 %v1669
        %3084 = vmatmul.mubr.bf16.gmra.mrb[0].mxu0 %v554
        %v3085 = vpop.f32.mrb[0].mxu0
        %v3086 = vadd.f32 %v1212, %v3085
        %v3087 = vpop.f32.mrb[0].mxu0
        %v3088 = vpop.f32.mrb[0].mxu0
        %v3089 = vadd.f32 %v1212, %v3088
        %v3090 = vpop.f32.mrb[0].mxu0
        %3091 = vmatprep.mubr.bf16.mxu0 %v1717
        %3092 = vmatmul.mubr.bf16.gmra.mrb[0].mxu0 %v562
        %v3093 = vpop.f32.mrb[0].mxu0
        %v3094 = vadd.f32 %v1212, %v3093
        %v3095 = vpop.f32.mrb[0].mxu0
        %v3096 = vpop.f32.mrb[0].mxu0
        %v3097 = vadd.f32 %v1212, %v3096
        %v3098 = vpop.f32.mrb[0].mxu0
        %3099 = vmatprep.mubr.bf16.mxu0 %v1765
        %3100 = vmatmul.mubr.bf16.gmra.mrb[0].mxu0 %v570
        %v3101 = vpop.f32.mrb[0].mxu0
        %v3102 = vadd.f32 %v1212, %v3101
        %v3103 = vpop.f32.mrb[0].mxu0
        %v3104 = vpop.f32.mrb[0].mxu0
        %v3105 = vadd.f32 %v1212, %v3104
        %v3106 = vpop.f32.mrb[0].mxu0
        %3107 = vmatprep.mubr.bf16.mxu0 %v1813
        %3108 = vmatmul.mubr.bf16.gmra.mrb[0].mxu0 %v578
        %v3109 = vpop.f32.mrb[0].mxu0
        %v3110 = vadd.f32 %v1212, %v3109
        %v3111 = vpop.f32.mrb[0].mxu0
        %v3112 = vpop.f32.mrb[0].mxu0
        %v3113 = vadd.f32 %v1212, %v3112
        %v3114 = vpop.f32.mrb[0].mxu0
        %3115 = vmatprep.mubr.bf16.mxu0 %v1861
        %3116 = vmatmul.mubr.bf16.gmra.mrb[0].mxu0 %v586
        %v3117 = vpop.f32.mrb[0].mxu0
        %v3118 = vadd.f32 %v1212, %v3117
        %v3119 = vpop.f32.mrb[0].mxu0
        %v3120 = vpop.f32.mrb[0].mxu0
        %v3121 = vadd.f32 %v1212, %v3120
        %v3122 = vpop.f32.mrb[0].mxu0
        %3123 = vmatprep.mubr.bf16.mxu0 %v1909
        %3124 = vmatmul.mubr.bf16.gmra.mrb[0].mxu0 %v594
        %v3125 = vpop.f32.mrb[0].mxu0
        %v3126 = vadd.f32 %v1212, %v3125
        %v3127 = vpop.f32.mrb[0].mxu0
        %v3128 = vpop.f32.mrb[0].mxu0
        %v3129 = vadd.f32 %v1212, %v3128
        %v3130 = vpop.f32.mrb[0].mxu0
        %3131 = vmatprep.mubr.bf16.mxu0 %v1957
        %3132 = vmatmul.mubr.bf16.gmra.mrb[0].mxu0 %v602
        %v3133 = vpop.f32.mrb[0].mxu0
        %v3134 = vadd.f32 %v1212, %v3133
        %v3135 = vpop.f32.mrb[0].mxu0
        %v3136 = vpop.f32.mrb[0].mxu0
        %v3137 = vadd.f32 %v1212, %v3136
        %v3138 = vpop.f32.mrb[0].mxu0
        %3139 = vmatprep.mubr.bf16.mxu0 %v2005
        %3140 = vmatmul.mubr.bf16.gmra.mrb[0].mxu0 %v610
        %v3141 = vpop.f32.mrb[0].mxu0
        %v3142 = vadd.f32 %v1212, %v3141
        %v3143 = vpop.f32.mrb[0].mxu0
        %v3144 = vpop.f32.mrb[0].mxu0
        %v3145 = vadd.f32 %v1212, %v3144
        %v3146 = vpop.f32.mrb[0].mxu0
        %3147 = vmatprep.mubr.bf16.mxu0 %v2053
        %3148 = vmatmul.mubr.bf16.gmra.mrb[0].mxu0 %v618
        %v3149 = vpop.f32.mrb[0].mxu0
        %v3150 = vadd.f32 %v1212, %v3149
        %v3151 = vpop.f32.mrb[0].mxu0
        %v3152 = vpop.f32.mrb[0].mxu0
        %v3153 = vadd.f32 %v1212, %v3152
        %v3154 = vpop.f32.mrb[0].mxu0
        %3155 = vmatprep.mubr.bf16.mxu0 %v2101
        %3156 = vmatmul.mubr.bf16.gmra.mrb[0].mxu0 %v626
        %v3157 = vpop.f32.mrb[0].mxu0
        %v3158 = vadd.f32 %v1212, %v3157
        %v3159 = vpop.f32.mrb[0].mxu0
        %v3160 = vpop.f32.mrb[0].mxu0
        %v3161 = vadd.f32 %v1212, %v3160
        %v3162 = vpop.f32.mrb[0].mxu0
        %3163 = vmatprep.mubr.bf16.mxu0 %v2149
        %3164 = vmatmul.mubr.bf16.gmra.mrb[0].mxu0 %v634
        %v3165 = vpop.f32.mrb[0].mxu0
        %v3166 = vadd.f32 %v1212, %v3165
        %v3167 = vpop.f32.mrb[0].mxu0
        %v3168 = vpop.f32.mrb[0].mxu0
        %v3169 = vadd.f32 %v1212, %v3168
        %v3170 = vpop.f32.mrb[0].mxu0
        %3171 = vmatprep.mubr.bf16.mxu0 %v2197
        %3172 = vmatmul.mubr.bf16.gmra.mrb[0].mxu0 %v642
        %v3173 = vpop.f32.mrb[0].mxu0
        %v3174 = vadd.f32 %v1212, %v3173
        %v3175 = vpop.f32.mrb[0].mxu0
        %v3176 = vpop.f32.mrb[0].mxu0
        %v3177 = vadd.f32 %v1212, %v3176
        %v3178 = vpop.f32.mrb[0].mxu0
        %3179 = vmatprep.mubr.bf16.mxu0 %v2245
        %3180 = vmatmul.mubr.bf16.gmra.mrb[0].mxu0 %v650
        %v3181 = vpop.f32.mrb[0].mxu0
        %v3182 = vadd.f32 %v1212, %v3181
        %v3183 = vpop.f32.mrb[0].mxu0
        %v3184 = vpop.f32.mrb[0].mxu0
        %v3185 = vadd.f32 %v1212, %v3184
        %v3186 = vpop.f32.mrb[0].mxu0
        %3187 = vmatprep.mubr.bf16.mxu0 %v2303
        %3188 = vmatmul.mubr.bf16.gmra.mrb[0].mxu0 %v658
        %v3189 = vpop.f32.mrb[0].mxu0
        %v3190 = vadd.f32 %v1212, %v3189
        %v3191 = vpop.f32.mrb[0].mxu0
        %v3192 = vpop.f32.mrb[0].mxu0
        %v3193 = vadd.f32 %v1212, %v3192
        %v3194 = vpop.f32.mrb[0].mxu0
        %3195 = vmatprep.mubr.bf16.mxu0 %v2362
        %3196 = vmatmul.mubr.bf16.gmra.mrb[0].mxu0 %v661
        %v3197 = vpop.f32.mrb[0].mxu0
        %v3198 = vadd.f32 %v1212, %v3197
        %v3199 = vpop.f32.mrb[0].mxu0
        %v3200 = vpop.f32.mrb[0].mxu0
        %v3201 = vpop.f32.mrb[0].mxu0
        %3202 = vdwg.mxu0
        %3203 = vmatprep.subr.bf16.mxu0 0
        %3204 = vmatpush1.bf16.msra.mxu0 %v2859
        %3205 = vmatprep.subr.bf16.mxu0 0
        %3206 = vmatpush1.bf16.msra.mxu0 %v2860
        %3207 = vmatprep.subr.bf16.mxu0 0
        %3208 = vmatpush1.bf16.msra.mxu0 %v2861
        %3209 = vmatprep.subr.bf16.mxu0 0
        %3210 = vmatpush1.bf16.msra.mxu0 %v2862
        %3211 = vmatprep.subr.bf16.mxu0 0
        %3212 = vmatpush1.bf16.msra.mxu0 %v2863
        %3213 = vmatprep.subr.bf16.mxu0 0
        %3214 = vmatpush1.bf16.msra.mxu0 %v2864
        %3215 = vmatprep.subr.bf16.mxu0 0
        %3216 = vmatpush1.bf16.msra.mxu0 %v2865
        %3217 = vmatprep.subr.bf16.mxu0 0
        %3218 = vmatpush1.bf16.msra.mxu0 %v2866
        %3219 = vmatprep.subr.bf16.mxu0 0
        %3220 = vmatpush1.bf16.msra.mxu0 %v2867
        %3221 = vmatprep.subr.bf16.mxu0 0
        %3222 = vmatpush1.bf16.msra.mxu0 %v2868
        %3223 = vmatprep.subr.bf16.mxu0 0
        %3224 = vmatpush1.bf16.msra.mxu0 %v2869
        %3225 = vmatprep.subr.bf16.mxu0 0
        %3226 = vmatpush1.bf16.msra.mxu0 %v2870
        %3227 = vmatprep.subr.bf16.mxu0 0
        %3228 = vmatpush1.bf16.msra.mxu0 %v2871
        %3229 = vmatprep.subr.bf16.mxu0 0
        %3230 = vmatpush1.bf16.msra.mxu0 %v2872
        %3231 = vmatprep.subr.bf16.mxu0 0
        %3232 = vmatpush1.bf16.msra.mxu0 %v2873
        %3233 = vmatprep.subr.bf16.mxu0 0
        %3234 = vmatpush1.bf16.msra.mxu0 %v2874
        %3235 = vmatprep.mubr.bf16.mxu0 %v1257
        %3236 = vmatmul.mubr.bf16.gmra.mrb[0].mxu0 %v1245
        %v3237 = vpop.f32.mrb[0].mxu0
        %v3238 = vadd.f32 %v3022, %v3237
        %v3239 = vpop.f32.mrb[0].mxu0
        %v3240 = vpop.f32.mrb[0].mxu0
        %v3241 = vadd.f32 %v3025, %v3240
        %v3242 = vpop.f32.mrb[0].mxu0
        %3243 = vmatprep.mubr.bf16.mxu0 %v1337
        %3244 = vmatmul.mubr.bf16.gmra.mrb[0].mxu0 %v1329
        %v3245 = vpop.f32.mrb[0].mxu0
        %v3246 = vadd.f32 %v3030, %v3245
        %v3247 = vpop.f32.mrb[0].mxu0
        %v3248 = vpop.f32.mrb[0].mxu0
        %v3249 = vadd.f32 %v3033, %v3248
        %v3250 = vpop.f32.mrb[0].mxu0
        %3251 = vmatprep.mubr.bf16.mxu0 %v1389
        %3252 = vmatmul.mubr.bf16.gmra.mrb[0].mxu0 %v1337
        %v3253 = vpop.f32.mrb[0].mxu0
        %v3254 = vadd.f32 %v3038, %v3253
        %v3255 = vpop.f32.mrb[0].mxu0
        %v3256 = vpop.f32.mrb[0].mxu0
        %v3257 = vadd.f32 %v3041, %v3256
        %v3258 = vpop.f32.mrb[0].mxu0
        %3259 = vmatprep.mubr.bf16.mxu0 %v1437
        %3260 = vmatmul.mubr.bf16.gmra.mrb[0].mxu0 %v1389
        %v3261 = vpop.f32.mrb[0].mxu0
        %v3262 = vadd.f32 %v3046, %v3261
        %v3263 = vpop.f32.mrb[0].mxu0
        %v3264 = vpop.f32.mrb[0].mxu0
        %v3265 = vadd.f32 %v3049, %v3264
        %v3266 = vpop.f32.mrb[0].mxu0
        %3267 = vmatprep.mubr.bf16.mxu0 %v1485
        %3268 = vmatmul.mubr.bf16.gmra.mrb[0].mxu0 %v1437
        %v3269 = vpop.f32.mrb[0].mxu0
        %v3270 = vadd.f32 %v3054, %v3269
        %v3271 = vpop.f32.mrb[0].mxu0
        %v3272 = vpop.f32.mrb[0].mxu0
        %v3273 = vadd.f32 %v3057, %v3272
        %v3274 = vpop.f32.mrb[0].mxu0
        %3275 = vmatprep.mubr.bf16.mxu0 %v1533
        %3276 = vmatmul.mubr.bf16.gmra.mrb[0].mxu0 %v1485
        %v3277 = vpop.f32.mrb[0].mxu0
        %v3278 = vadd.f32 %v3062, %v3277
        %v3279 = vpop.f32.mrb[0].mxu0
        %v3280 = vpop.f32.mrb[0].mxu0
        %v3281 = vadd.f32 %v3065, %v3280
        %v3282 = vpop.f32.mrb[0].mxu0
        %3283 = vmatprep.mubr.bf16.mxu0 %v1581
        %3284 = vmatmul.mubr.bf16.gmra.mrb[0].mxu0 %v1533
        %v3285 = vpop.f32.mrb[0].mxu0
        %v3286 = vadd.f32 %v3070, %v3285
        %v3287 = vpop.f32.mrb[0].mxu0
        %v3288 = vpop.f32.mrb[0].mxu0
        %v3289 = vadd.f32 %v3073, %v3288
        %v3290 = vpop.f32.mrb[0].mxu0
        %3291 = vmatprep.mubr.bf16.mxu0 %v1629
        %3292 = vmatmul.mubr.bf16.gmra.mrb[0].mxu0 %v1581
        %v3293 = vpop.f32.mrb[0].mxu0
        %v3294 = vadd.f32 %v3078, %v3293
        %v3295 = vpop.f32.mrb[0].mxu0
        %v3296 = vpop.f32.mrb[0].mxu0
        %v3297 = vadd.f32 %v3081, %v3296
        %v3298 = vpop.f32.mrb[0].mxu0
        %3299 = vmatprep.mubr.bf16.mxu0 %v1677
        %3300 = vmatmul.mubr.bf16.gmra.mrb[0].mxu0 %v1629
        %v3301 = vpop.f32.mrb[0].mxu0
        %v3302 = vadd.f32 %v3086, %v3301
        %v3303 = vpop.f32.mrb[0].mxu0
        %v3304 = vpop.f32.mrb[0].mxu0
        %v3305 = vadd.f32 %v3089, %v3304
        %v3306 = vpop.f32.mrb[0].mxu0
        %3307 = vmatprep.mubr.bf16.mxu0 %v1725
        %3308 = vmatmul.mubr.bf16.gmra.mrb[0].mxu0 %v1677
        %v3309 = vpop.f32.mrb[0].mxu0
        %v3310 = vadd.f32 %v3094, %v3309
        %v3311 = vpop.f32.mrb[0].mxu0
        %v3312 = vpop.f32.mrb[0].mxu0
        %v3313 = vadd.f32 %v3097, %v3312
        %v3314 = vpop.f32.mrb[0].mxu0
        %3315 = vmatprep.mubr.bf16.mxu0 %v1773
        %3316 = vmatmul.mubr.bf16.gmra.mrb[0].mxu0 %v1725
        %v3317 = vpop.f32.mrb[0].mxu0
        %v3318 = vadd.f32 %v3102, %v3317
        %v3319 = vpop.f32.mrb[0].mxu0
        %v3320 = vpop.f32.mrb[0].mxu0
        %v3321 = vadd.f32 %v3105, %v3320
        %v3322 = vpop.f32.mrb[0].mxu0
        %3323 = vmatprep.mubr.bf16.mxu0 %v1821
        %3324 = vmatmul.mubr.bf16.gmra.mrb[0].mxu0 %v1773
        %v3325 = vpop.f32.mrb[0].mxu0
        %v3326 = vadd.f32 %v3110, %v3325
        %v3327 = vpop.f32.mrb[0].mxu0
        %v3328 = vpop.f32.mrb[0].mxu0
        %v3329 = vadd.f32 %v3113, %v3328
        %v3330 = vpop.f32.mrb[0].mxu0
        %3331 = vmatprep.mubr.bf16.mxu0 %v1869
        %3332 = vmatmul.mubr.bf16.gmra.mrb[0].mxu0 %v1821
        %v3333 = vpop.f32.mrb[0].mxu0
        %v3334 = vadd.f32 %v3118, %v3333
        %v3335 = vpop.f32.mrb[0].mxu0
        %v3336 = vpop.f32.mrb[0].mxu0
        %v3337 = vadd.f32 %v3121, %v3336
        %v3338 = vpop.f32.mrb[0].mxu0
        %3339 = vmatprep.mubr.bf16.mxu0 %v1917
        %3340 = vmatmul.mubr.bf16.gmra.mrb[0].mxu0 %v1869
        %v3341 = vpop.f32.mrb[0].mxu0
        %v3342 = vadd.f32 %v3126, %v3341
        %v3343 = vpop.f32.mrb[0].mxu0
        %v3344 = vpop.f32.mrb[0].mxu0
        %v3345 = vadd.f32 %v3129, %v3344
        %v3346 = vpop.f32.mrb[0].mxu0
        %3347 = vmatprep.mubr.bf16.mxu0 %v1965
        %3348 = vmatmul.mubr.bf16.gmra.mrb[0].mxu0 %v1917
        %v3349 = vpop.f32.mrb[0].mxu0
        %v3350 = vadd.f32 %v3134, %v3349
        %v3351 = vpop.f32.mrb[0].mxu0
        %v3352 = vpop.f32.mrb[0].mxu0
        %v3353 = vadd.f32 %v3137, %v3352
        %v3354 = vpop.f32.mrb[0].mxu0
        %3355 = vmatprep.mubr.bf16.mxu0 %v2013
        %3356 = vmatmul.mubr.bf16.gmra.mrb[0].mxu0 %v1965
        %v3357 = vpop.f32.mrb[0].mxu0
        %v3358 = vadd.f32 %v3142, %v3357
        %v3359 = vpop.f32.mrb[0].mxu0
        %v3360 = vpop.f32.mrb[0].mxu0
        %v3361 = vadd.f32 %v3145, %v3360
        %v3362 = vpop.f32.mrb[0].mxu0
        %3363 = vmatprep.mubr.bf16.mxu0 %v2061
        %3364 = vmatmul.mubr.bf16.gmra.mrb[0].mxu0 %v2013
        %v3365 = vpop.f32.mrb[0].mxu0
        %v3366 = vadd.f32 %v3150, %v3365
        %v3367 = vpop.f32.mrb[0].mxu0
        %v3368 = vpop.f32.mrb[0].mxu0
        %v3369 = vadd.f32 %v3153, %v3368
        %v3370 = vpop.f32.mrb[0].mxu0
        %3371 = vmatprep.mubr.bf16.mxu0 %v2109
        %3372 = vmatmul.mubr.bf16.gmra.mrb[0].mxu0 %v2061
        %v3373 = vpop.f32.mrb[0].mxu0
        %v3374 = vadd.f32 %v3158, %v3373
        %v3375 = vpop.f32.mrb[0].mxu0
        %v3376 = vpop.f32.mrb[0].mxu0
        %v3377 = vadd.f32 %v3161, %v3376
        %v3378 = vpop.f32.mrb[0].mxu0
        %3379 = vmatprep.mubr.bf16.mxu0 %v2157
        %3380 = vmatmul.mubr.bf16.gmra.mrb[0].mxu0 %v2109
        %v3381 = vpop.f32.mrb[0].mxu0
        %v3382 = vadd.f32 %v3166, %v3381
        %v3383 = vpop.f32.mrb[0].mxu0
        %v3384 = vpop.f32.mrb[0].mxu0
        %v3385 = vadd.f32 %v3169, %v3384
        %v3386 = vpop.f32.mrb[0].mxu0
        %3387 = vmatprep.mubr.bf16.mxu0 %v2205
        %3388 = vmatmul.mubr.bf16.gmra.mrb[0].mxu0 %v2157
        %v3389 = vpop.f32.mrb[0].mxu0
        %v3390 = vadd.f32 %v3174, %v3389
        %v3391 = vpop.f32.mrb[0].mxu0
        %v3392 = vpop.f32.mrb[0].mxu0
        %v3393 = vadd.f32 %v3177, %v3392
        %v3394 = vpop.f32.mrb[0].mxu0
        %3395 = vmatprep.mubr.bf16.mxu0 %v2258
        %3396 = vmatmul.mubr.bf16.gmra.mrb[0].mxu0 %v2250
        %v3397 = vpop.f32.mrb[0].mxu0
        %v3398 = vadd.f32 %v3182, %v3397
        %v3399 = vpop.f32.mrb[0].mxu0
        %v3400 = vpop.f32.mrb[0].mxu0
        %v3401 = vadd.f32 %v3185, %v3400
        %v3402 = vpop.f32.mrb[0].mxu0
        %3403 = vmatprep.mubr.bf16.mxu0 %v2319
        %3404 = vmatmul.mubr.bf16.gmra.mrb[0].mxu0 %v2311
        %v3405 = vpop.f32.mrb[0].mxu0
        %v3406 = vadd.f32 %v3190, %v3405
        %v3407 = vpop.f32.mrb[0].mxu0
        %v3408 = vpop.f32.mrb[0].mxu0
        %v3409 = vadd.f32 %v3193, %v3408
        %v3410 = vpop.f32.mrb[0].mxu0
        %3411 = vmatprep.mubr.bf16.mxu0 %v2368
        %3412 = vmatmul.mubr.bf16.gmra.mrb[0].mxu0 %v2365
        %v3413 = vpop.f32.mrb[0].mxu0
        %v3414 = vadd.f32 %v3198, %v3413
        %v3415 = vpop.f32.mrb[0].mxu0
        %v3416 = vpop.f32.mrb[0].mxu0
        %v3417 = vpop.f32.mrb[0].mxu0
        %3418 = vdwg.mxu0
        %3419 = vmatprep.subr.bf16.mxu0 0
        %3420 = vmatpush1.bf16.msra.mxu0 %v2875
        %3421 = vmatprep.subr.bf16.mxu0 0
        %3422 = vmatpush1.bf16.msra.mxu0 %v2876
        %3423 = vmatprep.subr.bf16.mxu0 0
        %3424 = vmatpush1.bf16.msra.mxu0 %v2877
        %3425 = vmatprep.subr.bf16.mxu0 0
        %3426 = vmatpush1.bf16.msra.mxu0 %v2878
        %3427 = vmatprep.subr.bf16.mxu0 0
        %3428 = vmatpush1.bf16.msra.mxu0 %v2879
        %3429 = vmatprep.subr.bf16.mxu0 0
        %3430 = vmatpush1.bf16.msra.mxu0 %v2880
        %3431 = vmatprep.subr.bf16.mxu0 0
        %3432 = vmatpush1.bf16.msra.mxu0 %v2881
        %3433 = vmatprep.subr.bf16.mxu0 0
        %3434 = vmatpush1.bf16.msra.mxu0 %v2882
        %3435 = vmatprep.subr.bf16.mxu0 0
        %3436 = vmatpush1.bf16.msra.mxu0 %v2883
        %3437 = vmatprep.subr.bf16.mxu0 0
        %3438 = vmatpush1.bf16.msra.mxu0 %v2884
        %3439 = vmatprep.subr.bf16.mxu0 0
        %3440 = vmatpush1.bf16.msra.mxu0 %v2885
        %3441 = vmatprep.subr.bf16.mxu0 0
        %3442 = vmatpush1.bf16.msra.mxu0 %v2886
        %3443 = vmatprep.subr.bf16.mxu0 0
        %3444 = vmatpush1.bf16.msra.mxu0 %v2887
        %3445 = vmatprep.subr.bf16.mxu0 0
        %3446 = vmatpush1.bf16.msra.mxu0 %v2888
        %3447 = vmatprep.subr.bf16.mxu0 0
        %3448 = vmatpush1.bf16.msra.mxu0 %v2889
        %3449 = vmatprep.subr.bf16.mxu0 0
        %3450 = vmatpush1.bf16.msra.mxu0 %v2890
        %3451 = vmatprep.mubr.bf16.mxu0 %v1281
        %3452 = vmatmul.mubr.bf16.gmra.mrb[0].mxu0 %v1269
        %v3453 = vpop.f32.mrb[0].mxu0
        %v3454 = vadd.f32 %v3238, %v3453
        %v3455 = vpop.f32.mrb[0].mxu0
        %v3456 = vpop.f32.mrb[0].mxu0
        %v3457 = vadd.f32 %v3241, %v3456
        %v3458 = vpop.f32.mrb[0].mxu0
        %3459 = vmatprep.mubr.bf16.mxu0 %v1349
        %3460 = vmatmul.mubr.bf16.gmra.mrb[0].mxu0 %v1345
        %v3461 = vpop.f32.mrb[0].mxu0
        %v3462 = vadd.f32 %v3246, %v3461
        %v3463 = vpop.f32.mrb[0].mxu0
        %v3464 = vpop.f32.mrb[0].mxu0
        %v3465 = vadd.f32 %v3249, %v3464
        %v3466 = vpop.f32.mrb[0].mxu0
        %3467 = vmatprep.mubr.bf16.mxu0 %v1357
        %3468 = vmatmul.mubr.bf16.gmra.mrb[0].mxu0 %v1397
        %v3469 = vpop.f32.mrb[0].mxu0
        %v3470 = vadd.f32 %v3254, %v3469
        %v3471 = vpop.f32.mrb[0].mxu0
        %v3472 = vpop.f32.mrb[0].mxu0
        %v3473 = vadd.f32 %v3257, %v3472
        %v3474 = vpop.f32.mrb[0].mxu0
        %3475 = vmatprep.mubr.bf16.mxu0 %v1405
        %3476 = vmatmul.mubr.bf16.gmra.mrb[0].mxu0 %v1445
        %v3477 = vpop.f32.mrb[0].mxu0
        %v3478 = vadd.f32 %v3262, %v3477
        %v3479 = vpop.f32.mrb[0].mxu0
        %v3480 = vpop.f32.mrb[0].mxu0
        %v3481 = vadd.f32 %v3265, %v3480
        %v3482 = vpop.f32.mrb[0].mxu0
        %3483 = vmatprep.mubr.bf16.mxu0 %v1453
        %3484 = vmatmul.mubr.bf16.gmra.mrb[0].mxu0 %v1493
        %v3485 = vpop.f32.mrb[0].mxu0
        %v3486 = vadd.f32 %v3270, %v3485
        %v3487 = vpop.f32.mrb[0].mxu0
        %v3488 = vpop.f32.mrb[0].mxu0
        %v3489 = vadd.f32 %v3273, %v3488
        %v3490 = vpop.f32.mrb[0].mxu0
        %3491 = vmatprep.mubr.bf16.mxu0 %v1501
        %3492 = vmatmul.mubr.bf16.gmra.mrb[0].mxu0 %v1541
        %v3493 = vpop.f32.mrb[0].mxu0
        %v3494 = vadd.f32 %v3278, %v3493
        %v3495 = vpop.f32.mrb[0].mxu0
        %v3496 = vpop.f32.mrb[0].mxu0
        %v3497 = vadd.f32 %v3281, %v3496
        %v3498 = vpop.f32.mrb[0].mxu0
        %3499 = vmatprep.mubr.bf16.mxu0 %v1549
        %3500 = vmatmul.mubr.bf16.gmra.mrb[0].mxu0 %v1589
        %v3501 = vpop.f32.mrb[0].mxu0
        %v3502 = vadd.f32 %v3286, %v3501
        %v3503 = vpop.f32.mrb[0].mxu0
        %v3504 = vpop.f32.mrb[0].mxu0
        %v3505 = vadd.f32 %v3289, %v3504
        %v3506 = vpop.f32.mrb[0].mxu0
        %3507 = vmatprep.mubr.bf16.mxu0 %v1597
        %3508 = vmatmul.mubr.bf16.gmra.mrb[0].mxu0 %v1637
        %v3509 = vpop.f32.mrb[0].mxu0
        %v3510 = vadd.f32 %v3294, %v3509
        %v3511 = vpop.f32.mrb[0].mxu0
        %v3512 = vpop.f32.mrb[0].mxu0
        %v3513 = vadd.f32 %v3297, %v3512
        %v3514 = vpop.f32.mrb[0].mxu0
        %3515 = vmatprep.mubr.bf16.mxu0 %v1645
        %3516 = vmatmul.mubr.bf16.gmra.mrb[0].mxu0 %v1685
        %v3517 = vpop.f32.mrb[0].mxu0
        %v3518 = vadd.f32 %v3302, %v3517
        %v3519 = vpop.f32.mrb[0].mxu0
        %v3520 = vpop.f32.mrb[0].mxu0
        %v3521 = vadd.f32 %v3305, %v3520
        %v3522 = vpop.f32.mrb[0].mxu0
        %3523 = vmatprep.mubr.bf16.mxu0 %v1693
        %3524 = vmatmul.mubr.bf16.gmra.mrb[0].mxu0 %v1733
        %v3525 = vpop.f32.mrb[0].mxu0
        %v3526 = vadd.f32 %v3310, %v3525
        %v3527 = vpop.f32.mrb[0].mxu0
        %v3528 = vpop.f32.mrb[0].mxu0
        %v3529 = vadd.f32 %v3313, %v3528
        %v3530 = vpop.f32.mrb[0].mxu0
        %3531 = vmatprep.mubr.bf16.mxu0 %v1741
        %3532 = vmatmul.mubr.bf16.gmra.mrb[0].mxu0 %v1781
        %v3533 = vpop.f32.mrb[0].mxu0
        %v3534 = vadd.f32 %v3318, %v3533
        %v3535 = vpop.f32.mrb[0].mxu0
        %v3536 = vpop.f32.mrb[0].mxu0
        %v3537 = vadd.f32 %v3321, %v3536
        %v3538 = vpop.f32.mrb[0].mxu0
        %3539 = vmatprep.mubr.bf16.mxu0 %v1789
        %3540 = vmatmul.mubr.bf16.gmra.mrb[0].mxu0 %v1829
        %v3541 = vpop.f32.mrb[0].mxu0
        %v3542 = vadd.f32 %v3326, %v3541
        %v3543 = vpop.f32.mrb[0].mxu0
        %v3544 = vpop.f32.mrb[0].mxu0
        %v3545 = vadd.f32 %v3329, %v3544
        %v3546 = vpop.f32.mrb[0].mxu0
        %3547 = vmatprep.mubr.bf16.mxu0 %v1837
        %3548 = vmatmul.mubr.bf16.gmra.mrb[0].mxu0 %v1877
        %v3549 = vpop.f32.mrb[0].mxu0
        %v3550 = vadd.f32 %v3334, %v3549
        %v3551 = vpop.f32.mrb[0].mxu0
        %v3552 = vpop.f32.mrb[0].mxu0
        %v3553 = vadd.f32 %v3337, %v3552
        %v3554 = vpop.f32.mrb[0].mxu0
        %3555 = vmatprep.mubr.bf16.mxu0 %v1885
        %3556 = vmatmul.mubr.bf16.gmra.mrb[0].mxu0 %v1925
        %v3557 = vpop.f32.mrb[0].mxu0
        %v3558 = vadd.f32 %v3342, %v3557
        %v3559 = vpop.f32.mrb[0].mxu0
        %v3560 = vpop.f32.mrb[0].mxu0
        %v3561 = vadd.f32 %v3345, %v3560
        %v3562 = vpop.f32.mrb[0].mxu0
        %3563 = vmatprep.mubr.bf16.mxu0 %v1933
        %3564 = vmatmul.mubr.bf16.gmra.mrb[0].mxu0 %v1973
        %v3565 = vpop.f32.mrb[0].mxu0
        %v3566 = vadd.f32 %v3350, %v3565
        %v3567 = vpop.f32.mrb[0].mxu0
        %v3568 = vpop.f32.mrb[0].mxu0
        %v3569 = vadd.f32 %v3353, %v3568
        %v3570 = vpop.f32.mrb[0].mxu0
        %3571 = vmatprep.mubr.bf16.mxu0 %v1981
        %3572 = vmatmul.mubr.bf16.gmra.mrb[0].mxu0 %v2021
        %v3573 = vpop.f32.mrb[0].mxu0
        %v3574 = vadd.f32 %v3358, %v3573
        %v3575 = vpop.f32.mrb[0].mxu0
        %v3576 = vpop.f32.mrb[0].mxu0
        %v3577 = vadd.f32 %v3361, %v3576
        %v3578 = vpop.f32.mrb[0].mxu0
        %3579 = vmatprep.mubr.bf16.mxu0 %v2029
        %3580 = vmatmul.mubr.bf16.gmra.mrb[0].mxu0 %v2069
        %v3581 = vpop.f32.mrb[0].mxu0
        %v3582 = vadd.f32 %v3366, %v3581
        %v3583 = vpop.f32.mrb[0].mxu0
        %v3584 = vpop.f32.mrb[0].mxu0
        %v3585 = vadd.f32 %v3369, %v3584
        %v3586 = vpop.f32.mrb[0].mxu0
        %3587 = vmatprep.mubr.bf16.mxu0 %v2077
        %3588 = vmatmul.mubr.bf16.gmra.mrb[0].mxu0 %v2117
        %v3589 = vpop.f32.mrb[0].mxu0
        %v3590 = vadd.f32 %v3374, %v3589
        %v3591 = vpop.f32.mrb[0].mxu0
        %v3592 = vpop.f32.mrb[0].mxu0
        %v3593 = vadd.f32 %v3377, %v3592
        %v3594 = vpop.f32.mrb[0].mxu0
        %3595 = vmatprep.mubr.bf16.mxu0 %v2125
        %3596 = vmatmul.mubr.bf16.gmra.mrb[0].mxu0 %v2165
        %v3597 = vpop.f32.mrb[0].mxu0
        %v3598 = vadd.f32 %v3382, %v3597
        %v3599 = vpop.f32.mrb[0].mxu0
        %v3600 = vpop.f32.mrb[0].mxu0
        %v3601 = vadd.f32 %v3385, %v3600
        %v3602 = vpop.f32.mrb[0].mxu0
        %3603 = vmatprep.mubr.bf16.mxu0 %v2173
        %3604 = vmatmul.mubr.bf16.gmra.mrb[0].mxu0 %v2213
        %v3605 = vpop.f32.mrb[0].mxu0
        %v3606 = vadd.f32 %v3390, %v3605
        %v3607 = vpop.f32.mrb[0].mxu0
        %v3608 = vpop.f32.mrb[0].mxu0
        %v3609 = vadd.f32 %v3393, %v3608
        %v3610 = vpop.f32.mrb[0].mxu0
        %3611 = vmatprep.mubr.bf16.mxu0 %v2271
        %3612 = vmatmul.mubr.bf16.gmra.mrb[0].mxu0 %v2266
        %v3613 = vpop.f32.mrb[0].mxu0
        %v3614 = vadd.f32 %v3398, %v3613
        %v3615 = vpop.f32.mrb[0].mxu0
        %v3616 = vpop.f32.mrb[0].mxu0
        %v3617 = vadd.f32 %v3401, %v3616
        %v3618 = vpop.f32.mrb[0].mxu0
        %3619 = vmatprep.mubr.bf16.mxu0 %v2335
        %3620 = vmatmul.mubr.bf16.gmra.mrb[0].mxu0 %v2327
        %v3621 = vpop.f32.mrb[0].mxu0
        %v3622 = vadd.f32 %v3406, %v3621
        %v3623 = vpop.f32.mrb[0].mxu0
        %v3624 = vpop.f32.mrb[0].mxu0
        %v3625 = vadd.f32 %v3409, %v3624
        %v3626 = vpop.f32.mrb[0].mxu0
        %3627 = vmatprep.mubr.bf16.mxu0 %v2374
        %3628 = vmatmul.mubr.bf16.gmra.mrb[0].mxu0 %v2371
        %v3629 = vpop.f32.mrb[0].mxu0
        %v3630 = vadd.f32 %v3414, %v3629
        %v3631 = vpop.f32.mrb[0].mxu0
        %v3632 = vpop.f32.mrb[0].mxu0
        %v3633 = vpop.f32.mrb[0].mxu0
        %3634 = vdwg.mxu0
        %3635 = vmatprep.subr.bf16.mxu0 0
        %3636 = vmatpush1.bf16.msra.mxu0 %v2891
        %3637 = vmatprep.subr.bf16.mxu0 0
        %3638 = vmatpush1.bf16.msra.mxu0 %v2892
        %3639 = vmatprep.subr.bf16.mxu0 0
        %3640 = vmatpush1.bf16.msra.mxu0 %v2893
        %3641 = vmatprep.subr.bf16.mxu0 0
        %3642 = vmatpush1.bf16.msra.mxu0 %v2894
        %3643 = vmatprep.subr.bf16.mxu0 0
        %3644 = vmatpush1.bf16.msra.mxu0 %v2895
        %3645 = vmatprep.subr.bf16.mxu0 0
        %3646 = vmatpush1.bf16.msra.mxu0 %v2896
        %3647 = vmatprep.subr.bf16.mxu0 0
        %3648 = vmatpush1.bf16.msra.mxu0 %v2897
        %3649 = vmatprep.subr.bf16.mxu0 0
        %3650 = vmatpush1.bf16.msra.mxu0 %v2898
        %3651 = vmatprep.subr.bf16.mxu0 0
        %3652 = vmatpush1.bf16.msra.mxu0 %v2899
        %3653 = vmatprep.subr.bf16.mxu0 0
        %3654 = vmatpush1.bf16.msra.mxu0 %v2900
        %3655 = vmatprep.subr.bf16.mxu0 0
        %3656 = vmatpush1.bf16.msra.mxu0 %v2901
        %3657 = vmatprep.subr.bf16.mxu0 0
        %3658 = vmatpush1.bf16.msra.mxu0 %v2902
        %3659 = vmatprep.subr.bf16.mxu0 0
        %3660 = vmatpush1.bf16.msra.mxu0 %v2903
        %3661 = vmatprep.subr.bf16.mxu0 0
        %3662 = vmatpush1.bf16.msra.mxu0 %v2904
        %3663 = vmatprep.subr.bf16.mxu0 0
        %3664 = vmatpush1.bf16.msra.mxu0 %v2905
        %3665 = vmatprep.subr.bf16.mxu0 0
        %3666 = vmatpush1.bf16.msra.mxu0 %v2906
        %3667 = vmatprep.mubr.bf16.mxu0 %v1305
        %3668 = vmatmul.mubr.bf16.gmra.mrb[0].mxu0 %v1293
        %v3669 = vpop.f32.mrb[0].mxu0
        %v3670 = vadd.f32 %v3454, %v3669
        %v3671 = vpop.f32.mrb[0].mxu0
        %v3672 = vpop.f32.mrb[0].mxu0
        %v3673 = vadd.f32 %v3457, %v3672
        %v3674 = vpop.f32.mrb[0].mxu0
        %3675 = vmatprep.mubr.bf16.mxu0 %v1365
        %3676 = vmatmul.mubr.bf16.gmra.mrb[0].mxu0 %v1357
        %v3677 = vpop.f32.mrb[0].mxu0
        %v3678 = vadd.f32 %v3462, %v3677
        %v3679 = vpop.f32.mrb[0].mxu0
        %v3680 = vpop.f32.mrb[0].mxu0
        %v3681 = vadd.f32 %v3465, %v3680
        %v3682 = vpop.f32.mrb[0].mxu0
        %3683 = vmatprep.mubr.bf16.mxu0 %v1413
        %3684 = vmatmul.mubr.bf16.gmra.mrb[0].mxu0 %v1405
        %v3685 = vpop.f32.mrb[0].mxu0
        %v3686 = vadd.f32 %v3470, %v3685
        %v3687 = vpop.f32.mrb[0].mxu0
        %v3688 = vpop.f32.mrb[0].mxu0
        %v3689 = vadd.f32 %v3473, %v3688
        %v3690 = vpop.f32.mrb[0].mxu0
        %3691 = vmatprep.mubr.bf16.mxu0 %v1461
        %3692 = vmatmul.mubr.bf16.gmra.mrb[0].mxu0 %v1453
        %v3693 = vpop.f32.mrb[0].mxu0
        %v3694 = vadd.f32 %v3478, %v3693
        %v3695 = vpop.f32.mrb[0].mxu0
        %v3696 = vpop.f32.mrb[0].mxu0
        %v3697 = vadd.f32 %v3481, %v3696
        %v3698 = vpop.f32.mrb[0].mxu0
        %3699 = vmatprep.mubr.bf16.mxu0 %v1509
        %3700 = vmatmul.mubr.bf16.gmra.mrb[0].mxu0 %v1501
        %v3701 = vpop.f32.mrb[0].mxu0
        %v3702 = vadd.f32 %v3486, %v3701
        %v3703 = vpop.f32.mrb[0].mxu0
        %v3704 = vpop.f32.mrb[0].mxu0
        %v3705 = vadd.f32 %v3489, %v3704
        %v3706 = vpop.f32.mrb[0].mxu0
        %3707 = vmatprep.mubr.bf16.mxu0 %v1557
        %3708 = vmatmul.mubr.bf16.gmra.mrb[0].mxu0 %v1549
        %v3709 = vpop.f32.mrb[0].mxu0
        %v3710 = vadd.f32 %v3494, %v3709
        %v3711 = vpop.f32.mrb[0].mxu0
        %v3712 = vpop.f32.mrb[0].mxu0
        %v3713 = vadd.f32 %v3497, %v3712
        %v3714 = vpop.f32.mrb[0].mxu0
        %3715 = vmatprep.mubr.bf16.mxu0 %v1605
        %3716 = vmatmul.mubr.bf16.gmra.mrb[0].mxu0 %v1597
        %v3717 = vpop.f32.mrb[0].mxu0
        %v3718 = vadd.f32 %v3502, %v3717
        %v3719 = vpop.f32.mrb[0].mxu0
        %v3720 = vpop.f32.mrb[0].mxu0
        %v3721 = vadd.f32 %v3505, %v3720
        %v3722 = vpop.f32.mrb[0].mxu0
        %3723 = vmatprep.mubr.bf16.mxu0 %v1653
        %3724 = vmatmul.mubr.bf16.gmra.mrb[0].mxu0 %v1645
        %v3725 = vpop.f32.mrb[0].mxu0
        %v3726 = vadd.f32 %v3510, %v3725
        %v3727 = vpop.f32.mrb[0].mxu0
        %v3728 = vpop.f32.mrb[0].mxu0
        %v3729 = vadd.f32 %v3513, %v3728
        %v3730 = vpop.f32.mrb[0].mxu0
        %3731 = vmatprep.mubr.bf16.mxu0 %v1701
        %3732 = vmatmul.mubr.bf16.gmra.mrb[0].mxu0 %v1693
        %v3733 = vpop.f32.mrb[0].mxu0
        %v3734 = vadd.f32 %v3518, %v3733
        %v3735 = vpop.f32.mrb[0].mxu0
        %v3736 = vpop.f32.mrb[0].mxu0
        %v3737 = vadd.f32 %v3521, %v3736
        %v3738 = vpop.f32.mrb[0].mxu0
        %3739 = vmatprep.mubr.bf16.mxu0 %v1749
        %3740 = vmatmul.mubr.bf16.gmra.mrb[0].mxu0 %v1741
        %v3741 = vpop.f32.mrb[0].mxu0
        %v3742 = vadd.f32 %v3526, %v3741
        %v3743 = vpop.f32.mrb[0].mxu0
        %v3744 = vpop.f32.mrb[0].mxu0
        %v3745 = vadd.f32 %v3529, %v3744
        %v3746 = vpop.f32.mrb[0].mxu0
        %3747 = vmatprep.mubr.bf16.mxu0 %v1797
        %3748 = vmatmul.mubr.bf16.gmra.mrb[0].mxu0 %v1789
        %v3749 = vpop.f32.mrb[0].mxu0
        %v3750 = vadd.f32 %v3534, %v3749
        %v3751 = vpop.f32.mrb[0].mxu0
        %v3752 = vpop.f32.mrb[0].mxu0
        %v3753 = vadd.f32 %v3537, %v3752
        %v3754 = vpop.f32.mrb[0].mxu0
        %3755 = vmatprep.mubr.bf16.mxu0 %v1845
        %3756 = vmatmul.mubr.bf16.gmra.mrb[0].mxu0 %v1837
        %v3757 = vpop.f32.mrb[0].mxu0
        %v3758 = vadd.f32 %v3542, %v3757
        %v3759 = vpop.f32.mrb[0].mxu0
        %v3760 = vpop.f32.mrb[0].mxu0
        %v3761 = vadd.f32 %v3545, %v3760
        %v3762 = vpop.f32.mrb[0].mxu0
        %3763 = vmatprep.mubr.bf16.mxu0 %v1893
        %3764 = vmatmul.mubr.bf16.gmra.mrb[0].mxu0 %v1885
        %v3765 = vpop.f32.mrb[0].mxu0
        %v3766 = vadd.f32 %v3550, %v3765
        %v3767 = vpop.f32.mrb[0].mxu0
        %v3768 = vpop.f32.mrb[0].mxu0
        %v3769 = vadd.f32 %v3553, %v3768
        %v3770 = vpop.f32.mrb[0].mxu0
        %3771 = vmatprep.mubr.bf16.mxu0 %v1941
        %3772 = vmatmul.mubr.bf16.gmra.mrb[0].mxu0 %v1933
        %v3773 = vpop.f32.mrb[0].mxu0
        %v3774 = vadd.f32 %v3558, %v3773
        %v3775 = vpop.f32.mrb[0].mxu0
        %v3776 = vpop.f32.mrb[0].mxu0
        %v3777 = vadd.f32 %v3561, %v3776
        %v3778 = vpop.f32.mrb[0].mxu0
        %3779 = vmatprep.mubr.bf16.mxu0 %v1989
        %3780 = vmatmul.mubr.bf16.gmra.mrb[0].mxu0 %v1981
        %v3781 = vpop.f32.mrb[0].mxu0
        %v3782 = vadd.f32 %v3566, %v3781
        %v3783 = vpop.f32.mrb[0].mxu0
        %v3784 = vpop.f32.mrb[0].mxu0
        %v3785 = vadd.f32 %v3569, %v3784
        %v3786 = vpop.f32.mrb[0].mxu0
        %3787 = vmatprep.mubr.bf16.mxu0 %v2037
        %3788 = vmatmul.mubr.bf16.gmra.mrb[0].mxu0 %v2029
        %v3789 = vpop.f32.mrb[0].mxu0
        %v3790 = vadd.f32 %v3574, %v3789
        %v3791 = vpop.f32.mrb[0].mxu0
        %v3792 = vpop.f32.mrb[0].mxu0
        %v3793 = vadd.f32 %v3577, %v3792
        %v3794 = vpop.f32.mrb[0].mxu0
        %3795 = vmatprep.mubr.bf16.mxu0 %v2085
        %3796 = vmatmul.mubr.bf16.gmra.mrb[0].mxu0 %v2077
        %v3797 = vpop.f32.mrb[0].mxu0
        %v3798 = vadd.f32 %v3582, %v3797
        %v3799 = vpop.f32.mrb[0].mxu0
        %v3800 = vpop.f32.mrb[0].mxu0
        %v3801 = vadd.f32 %v3585, %v3800
        %v3802 = vpop.f32.mrb[0].mxu0
        %3803 = vmatprep.mubr.bf16.mxu0 %v2133
        %3804 = vmatmul.mubr.bf16.gmra.mrb[0].mxu0 %v2125
        %v3805 = vpop.f32.mrb[0].mxu0
        %v3806 = vadd.f32 %v3590, %v3805
        %v3807 = vpop.f32.mrb[0].mxu0
        %v3808 = vpop.f32.mrb[0].mxu0
        %v3809 = vadd.f32 %v3593, %v3808
        %v3810 = vpop.f32.mrb[0].mxu0
        %3811 = vmatprep.mubr.bf16.mxu0 %v2181
        %3812 = vmatmul.mubr.bf16.gmra.mrb[0].mxu0 %v2173
        %v3813 = vpop.f32.mrb[0].mxu0
        %v3814 = vadd.f32 %v3598, %v3813
        %v3815 = vpop.f32.mrb[0].mxu0
        %v3816 = vpop.f32.mrb[0].mxu0
        %v3817 = vadd.f32 %v3601, %v3816
        %v3818 = vpop.f32.mrb[0].mxu0
        %3819 = vmatprep.mubr.bf16.mxu0 %v2229
        %3820 = vmatmul.mubr.bf16.gmra.mrb[0].mxu0 %v2221
        %v3821 = vpop.f32.mrb[0].mxu0
        %v3822 = vadd.f32 %v3606, %v3821
        %v3823 = vpop.f32.mrb[0].mxu0
        %v3824 = vpop.f32.mrb[0].mxu0
        %v3825 = vadd.f32 %v3609, %v3824
        %v3826 = vpop.f32.mrb[0].mxu0
        %3827 = vmatprep.mubr.bf16.mxu0 %v2287
        %3828 = vmatmul.mubr.bf16.gmra.mrb[0].mxu0 %v2279
        %v3829 = vpop.f32.mrb[0].mxu0
        %v3830 = vadd.f32 %v3614, %v3829
        %v3831 = vpop.f32.mrb[0].mxu0
        %v3832 = vpop.f32.mrb[0].mxu0
        %v3833 = vadd.f32 %v3617, %v3832
        %v3834 = vpop.f32.mrb[0].mxu0
        %3835 = vmatprep.mubr.bf16.mxu0 %v2351
        %3836 = vmatmul.mubr.bf16.gmra.mrb[0].mxu0 %v2343
        %v3837 = vpop.f32.mrb[0].mxu0
        %v3838 = vadd.f32 %v3622, %v3837
        %v3839 = vpop.f32.mrb[0].mxu0
        %v3840 = vpop.f32.mrb[0].mxu0
        %v3841 = vadd.f32 %v3625, %v3840
        %v3842 = vpop.f32.mrb[0].mxu0
        %3843 = vmatprep.mubr.bf16.mxu0 %v2380
        %3844 = vmatmul.mubr.bf16.gmra.mrb[0].mxu0 %v2377
        %v3845 = vpop.f32.mrb[0].mxu0
        %v3846 = vadd.f32 %v3630, %v3845
        %v3847 = vpop.f32.mrb[0].mxu0
        %v3848 = vpop.f32.mrb[0].mxu0
        %v3849 = vpop.f32.mrb[0].mxu0
        %3850 = vdwg.mxu0
        %3851 = vmatprep.subr.bf16.mxu0 0
        %3852 = vmatpush1.bf16.msra.mxu0 %v2907
        %3853 = vmatprep.subr.bf16.mxu0 0
        %3854 = vmatpush1.bf16.msra.mxu0 %v2908
        %3855 = vmatprep.subr.bf16.mxu0 0
        %3856 = vmatpush1.bf16.msra.mxu0 %v2909
        %3857 = vmatprep.subr.bf16.mxu0 0
        %3858 = vmatpush1.bf16.msra.mxu0 %v2910
        %3859 = vmatprep.subr.bf16.mxu0 0
        %3860 = vmatpush1.bf16.msra.mxu0 %v2911
        %3861 = vmatprep.subr.bf16.mxu0 0
        %3862 = vmatpush1.bf16.msra.mxu0 %v2912
        %3863 = vmatprep.subr.bf16.mxu0 0
        %3864 = vmatpush1.bf16.msra.mxu0 %v2913
        %3865 = vmatprep.subr.bf16.mxu0 0
        %3866 = vmatpush1.bf16.msra.mxu0 %v2914
        %3867 = vmatprep.subr.bf16.mxu0 0
        %3868 = vmatpush1.bf16.msra.mxu0 0
        %3869 = vmatprep.subr.bf16.mxu0 0
        %3870 = vmatpush1.bf16.msra.mxu0 0
        %3871 = vmatprep.subr.bf16.mxu0 0
        %3872 = vmatpush1.bf16.msra.mxu0 0
        %3873 = vmatprep.subr.bf16.mxu0 0
        %3874 = vmatpush1.bf16.msra.mxu0 0
        %3875 = vmatprep.subr.bf16.mxu0 0
        %3876 = vmatpush1.bf16.msra.mxu0 0
        %3877 = vmatprep.subr.bf16.mxu0 0
        %3878 = vmatpush1.bf16.msra.mxu0 0
        %3879 = vmatprep.subr.bf16.mxu0 0
        %3880 = vmatpush1.bf16.msra.mxu0 0
        %3881 = vmatprep.subr.bf16.mxu0 0
        %3882 = vmatpush1.bf16.msra.mxu0 0
        %3883 = vmatprep.mubr.bf16.mxu0 0
        %3884 = vmatmul.mubr.bf16.gmra.mrb[0].mxu0 %v1317
        %v3885 = vpop.f32.mrb[0].mxu0
        %v3886 = vadd.f32 %v3670, %v3885
        %v3887 = vpop.f32.mrb[0].mxu0
        %v3888 = vpop.f32.mrb[0].mxu0
        %v3889 = vadd.f32 %v3673, %v3888
        %v3890 = vpop.f32.mrb[0].mxu0
        %3891 = vmatprep.mubr.bf16.mxu0 0
        %3892 = vmatmul.mubr.bf16.gmra.mrb[0].mxu0 %v1373
        %v3893 = vpop.f32.mrb[0].mxu0
        %v3894 = vadd.f32 %v3678, %v3893
        %v3895 = vpop.f32.mrb[0].mxu0
        %v3896 = vpop.f32.mrb[0].mxu0
        %v3897 = vadd.f32 %v3681, %v3896
        %v3898 = vpop.f32.mrb[0].mxu0
        %3899 = vmatprep.mubr.bf16.mxu0 0
        %3900 = vmatmul.mubr.bf16.gmra.mrb[0].mxu0 %v1421
        %v3901 = vpop.f32.mrb[0].mxu0
        %v3902 = vadd.f32 %v3686, %v3901
        %v3903 = vpop.f32.mrb[0].mxu0
        %v3904 = vpop.f32.mrb[0].mxu0
        %v3905 = vadd.f32 %v3689, %v3904
        %v3906 = vpop.f32.mrb[0].mxu0
        %3907 = vmatprep.mubr.bf16.mxu0 0
        %3908 = vmatmul.mubr.bf16.gmra.mrb[0].mxu0 %v1469
        %v3909 = vpop.f32.mrb[0].mxu0
        %v3910 = vadd.f32 %v3694, %v3909
        %v3911 = vpop.f32.mrb[0].mxu0
        %v3912 = vpop.f32.mrb[0].mxu0
        %v3913 = vadd.f32 %v3697, %v3912
        %v3914 = vpop.f32.mrb[0].mxu0
        %3915 = vmatprep.mubr.bf16.mxu0 0
        %3916 = vmatmul.mubr.bf16.gmra.mrb[0].mxu0 %v1517
        %v3917 = vpop.f32.mrb[0].mxu0
        %v3918 = vadd.f32 %v3702, %v3917
        %v3919 = vpop.f32.mrb[0].mxu0
        %v3920 = vpop.f32.mrb[0].mxu0
        %v3921 = vadd.f32 %v3705, %v3920
        %v3922 = vpop.f32.mrb[0].mxu0
        %3923 = vmatprep.mubr.bf16.mxu0 0
        %3924 = vmatmul.mubr.bf16.gmra.mrb[0].mxu0 %v1565
        %v3925 = vpop.f32.mrb[0].mxu0
        %v3926 = vadd.f32 %v3710, %v3925
        %v3927 = vpop.f32.mrb[0].mxu0
        %v3928 = vpop.f32.mrb[0].mxu0
        %v3929 = vadd.f32 %v3713, %v3928
        %v3930 = vpop.f32.mrb[0].mxu0
        %3931 = vmatprep.mubr.bf16.mxu0 0
        %3932 = vmatmul.mubr.bf16.gmra.mrb[0].mxu0 %v1613
        %v3933 = vpop.f32.mrb[0].mxu0
        %v3934 = vadd.f32 %v3718, %v3933
        %v3935 = vpop.f32.mrb[0].mxu0
        %v3936 = vpop.f32.mrb[0].mxu0
        %v3937 = vadd.f32 %v3721, %v3936
        %v3938 = vpop.f32.mrb[0].mxu0
        %3939 = vmatprep.mubr.bf16.mxu0 0
        %3940 = vmatmul.mubr.bf16.gmra.mrb[0].mxu0 %v1661
        %v3941 = vpop.f32.mrb[0].mxu0
        %v3942 = vadd.f32 %v3726, %v3941
        %v3943 = vpop.f32.mrb[0].mxu0
        %v3944 = vpop.f32.mrb[0].mxu0
        %v3945 = vadd.f32 %v3729, %v3944
        %v3946 = vpop.f32.mrb[0].mxu0
        %3947 = vmatprep.mubr.bf16.mxu0 0
        %3948 = vmatmul.mubr.bf16.gmra.mrb[0].mxu0 %v1709
        %v3949 = vpop.f32.mrb[0].mxu0
        %v3950 = vadd.f32 %v3734, %v3949
        %v3951 = vpop.f32.mrb[0].mxu0
        %v3952 = vpop.f32.mrb[0].mxu0
        %v3953 = vadd.f32 %v3737, %v3952
        %v3954 = vpop.f32.mrb[0].mxu0
        %3955 = vmatprep.mubr.bf16.mxu0 0
        %3956 = vmatmul.mubr.bf16.gmra.mrb[0].mxu0 %v1757
        %v3957 = vpop.f32.mrb[0].mxu0
        %v3958 = vadd.f32 %v3742, %v3957
        %v3959 = vpop.f32.mrb[0].mxu0
        %v3960 = vpop.f32.mrb[0].mxu0
        %v3961 = vadd.f32 %v3745, %v3960
        %v3962 = vpop.f32.mrb[0].mxu0
        %3963 = vmatprep.mubr.bf16.mxu0 0
        %3964 = vmatmul.mubr.bf16.gmra.mrb[0].mxu0 %v1805
        %v3965 = vpop.f32.mrb[0].mxu0
        %v3966 = vadd.f32 %v3750, %v3965
        %v3967 = vpop.f32.mrb[0].mxu0
        %v3968 = vpop.f32.mrb[0].mxu0
        %v3969 = vadd.f32 %v3753, %v3968
        %v3970 = vpop.f32.mrb[0].mxu0
        %3971 = vmatprep.mubr.bf16.mxu0 0
        %3972 = vmatmul.mubr.bf16.gmra.mrb[0].mxu0 %v1853
        %v3973 = vpop.f32.mrb[0].mxu0
        %v3974 = vadd.f32 %v3758, %v3973
        %v3975 = vpop.f32.mrb[0].mxu0
        %v3976 = vpop.f32.mrb[0].mxu0
        %v3977 = vadd.f32 %v3761, %v3976
        %v3978 = vpop.f32.mrb[0].mxu0
        %3979 = vmatprep.mubr.bf16.mxu0 0
        %3980 = vmatmul.mubr.bf16.gmra.mrb[0].mxu0 %v1901
        %v3981 = vpop.f32.mrb[0].mxu0
        %v3982 = vadd.f32 %v3766, %v3981
        %v3983 = vpop.f32.mrb[0].mxu0
        %v3984 = vpop.f32.mrb[0].mxu0
        %v3985 = vadd.f32 %v3769, %v3984
        %v3986 = vpop.f32.mrb[0].mxu0
        %3987 = vmatprep.mubr.bf16.mxu0 0
        %3988 = vmatmul.mubr.bf16.gmra.mrb[0].mxu0 %v1949
        %v3989 = vpop.f32.mrb[0].mxu0
        %v3990 = vadd.f32 %v3774, %v3989
        %v3991 = vpop.f32.mrb[0].mxu0
        %v3992 = vpop.f32.mrb[0].mxu0
        %v3993 = vadd.f32 %v3777, %v3992
        %v3994 = vpop.f32.mrb[0].mxu0
        %3995 = vmatprep.mubr.bf16.mxu0 0
        %3996 = vmatmul.mubr.bf16.gmra.mrb[0].mxu0 %v1997
        %v3997 = vpop.f32.mrb[0].mxu0
        %v3998 = vadd.f32 %v3782, %v3997
        %v3999 = vpop.f32.mrb[0].mxu0
        %v4000 = vpop.f32.mrb[0].mxu0
        %v4001 = vadd.f32 %v3785, %v4000
        %v4002 = vpop.f32.mrb[0].mxu0
        %4003 = vmatprep.mubr.bf16.mxu0 0
        %4004 = vmatmul.mubr.bf16.gmra.mrb[0].mxu0 %v2045
        %v4005 = vpop.f32.mrb[0].mxu0
        %v4006 = vadd.f32 %v3790, %v4005
        %v4007 = vpop.f32.mrb[0].mxu0
        %v4008 = vpop.f32.mrb[0].mxu0
        %v4009 = vadd.f32 %v3793, %v4008
        %v4010 = vpop.f32.mrb[0].mxu0
        %4011 = vmatprep.mubr.bf16.mxu0 0
        %4012 = vmatmul.mubr.bf16.gmra.mrb[0].mxu0 %v2093
        %v4013 = vpop.f32.mrb[0].mxu0
        %v4014 = vadd.f32 %v3798, %v4013
        %v4015 = vpop.f32.mrb[0].mxu0
        %v4016 = vpop.f32.mrb[0].mxu0
        %v4017 = vadd.f32 %v3801, %v4016
        %v4018 = vpop.f32.mrb[0].mxu0
        %4019 = vmatprep.mubr.bf16.mxu0 0
        %4020 = vmatmul.mubr.bf16.gmra.mrb[0].mxu0 %v2141
        %v4021 = vpop.f32.mrb[0].mxu0
        %v4022 = vadd.f32 %v3806, %v4021
        %v4023 = vpop.f32.mrb[0].mxu0
        %v4024 = vpop.f32.mrb[0].mxu0
        %v4025 = vadd.f32 %v3809, %v4024
        %v4026 = vpop.f32.mrb[0].mxu0
        %4027 = vmatprep.mubr.bf16.mxu0 0
        %4028 = vmatmul.mubr.bf16.gmra.mrb[0].mxu0 %v2189
        %v4029 = vpop.f32.mrb[0].mxu0
        %v4030 = vadd.f32 %v3814, %v4029
        %v4031 = vpop.f32.mrb[0].mxu0
        %v4032 = vpop.f32.mrb[0].mxu0
        %v4033 = vadd.f32 %v3817, %v4032
        %v4034 = vpop.f32.mrb[0].mxu0
        %4035 = vmatprep.mubr.bf16.mxu0 0
        %4036 = vmatmul.mubr.bf16.gmra.mrb[0].mxu0 %v2237
        %v4037 = vpop.f32.mrb[0].mxu0
        %v4038 = vadd.f32 %v3822, %v4037
        %v4039 = vpop.f32.mrb[0].mxu0
        %v4040 = vpop.f32.mrb[0].mxu0
        %v4041 = vadd.f32 %v3825, %v4040
        %v4042 = vpop.f32.mrb[0].mxu0
        %4043 = vmatprep.mubr.bf16.mxu0 0
        %4044 = vmatmul.mubr.bf16.gmra.mrb[0].mxu0 %v2295
        %v4045 = vpop.f32.mrb[0].mxu0
        %v4046 = vadd.f32 %v3830, %v4045
        %v4047 = vpop.f32.mrb[0].mxu0
        %v4048 = vpop.f32.mrb[0].mxu0
        %v4049 = vadd.f32 %v3833, %v4048
        %v4050 = vpop.f32.mrb[0].mxu0
        %4051 = vmatprep.mubr.bf16.mxu0 0
        %4052 = vmatmul.mubr.bf16.gmra.mrb[0].mxu0 %v2359
        %v4053 = vpop.f32.mrb[0].mxu0
        %v4054 = vadd.f32 %v3838, %v4053
        %v4055 = vpop.f32.mrb[0].mxu0
        %v4056 = vpop.f32.mrb[0].mxu0
        %v4057 = vadd.f32 %v3841, %v4056
        %v4058 = vpop.f32.mrb[0].mxu0
        %4059 = vmatprep.mubr.bf16.mxu0 0
        %4060 = vmatmul.mubr.bf16.gmra.mrb[0].mxu0 %v2383
        %v4061 = vpop.f32.mrb[0].mxu0
        %v4062 = vadd.f32 %v3846, %v4061
        %v4063 = vpop.f32.mrb[0].mxu0
        %v4064 = vpop.f32.mrb[0].mxu0
        %v4065 = vpop.f32.mrb[0].mxu0
        %4066 = vdwg.mxu0
        %v4067 = vmax.f32 %v3886, 0.0
        %v4068 = vmax.f32 %v3889, 0.0
        %v4069 = vmax.f32 %v3894, 0.0
        %v4070 = vmax.f32 %v3897, 0.0
        %v4071 = vmax.f32 %v3902, 0.0
        %v4072 = vmax.f32 %v3905, 0.0
        %v4073 = vmax.f32 %v3910, 0.0
        %v4074 = vmax.f32 %v3913, 0.0
        %v4075 = vmax.f32 %v3918, 0.0
        %v4076 = vmax.f32 %v3921, 0.0
        %v4077 = vmax.f32 %v3926, 0.0
        %v4078 = vmax.f32 %v3929, 0.0
        %v4079 = vmax.f32 %v3934, 0.0
        %v4080 = vmax.f32 %v3937, 0.0
        %v4081 = vmax.f32 %v3942, 0.0
        %v4082 = vmax.f32 %v3945, 0.0
        %v4083 = vmax.f32 %v3950, 0.0
        %v4084 = vmax.f32 %v3953, 0.0
        %v4085 = vmax.f32 %v3958, 0.0
        %v4086 = vmax.f32 %v3961, 0.0
        %v4087 = vmax.f32 %v3966, 0.0
        %v4088 = vmax.f32 %v3969, 0.0
        %v4089 = vmax.f32 %v3974, 0.0
        %v4090 = vmax.f32 %v3977, 0.0
        %v4091 = vmax.f32 %v3982, 0.0
        %v4092 = vmax.f32 %v3985, 0.0
        %v4093 = vmax.f32 %v3990, 0.0
        %v4094 = vmax.f32 %v3993, 0.0
        %v4095 = vmax.f32 %v3998, 0.0
        %v4096 = vmax.f32 %v4001, 0.0
        %v4097 = vmax.f32 %v4006, 0.0
        %v4098 = vmax.f32 %v4009, 0.0
        %v4099 = vmax.f32 %v4014, 0.0
        %v4100 = vmax.f32 %v4017, 0.0
        %v4101 = vmax.f32 %v4022, 0.0
        %v4102 = vmax.f32 %v4025, 0.0
        %v4103 = vmax.f32 %v4030, 0.0
        %v4104 = vmax.f32 %v4033, 0.0
        %v4105 = vmax.f32 %v4038, 0.0
        %v4106 = vmax.f32 %v4041, 0.0
        %v4107 = vmax.f32 %v4046, 0.0
        %v4108 = vmax.f32 %v4049, 0.0
        %v4109 = vmax.f32 %v4054, 0.0
        %v4110 = vmax.f32 %v4057, 0.0
        %v4111 = vmax.f32 %v4062, 0.0
        %v4112 = vld [vmem:[%s1] sm:$0xff]
        %v4113 = vld [vmem:[%s1 + $0x8] sm:$0xff]
        %v4114 = vld [vmem:[%s1 + $0x10] sm:$0xff]
        %v4115 = vld [vmem:[%s1 + $0x18] sm:$0xff]
        %v4116 = vld [vmem:[%s1 + $0x20] sm:$0xff]
        %v4117 = vld [vmem:[%s1 + $0x28] sm:$0xff]
        %v4118 = vld [vmem:[%s1 + $0x30] sm:$0xff]
        %v4119 = vld [vmem:[%s1 + $0x38] sm:$0xff]
        %v4120 = vld [vmem:[%s1 + $0x40] sm:$0xff]
        %v4121 = vld [vmem:[%s1 + $0x48] sm:$0xff]
        %v4122 = vld [vmem:[%s1 + $0x50] sm:$0xff]
        %v4123 = vld [vmem:[%s1 + $0x58] sm:$0xff]
        %v4124 = vld [vmem:[%s1 + $0x60] sm:$0xff]
        %v4125 = vld [vmem:[%s1 + $0x68] sm:$0xff]
        %v4126 = vld [vmem:[%s1 + $0x70] sm:$0xff]
        %v4127 = vld [vmem:[%s1 + $0x78] sm:$0xff]
        %v4128 = vld [vmem:[%s1 + $0x80] sm:$0xff]
        %v4129 = vld [vmem:[%s1 + $0x88] sm:$0xff]
        %v4130 = vld [vmem:[%s1 + $0x90] sm:$0xff]
        %v4131 = vld [vmem:[%s1 + $0x98] sm:$0xff]
        %v4132 = vld [vmem:[%s1 + $0xa0] sm:$0xff]
        %v4133 = vld [vmem:[%s1 + $0xa8] sm:$0xff]
        %v4134 = vld [vmem:[%s1 + $0xb0] sm:$0xff]
        %v4135 = vld [vmem:[%s1 + $0xb8] sm:$0xff]
        %v4136 = vld [vmem:[%s1 + $0xc0] sm:$0xff]
        %v4137 = vld [vmem:[%s1 + $0xc8] sm:$0xff]
        %v4138 = vld [vmem:[%s1 + $0xd0] sm:$0xff]
        %v4139 = vld [vmem:[%s1 + $0xd8] sm:$0xff]
        %v4140 = vld [vmem:[%s1 + $0xe0] sm:$0xff]
        %v4141 = vld [vmem:[%s1 + $0xe8] sm:$0xff]
        %v4142 = vld [vmem:[%s1 + $0xf0] sm:$0xff]
        %v4143 = vld [vmem:[%s1 + $0xf8] sm:$0xff]
        %v4144 = vld [vmem:[%s1 + $0x100] sm:$0xff]
        %v4145 = vld [vmem:[%s1 + $0x108] sm:$0xff]
        %v4146 = vld [vmem:[%s1 + $0x110] sm:$0xff]
        %v4147 = vld [vmem:[%s1 + $0x118] sm:$0xff]
        %v4148 = vld [vmem:[%s1 + $0x120] sm:$0xff]
        %v4149 = vld [vmem:[%s1 + $0x128] sm:$0xff]
        %v4150 = vld [vmem:[%s1 + $0x130] sm:$0xff]
        %v4151 = vld [vmem:[%s1 + $0x138] sm:$0xff]
        %v4152 = vld [vmem:[%s1 + $0x140] sm:$0xff]
        %v4153 = vld [vmem:[%s1 + $0x148] sm:$0xff]
        %v4154 = vld [vmem:[%s1 + $0x150] sm:$0xff]
        %v4155 = vld [vmem:[%s1 + $0x158] sm:$0xff]
        %v4156 = vld [vmem:[%s1 + $0x160] sm:$0xff]
        %4158 = vset.pattern.permute.xlu0 0
        %4159 = vperm.xlu0 %4158, %v4112
        %v4160 = vpop.permute.xlu0 %4159
        %4163 = vset.pattern.permute.xlu0 0
        %4164 = vperm.xlu0 %4163, %v4113
        %v4165 = vpop.permute.xlu0 %4164
        %4168 = vset.pattern.permute.xlu0 0
        %4169 = vperm.xlu0 %4168, %v4114
        %v4170 = vpop.permute.xlu0 %4169
        %4173 = vset.pattern.permute.xlu0 0
        %4174 = vperm.xlu0 %4173, %v4115
        %v4175 = vpop.permute.xlu0 %4174
        %4178 = vset.pattern.permute.xlu0 0
        %4179 = vperm.xlu0 %4178, %v4116
        %v4180 = vpop.permute.xlu0 %4179
        %4183 = vset.pattern.permute.xlu0 0
        %4184 = vperm.xlu0 %4183, %v4117
        %v4185 = vpop.permute.xlu0 %4184
        %4188 = vset.pattern.permute.xlu0 0
        %4189 = vperm.xlu0 %4188, %v4118
        %v4190 = vpop.permute.xlu0 %4189
        %4193 = vset.pattern.permute.xlu0 0
        %4194 = vperm.xlu0 %4193, %v4119
        %v4195 = vpop.permute.xlu0 %4194
        %4198 = vset.pattern.permute.xlu0 0
        %4199 = vperm.xlu0 %4198, %v4120
        %v4200 = vpop.permute.xlu0 %4199
        %4203 = vset.pattern.permute.xlu0 0
        %4204 = vperm.xlu0 %4203, %v4121
        %v4205 = vpop.permute.xlu0 %4204
        %4208 = vset.pattern.permute.xlu0 0
        %4209 = vperm.xlu0 %4208, %v4122
        %v4210 = vpop.permute.xlu0 %4209
        %4213 = vset.pattern.permute.xlu0 0
        %4214 = vperm.xlu0 %4213, %v4123
        %v4215 = vpop.permute.xlu0 %4214
        %4218 = vset.pattern.permute.xlu0 0
        %4219 = vperm.xlu0 %4218, %v4124
        %v4220 = vpop.permute.xlu0 %4219
        %4223 = vset.pattern.permute.xlu0 0
        %4224 = vperm.xlu0 %4223, %v4125
        %v4225 = vpop.permute.xlu0 %4224
        %4228 = vset.pattern.permute.xlu0 0
        %4229 = vperm.xlu0 %4228, %v4126
        %v4230 = vpop.permute.xlu0 %4229
        %4233 = vset.pattern.permute.xlu0 0
        %4234 = vperm.xlu0 %4233, %v4127
        %v4235 = vpop.permute.xlu0 %4234
        %4238 = vset.pattern.permute.xlu0 0
        %4239 = vperm.xlu0 %4238, %v4128
        %v4240 = vpop.permute.xlu0 %4239
        %4243 = vset.pattern.permute.xlu0 0
        %4244 = vperm.xlu0 %4243, %v4129
        %v4245 = vpop.permute.xlu0 %4244
        %4248 = vset.pattern.permute.xlu0 0
        %4249 = vperm.xlu0 %4248, %v4130
        %v4250 = vpop.permute.xlu0 %4249
        %4253 = vset.pattern.permute.xlu0 0
        %4254 = vperm.xlu0 %4253, %v4131
        %v4255 = vpop.permute.xlu0 %4254
        %4258 = vset.pattern.permute.xlu0 0
        %4259 = vperm.xlu0 %4258, %v4132
        %v4260 = vpop.permute.xlu0 %4259
        %4263 = vset.pattern.permute.xlu0 0
        %4264 = vperm.xlu0 %4263, %v4133
        %v4265 = vpop.permute.xlu0 %4264
        %4268 = vset.pattern.permute.xlu0 0
        %4269 = vperm.xlu0 %4268, %v4134
        %v4270 = vpop.permute.xlu0 %4269
        %4273 = vset.pattern.permute.xlu0 0
        %4274 = vperm.xlu0 %4273, %v4135
        %v4275 = vpop.permute.xlu0 %4274
        %4278 = vset.pattern.permute.xlu0 0
        %4279 = vperm.xlu0 %4278, %v4136
        %v4280 = vpop.permute.xlu0 %4279
        %4283 = vset.pattern.permute.xlu0 0
        %4284 = vperm.xlu0 %4283, %v4137
        %v4285 = vpop.permute.xlu0 %4284
        %4288 = vset.pattern.permute.xlu0 0
        %4289 = vperm.xlu0 %4288, %v4138
        %v4290 = vpop.permute.xlu0 %4289
        %4293 = vset.pattern.permute.xlu0 0
        %4294 = vperm.xlu0 %4293, %v4139
        %v4295 = vpop.permute.xlu0 %4294
        %4298 = vset.pattern.permute.xlu0 0
        %4299 = vperm.xlu0 %4298, %v4140
        %v4300 = vpop.permute.xlu0 %4299
        %4303 = vset.pattern.permute.xlu0 0
        %4304 = vperm.xlu0 %4303, %v4141
        %v4305 = vpop.permute.xlu0 %4304
        %4308 = vset.pattern.permute.xlu0 0
        %4309 = vperm.xlu0 %4308, %v4142
        %v4310 = vpop.permute.xlu0 %4309
        %4313 = vset.pattern.permute.xlu0 0
        %4314 = vperm.xlu0 %4313, %v4143
        %v4315 = vpop.permute.xlu0 %4314
        %4318 = vset.pattern.permute.xlu0 0
        %4319 = vperm.xlu0 %4318, %v4144
        %v4320 = vpop.permute.xlu0 %4319
        %4323 = vset.pattern.permute.xlu0 0
        %4324 = vperm.xlu0 %4323, %v4145
        %v4325 = vpop.permute.xlu0 %4324
        %4328 = vset.pattern.permute.xlu0 0
        %4329 = vperm.xlu0 %4328, %v4146
        %v4330 = vpop.permute.xlu0 %4329
        %4333 = vset.pattern.permute.xlu0 0
        %4334 = vperm.xlu0 %4333, %v4147
        %v4335 = vpop.permute.xlu0 %4334
        %4338 = vset.pattern.permute.xlu0 0
        %4339 = vperm.xlu0 %4338, %v4148
        %v4340 = vpop.permute.xlu0 %4339
        %4343 = vset.pattern.permute.xlu0 0
        %4344 = vperm.xlu0 %4343, %v4149
        %v4345 = vpop.permute.xlu0 %4344
        %4348 = vset.pattern.permute.xlu0 0
        %4349 = vperm.xlu0 %4348, %v4150
        %v4350 = vpop.permute.xlu0 %4349
        %4353 = vset.pattern.permute.xlu0 0
        %4354 = vperm.xlu0 %4353, %v4151
        %v4355 = vpop.permute.xlu0 %4354
        %4358 = vset.pattern.permute.xlu0 0
        %4359 = vperm.xlu0 %4358, %v4152
        %v4360 = vpop.permute.xlu0 %4359
        %4363 = vset.pattern.permute.xlu0 0
        %4364 = vperm.xlu0 %4363, %v4153
        %v4365 = vpop.permute.xlu0 %4364
        %4368 = vset.pattern.permute.xlu0 0
        %4369 = vperm.xlu0 %4368, %v4154
        %v4370 = vpop.permute.xlu0 %4369
        %4373 = vset.pattern.permute.xlu0 0
        %4374 = vperm.xlu0 %4373, %v4155
        %v4375 = vpop.permute.xlu0 %4374
        %4378 = vset.pattern.permute.xlu0 0
        %4379 = vperm.xlu0 %4378, %v4156
        %v4380 = vpop.permute.xlu0 %4379
        %v4382 = vmul.f32 %v4067, %v4160
        %v4383 = vmul.f32 %v4068, %v4165
        %v4384 = vmul.f32 %v4069, %v4170
        %v4385 = vmul.f32 %v4070, %v4175
        %v4386 = vmul.f32 %v4071, %v4180
        %v4387 = vmul.f32 %v4072, %v4185
        %v4388 = vmul.f32 %v4073, %v4190
        %v4389 = vmul.f32 %v4074, %v4195
        %v4390 = vmul.f32 %v4075, %v4200
        %v4391 = vmul.f32 %v4076, %v4205
        %v4392 = vmul.f32 %v4077, %v4210
        %v4393 = vmul.f32 %v4078, %v4215
        %v4394 = vmul.f32 %v4079, %v4220
        %v4395 = vmul.f32 %v4080, %v4225
        %v4396 = vmul.f32 %v4081, %v4230
        %v4397 = vmul.f32 %v4082, %v4235
        %v4398 = vmul.f32 %v4083, %v4240
        %v4399 = vmul.f32 %v4084, %v4245
        %v4400 = vmul.f32 %v4085, %v4250
        %v4401 = vmul.f32 %v4086, %v4255
        %v4402 = vmul.f32 %v4087, %v4260
        %v4403 = vmul.f32 %v4088, %v4265
        %v4404 = vmul.f32 %v4089, %v4270
        %v4405 = vmul.f32 %v4090, %v4275
        %v4406 = vmul.f32 %v4091, %v4280
        %v4407 = vmul.f32 %v4092, %v4285
        %v4408 = vmul.f32 %v4093, %v4290
        %v4409 = vmul.f32 %v4094, %v4295
        %v4410 = vmul.f32 %v4095, %v4300
        %v4411 = vmul.f32 %v4096, %v4305
        %v4412 = vmul.f32 %v4097, %v4310
        %v4413 = vmul.f32 %v4098, %v4315
        %v4414 = vmul.f32 %v4099, %v4320
        %v4415 = vmul.f32 %v4100, %v4325
        %v4416 = vmul.f32 %v4101, %v4330
        %v4417 = vmul.f32 %v4102, %v4335
        %v4418 = vmul.f32 %v4103, %v4340
        %v4419 = vmul.f32 %v4104, %v4345
        %v4420 = vmul.f32 %v4105, %v4350
        %v4421 = vmul.f32 %v4106, %v4355
        %v4422 = vmul.f32 %v4107, %v4360
        %v4423 = vmul.f32 %v4108, %v4365
        %v4424 = vmul.f32 %v4109, %v4370
        %v4425 = vmul.f32 %v4110, %v4375
        %v4426 = vmul.f32 %v4111, %v4380
        %v4427 = vpack.c.bf16 %v4383, %v4382
        %v4428 = vpack.c.bf16 %v4385, %v4384
        %v4429 = vpack.c.bf16 %v4387, %v4386
        %v4430 = vpack.c.bf16 %v4389, %v4388
        %v4431 = vpack.c.bf16 %v4391, %v4390
        %v4432 = vpack.c.bf16 %v4393, %v4392
        %v4433 = vpack.c.bf16 %v4395, %v4394
        %v4434 = vpack.c.bf16 %v4397, %v4396
        %v4435 = vpack.c.bf16 %v4399, %v4398
        %v4436 = vpack.c.bf16 %v4401, %v4400
        %v4437 = vpack.c.bf16 %v4403, %v4402
        %v4438 = vpack.c.bf16 %v4405, %v4404
        %v4439 = vpack.c.bf16 %v4407, %v4406
        %v4440 = vpack.c.bf16 %v4409, %v4408
        %v4441 = vpack.c.bf16 %v4411, %v4410
        %v4442 = vpack.c.bf16 %v4413, %v4412
        %v4443 = vpack.c.bf16 %v4415, %v4414
        %v4444 = vpack.c.bf16 %v4417, %v4416
        %v4445 = vpack.c.bf16 %v4419, %v4418
        %v4446 = vpack.c.bf16 %v4421, %v4420
        %v4447 = vpack.c.bf16 %v4423, %v4422
        %v4448 = vpack.c.bf16 %v4425, %v4424
        %v4449 = vpack.c.bf16 %v4426, %v4426
        %v4473 = vunpack.c.l.b16 %v4427
        %v4474 = vunpack.c.h.b16 %v4427
        %v4475 = vunpack.c.l.b16 %v4428
        %v4476 = vunpack.c.h.b16 %v4428
        %v4477 = vunpack.c.l.b16 %v4429
        %v4478 = vunpack.c.h.b16 %v4429
        %v4479 = vunpack.c.l.b16 %v4430
        %v4480 = vunpack.c.h.b16 %v4430
        %v4481 = vunpack.c.l.b16 %v4431
        %v4482 = vunpack.c.h.b16 %v4431
        %v4483 = vunpack.c.l.b16 %v4432
        %v4484 = vunpack.c.h.b16 %v4432
        %v4485 = vunpack.c.l.b16 %v4433
        %v4486 = vunpack.c.h.b16 %v4433
        %v4487 = vunpack.c.l.b16 %v4434
        %v4488 = vunpack.c.h.b16 %v4434
        %v4489 = vunpack.c.l.b16 %v4435
        %v4490 = vunpack.c.h.b16 %v4435
        %v4491 = vunpack.c.l.b16 %v4436
        %v4492 = vunpack.c.h.b16 %v4436
        %v4493 = vunpack.c.l.b16 %v4437
        %v4494 = vunpack.c.h.b16 %v4437
        %v4495 = vunpack.c.l.b16 %v4438
        %v4496 = vunpack.c.h.b16 %v4438
        %v4497 = vunpack.c.l.b16 %v4439
        %v4498 = vunpack.c.h.b16 %v4439
        %v4499 = vunpack.c.l.b16 %v4440
        %v4500 = vunpack.c.h.b16 %v4440
        %v4501 = vunpack.c.l.b16 %v4441
        %v4502 = vunpack.c.h.b16 %v4441
        %v4503 = vunpack.c.l.b16 %v4442
        %v4504 = vunpack.c.h.b16 %v4442
        %v4505 = vunpack.c.l.b16 %v4443
        %v4506 = vunpack.c.h.b16 %v4443
        %v4507 = vunpack.c.l.b16 %v4444
        %v4508 = vunpack.c.h.b16 %v4444
        %v4509 = vunpack.c.l.b16 %v4445
        %v4510 = vunpack.c.h.b16 %v4445
        %v4511 = vunpack.c.l.b16 %v4446
        %v4512 = vunpack.c.h.b16 %v4446
        %v4513 = vunpack.c.l.b16 %v4447
        %v4514 = vunpack.c.h.b16 %v4447
        %v4515 = vunpack.c.l.b16 %v4448
        %v4516 = vunpack.c.h.b16 %v4448
        %v4517 = vunpack.c.l.b16 %v4449
        %v4518 = vpack.c.b16 %v4473, %v4473
        %v4519 = vpack.c.b16 %v4474, %v4474
        %v4520 = vpack.c.b16 %v4475, %v4475
        %v4521 = vpack.c.b16 %v4476, %v4476
        %v4522 = vpack.c.b16 %v4477, %v4477
        %v4523 = vpack.c.b16 %v4478, %v4478
        %v4524 = vpack.c.b16 %v4479, %v4479
        %v4525 = vpack.c.b16 %v4480, %v4480
        %v4526 = vpack.c.b16 %v4481, %v4481
        %v4527 = vpack.c.b16 %v4482, %v4482
        %v4528 = vpack.c.b16 %v4483, %v4483
        %v4529 = vpack.c.b16 %v4484, %v4484
        %v4530 = vpack.c.b16 %v4485, %v4485
        %v4531 = vpack.c.b16 %v4486, %v4486
        %v4532 = vpack.c.b16 %v4487, %v4487
        %v4533 = vpack.c.b16 %v4488, %v4488
        %v4534 = vpack.c.b16 %v4489, %v4489
        %v4535 = vpack.c.b16 %v4490, %v4490
        %v4536 = vpack.c.b16 %v4491, %v4491
        %v4537 = vpack.c.b16 %v4492, %v4492
        %v4538 = vpack.c.b16 %v4493, %v4493
        %v4539 = vpack.c.b16 %v4494, %v4494
        %v4540 = vpack.c.b16 %v4495, %v4495
        %v4541 = vpack.c.b16 %v4496, %v4496
        %v4542 = vpack.c.b16 %v4497, %v4497
        %v4543 = vpack.c.b16 %v4498, %v4498
        %v4544 = vpack.c.b16 %v4499, %v4499
        %v4545 = vpack.c.b16 %v4500, %v4500
        %v4546 = vpack.c.b16 %v4501, %v4501
        %v4547 = vpack.c.b16 %v4502, %v4502
        %v4548 = vpack.c.b16 %v4503, %v4503
        %v4549 = vpack.c.b16 %v4504, %v4504
        %v4550 = vpack.c.b16 %v4505, %v4505
        %v4551 = vpack.c.b16 %v4506, %v4506
        %v4552 = vpack.c.b16 %v4507, %v4507
        %v4553 = vpack.c.b16 %v4508, %v4508
        %v4554 = vpack.c.b16 %v4509, %v4509
        %v4555 = vpack.c.b16 %v4510, %v4510
        %v4556 = vpack.c.b16 %v4511, %v4511
        %v4557 = vpack.c.b16 %v4512, %v4512
        %v4558 = vpack.c.b16 %v4513, %v4513
        %v4559 = vpack.c.b16 %v4514, %v4514
        %v4560 = vpack.c.b16 %v4515, %v4515
        %v4561 = vpack.c.b16 %v4516, %v4516
        %v4562 = vpack.c.b16 %v4517, %v4517
        %4608 = vst [vmem:[#allocation2] sm:$0xf] %v4518
        %4609 = vst [vmem:[#allocation2 + $0x4] sm:$0xf] %v4519
        %4610 = vst [vmem:[#allocation2 + $0x8] sm:$0xf] %v4520
        %4611 = vst [vmem:[#allocation2 + $0xc] sm:$0xf] %v4521
        %4612 = vst [vmem:[#allocation2 + $0x10] sm:$0xf] %v4522
        %4613 = vst [vmem:[#allocation2 + $0x14] sm:$0xf] %v4523
        %4614 = vst [vmem:[#allocation2 + $0x18] sm:$0xf] %v4524
        %4615 = vst [vmem:[#allocation2 + $0x1c] sm:$0xf] %v4525
        %4616 = vst [vmem:[#allocation2 + $0x20] sm:$0xf] %v4526
        %4617 = vst [vmem:[#allocation2 + $0x24] sm:$0xf] %v4527
        %4618 = vst [vmem:[#allocation2 + $0x28] sm:$0xf] %v4528
        %4619 = vst [vmem:[#allocation2 + $0x2c] sm:$0xf] %v4529
        %4620 = vst [vmem:[#allocation2 + $0x30] sm:$0xf] %v4530
        %4621 = vst [vmem:[#allocation2 + $0x34] sm:$0xf] %v4531
        %4622 = vst [vmem:[#allocation2 + $0x38] sm:$0xf] %v4532
        %4623 = vst [vmem:[#allocation2 + $0x3c] sm:$0xf] %v4533
        %4624 = vst [vmem:[#allocation2 + $0x40] sm:$0xf] %v4534
        %4625 = vst [vmem:[#allocation2 + $0x44] sm:$0xf] %v4535
        %4626 = vst [vmem:[#allocation2 + $0x48] sm:$0xf] %v4536
        %4627 = vst [vmem:[#allocation2 + $0x4c] sm:$0xf] %v4537
        %4628 = vst [vmem:[#allocation2 + $0x50] sm:$0xf] %v4538
        %4629 = vst [vmem:[#allocation2 + $0x54] sm:$0xf] %v4539
        %4630 = vst [vmem:[#allocation2 + $0x58] sm:$0xf] %v4540
        %4631 = vst [vmem:[#allocation2 + $0x5c] sm:$0xf] %v4541
        %4632 = vst [vmem:[#allocation2 + $0x60] sm:$0xf] %v4542
        %4633 = vst [vmem:[#allocation2 + $0x64] sm:$0xf] %v4543
        %4634 = vst [vmem:[#allocation2 + $0x68] sm:$0xf] %v4544
        %4635 = vst [vmem:[#allocation2 + $0x6c] sm:$0xf] %v4545
        %4636 = vst [vmem:[#allocation2 + $0x70] sm:$0xf] %v4546
        %4637 = vst [vmem:[#allocation2 + $0x74] sm:$0xf] %v4547
        %4638 = vst [vmem:[#allocation2 + $0x78] sm:$0xf] %v4548
        %4639 = vst [vmem:[#allocation2 + $0x7c] sm:$0xf] %v4549
        %4640 = vst [vmem:[#allocation2 + $0x80] sm:$0xf] %v4550
        %4641 = vst [vmem:[#allocation2 + $0x84] sm:$0xf] %v4551
        %4642 = vst [vmem:[#allocation2 + $0x88] sm:$0xf] %v4552
        %4643 = vst [vmem:[#allocation2 + $0x8c] sm:$0xf] %v4553
        %4644 = vst [vmem:[#allocation2 + $0x90] sm:$0xf] %v4554
        %4645 = vst [vmem:[#allocation2 + $0x94] sm:$0xf] %v4555
        %4646 = vst [vmem:[#allocation2 + $0x98] sm:$0xf] %v4556
        %4647 = vst [vmem:[#allocation2 + $0x9c] sm:$0xf] %v4557
        %4648 = vst [vmem:[#allocation2 + $0xa0] sm:$0xf] %v4558
        %4649 = vst [vmem:[#allocation2 + $0xa4] sm:$0xf] %v4559
        %4650 = vst [vmem:[#allocation2 + $0xa8] sm:$0xf] %v4560
        %4651 = vst [vmem:[#allocation2 + $0xac] sm:$0xf] %v4561
        %4652 = vst [vmem:[#allocation2 + $0xb0] sm:$0xf] %v4562
        %v4653 = vld [vmem:[#allocation2 + $0x8] sm:$0xf]
        %v4654 = vld [vmem:[#allocation2 + $0xc] sm:$0xf]
        %v4655 = vld [vmem:[#allocation2 + $0x10] sm:$0xf]
        %v4656 = vld [vmem:[#allocation2 + $0x14] sm:$0xf]
        %v4657 = vld [vmem:[#allocation2 + $0x18] sm:$0xf]
        %v4658 = vld [vmem:[#allocation2 + $0x1c] sm:$0xf]
        %v4659 = vld [vmem:[#allocation2 + $0x20] sm:$0xf]
        %v4660 = vld [vmem:[#allocation2 + $0x24] sm:$0xf]
        %v4661 = vld [vmem:[#allocation2 + $0x28] sm:$0xf]
        %v4662 = vld [vmem:[#allocation2 + $0x2c] sm:$0xf]
        %v4663 = vld [vmem:[#allocation2 + $0x30] sm:$0xf]
        %v4664 = vld [vmem:[#allocation2 + $0x34] sm:$0xf]
        %v4665 = vld [vmem:[#allocation2 + $0x38] sm:$0xf]
        %v4666 = vld [vmem:[#allocation2 + $0x3c] sm:$0xf]
        %v4667 = vld [vmem:[#allocation2 + $0x40] sm:$0xf]
        %v4668 = vld [vmem:[#allocation2 + $0x44] sm:$0xf]
        %v4669 = vld [vmem:[#allocation2 + $0x48] sm:$0xf]
        %v4670 = vld [vmem:[#allocation2 + $0x4c] sm:$0xf]
        %v4671 = vld [vmem:[#allocation2 + $0x50] sm:$0xf]
        %v4672 = vld [vmem:[#allocation2 + $0x54] sm:$0xf]
        %v4673 = vld [vmem:[#allocation2 + $0x58] sm:$0xf]
        %v4674 = vld [vmem:[#allocation2 + $0x5c] sm:$0xf]
        %v4675 = vld [vmem:[#allocation2 + $0x60] sm:$0xf]
        %v4676 = vld [vmem:[#allocation2 + $0x64] sm:$0xf]
        %v4677 = vld [vmem:[#allocation2 + $0x68] sm:$0xf]
        %v4678 = vld [vmem:[#allocation2 + $0x6c] sm:$0xf]
        %v4679 = vld [vmem:[#allocation2 + $0x70] sm:$0xf]
        %v4680 = vld [vmem:[#allocation2 + $0x74] sm:$0xf]
        %v4681 = vld [vmem:[#allocation2 + $0x78] sm:$0xf]
        %v4682 = vld [vmem:[#allocation2 + $0x7c] sm:$0xf]
        %v4683 = vld [vmem:[#allocation2 + $0x80] sm:$0xf]
        %v4684 = vld [vmem:[#allocation2 + $0x84] sm:$0xf]
        %v4685 = vld [vmem:[#allocation2 + $0x88] sm:$0xf]
        %v4686 = vld [vmem:[#allocation2 + $0x8c] sm:$0xf]
        %v4687 = vld [vmem:[#allocation2 + $0x90] sm:$0xf]
        %v4688 = vld [vmem:[#allocation2 + $0x94] sm:$0xf]
        %v4689 = vld [vmem:[#allocation2 + $0x98] sm:$0x1]
        %v4690 = vld [vmem:[#allocation2 + $0x8] sm:$0xe]
        %v4691 = vld [vmem:[#allocation2 + $0x98] sm:$0x3]
        %v4692 = vld [vmem:[#allocation2 + $0x10] sm:$0xe]
        %v4693 = vld [vmem:[#allocation2 + $0x98] sm:$0xf]
        %v4694 = vld [vmem:[#allocation2 + $0x9c] sm:$0xf]
        %v4695 = vld [vmem:[#allocation2 + $0xa0] sm:$0x3]
        %v4696 = vld [vmem:[#allocation2 + $0x10] sm:$0xc]
        %v4697 = vld [vmem:[#allocation2 + $0xa0] sm:$0x7]
        %v4698 = vld [vmem:[#allocation2 + $0x18] sm:$0xc]
        %v4699 = vld [vmem:[#allocation2 + $0xa0] sm:$0xf]
        %v4700 = vld [vmem:[#allocation2 + $0xa4] sm:$0xf]
        %v4701 = vld [vmem:[#allocation2 + $0xa8] sm:$0x7]
        %v4702 = vld [vmem:[#allocation2 + $0x18] sm:$0x8]
        %v4703 = vld [vmem:[#allocation2 + $0xa8] sm:$0xf]
        %v4741 = vunpack.c.l.b16 %v4653
        %v4742 = vunpack.c.l.b16 %v4654
        %v4743 = vunpack.c.l.b16 %v4655
        %v4744 = vunpack.c.l.b16 %v4656
        %v4745 = vunpack.c.l.b16 %v4657
        %v4746 = vunpack.c.l.b16 %v4658
        %v4747 = vunpack.c.l.b16 %v4659
        %v4748 = vunpack.c.l.b16 %v4660
        %v4749 = vunpack.c.l.b16 %v4661
        %v4750 = vunpack.c.l.b16 %v4662
        %v4751 = vunpack.c.l.b16 %v4663
        %v4752 = vunpack.c.l.b16 %v4664
        %v4753 = vunpack.c.l.b16 %v4665
        %v4754 = vunpack.c.l.b16 %v4666
        %v4755 = vunpack.c.l.b16 %v4667
        %v4756 = vunpack.c.l.b16 %v4668
        %v4757 = vunpack.c.l.b16 %v4669
        %v4758 = vunpack.c.l.b16 %v4670
        %v4759 = vunpack.c.l.b16 %v4671
        %v4760 = vunpack.c.l.b16 %v4672
        %v4761 = vunpack.c.l.b16 %v4673
        %v4762 = vunpack.c.l.b16 %v4674
        %v4763 = vunpack.c.l.b16 %v4675
        %v4764 = vunpack.c.l.b16 %v4676
        %v4765 = vunpack.c.l.b16 %v4677
        %v4766 = vunpack.c.l.b16 %v4678
        %v4767 = vunpack.c.l.b16 %v4679
        %v4768 = vunpack.c.l.b16 %v4680
        %v4769 = vunpack.c.l.b16 %v4681
        %v4770 = vunpack.c.l.b16 %v4682
        %v4771 = vunpack.c.l.b16 %v4683
        %v4772 = vunpack.c.l.b16 %v4684
        %v4773 = vunpack.c.l.b16 %v4685
        %v4774 = vunpack.c.l.b16 %v4686
        %v4775 = vunpack.c.l.b16 %v4687
        %v4776 = vunpack.c.l.b16 %v4688
        %v4777 = vunpack.c.l.b16 %v4689
        %v4778 = vpack.c.b16 %v4742, %v4741
        %v4779 = vpack.c.b16 %v4744, %v4743
        %v4780 = vpack.c.b16 %v4746, %v4745
        %v4781 = vpack.c.b16 %v4748, %v4747
        %v4782 = vpack.c.b16 %v4750, %v4749
        %v4783 = vpack.c.b16 %v4752, %v4751
        %v4784 = vpack.c.b16 %v4754, %v4753
        %v4785 = vpack.c.b16 %v4756, %v4755
        %v4786 = vpack.c.b16 %v4758, %v4757
        %v4787 = vpack.c.b16 %v4760, %v4759
        %v4788 = vpack.c.b16 %v4762, %v4761
        %v4789 = vpack.c.b16 %v4764, %v4763
        %v4790 = vpack.c.b16 %v4766, %v4765
        %v4791 = vpack.c.b16 %v4768, %v4767
        %v4792 = vpack.c.b16 %v4770, %v4769
        %v4793 = vpack.c.b16 %v4772, %v4771
        %v4794 = vpack.c.b16 %v4774, %v4773
        %v4795 = vpack.c.b16 %v4776, %v4775
        %v4796 = vpack.c.b16 %v4777, %v4777
        %v4798 = vunpack.c.l.b16 %v4690
        %v4799 = vpack.c.b16 %v4742, %v4798
        %v4801 = vshrl.u32 %v4799, 16
        %v4803 = vshll.u32 %v4799, 16
        %v4805 = vrot.slane %v4803, 1
        %v4806 = vor.u32 %v4801, %v4805
        %v4808 = vshll.u32 %v4779, 16
        %v4810 = vrot.slane %v4808, 1
        %v4811 = vsel %vm478, %v4806, %v4810
        %v4812 = vshrl.u32 %v4779, 16
        %v4814 = vor.u32 %v4812, %v4810
        %v4816 = vshll.u32 %v4780, 16
        %v4818 = vrot.slane %v4816, 1
        %v4819 = vsel %vm478, %v4814, %v4818
        %v4820 = vshrl.u32 %v4780, 16
        %v4822 = vor.u32 %v4820, %v4818
        %v4824 = vshll.u32 %v4781, 16
        %v4826 = vrot.slane %v4824, 1
        %v4827 = vsel %vm478, %v4822, %v4826
        %v4828 = vshrl.u32 %v4781, 16
        %v4830 = vor.u32 %v4828, %v4826
        %v4832 = vshll.u32 %v4782, 16
        %v4834 = vrot.slane %v4832, 1
        %v4835 = vsel %vm478, %v4830, %v4834
        %v4836 = vshrl.u32 %v4782, 16
        %v4838 = vor.u32 %v4836, %v4834
        %v4840 = vshll.u32 %v4783, 16
        %v4842 = vrot.slane %v4840, 1
        %v4843 = vsel %vm478, %v4838, %v4842
        %v4844 = vshrl.u32 %v4783, 16
        %v4846 = vor.u32 %v4844, %v4842
        %v4848 = vshll.u32 %v4784, 16
        %v4850 = vrot.slane %v4848, 1
        %v4851 = vsel %vm478, %v4846, %v4850
        %v4852 = vshrl.u32 %v4784, 16
        %v4854 = vor.u32 %v4852, %v4850
        %v4856 = vshll.u32 %v4785, 16
        %v4858 = vrot.slane %v4856, 1
        %v4859 = vsel %vm478, %v4854, %v4858
        %v4860 = vshrl.u32 %v4785, 16
        %v4862 = vor.u32 %v4860, %v4858
        %v4864 = vshll.u32 %v4786, 16
        %v4866 = vrot.slane %v4864, 1
        %v4867 = vsel %vm478, %v4862, %v4866
        %v4868 = vshrl.u32 %v4786, 16
        %v4870 = vor.u32 %v4868, %v4866
        %v4872 = vshll.u32 %v4787, 16
        %v4874 = vrot.slane %v4872, 1
        %v4875 = vsel %vm478, %v4870, %v4874
        %v4876 = vshrl.u32 %v4787, 16
        %v4878 = vor.u32 %v4876, %v4874
        %v4880 = vshll.u32 %v4788, 16
        %v4882 = vrot.slane %v4880, 1
        %v4883 = vsel %vm478, %v4878, %v4882
        %v4884 = vshrl.u32 %v4788, 16
        %v4886 = vor.u32 %v4884, %v4882
        %v4888 = vshll.u32 %v4789, 16
        %v4890 = vrot.slane %v4888, 1
        %v4891 = vsel %vm478, %v4886, %v4890
        %v4892 = vshrl.u32 %v4789, 16
        %v4894 = vor.u32 %v4892, %v4890
        %v4896 = vshll.u32 %v4790, 16
        %v4898 = vrot.slane %v4896, 1
        %v4899 = vsel %vm478, %v4894, %v4898
        %v4900 = vshrl.u32 %v4790, 16
        %v4902 = vor.u32 %v4900, %v4898
        %v4904 = vshll.u32 %v4791, 16
        %v4906 = vrot.slane %v4904, 1
        %v4907 = vsel %vm478, %v4902, %v4906
        %v4908 = vshrl.u32 %v4791, 16
        %v4910 = vor.u32 %v4908, %v4906
        %v4912 = vshll.u32 %v4792, 16
        %v4914 = vrot.slane %v4912, 1
        %v4915 = vsel %vm478, %v4910, %v4914
        %v4916 = vshrl.u32 %v4792, 16
        %v4918 = vor.u32 %v4916, %v4914
        %v4920 = vshll.u32 %v4793, 16
        %v4922 = vrot.slane %v4920, 1
        %v4923 = vsel %vm478, %v4918, %v4922
        %v4924 = vshrl.u32 %v4793, 16
        %v4926 = vor.u32 %v4924, %v4922
        %v4928 = vshll.u32 %v4794, 16
        %v4930 = vrot.slane %v4928, 1
        %v4931 = vsel %vm478, %v4926, %v4930
        %v4932 = vshrl.u32 %v4794, 16
        %v4934 = vor.u32 %v4932, %v4930
        %v4936 = vshll.u32 %v4795, 16
        %v4938 = vrot.slane %v4936, 1
        %v4939 = vsel %vm478, %v4934, %v4938
        %v4940 = vshrl.u32 %v4795, 16
        %v4942 = vor.u32 %v4940, %v4938
        %v4944 = vshll.u32 %v4796, 16
        %v4946 = vrot.slane %v4944, 1
        %v4947 = vsel %vm478, %v4942, %v4946
        %v4948 = vshrl.u32 %v4796, 16
        %v4951 = vunpack.c.l.b16 %v4691
        %v4952 = vpack.c.b16 %v4951, %v4951
        %v4953 = vrot.slane %v4799, 1
        %v4954 = vrot.slane %v4779, 1
        %v4955 = vsel %vm665, %v4953, %v4954
        %v4956 = vrot.slane %v4780, 1
        %v4957 = vsel %vm665, %v4954, %v4956
        %v4958 = vrot.slane %v4781, 1
        %v4959 = vsel %vm665, %v4956, %v4958
        %v4960 = vrot.slane %v4782, 1
        %v4961 = vsel %vm665, %v4958, %v4960
        %v4962 = vrot.slane %v4783, 1
        %v4963 = vsel %vm665, %v4960, %v4962
        %v4964 = vrot.slane %v4784, 1
        %v4965 = vsel %vm665, %v4962, %v4964
        %v4966 = vrot.slane %v4785, 1
        %v4967 = vsel %vm665, %v4964, %v4966
        %v4968 = vrot.slane %v4786, 1
        %v4969 = vsel %vm665, %v4966, %v4968
        %v4970 = vrot.slane %v4787, 1
        %v4971 = vsel %vm665, %v4968, %v4970
        %v4972 = vrot.slane %v4788, 1
        %v4973 = vsel %vm665, %v4970, %v4972
        %v4974 = vrot.slane %v4789, 1
        %v4975 = vsel %vm665, %v4972, %v4974
        %v4976 = vrot.slane %v4790, 1
        %v4977 = vsel %vm665, %v4974, %v4976
        %v4978 = vrot.slane %v4791, 1
        %v4979 = vsel %vm665, %v4976, %v4978
        %v4980 = vrot.slane %v4792, 1
        %v4981 = vsel %vm665, %v4978, %v4980
        %v4982 = vrot.slane %v4793, 1
        %v4983 = vsel %vm665, %v4980, %v4982
        %v4984 = vrot.slane %v4794, 1
        %v4985 = vsel %vm665, %v4982, %v4984
        %v4986 = vrot.slane %v4795, 1
        %v4987 = vsel %vm665, %v4984, %v4986
        %v4988 = vrot.slane %v4952, 1
        %v4989 = vsel %vm665, %v4986, %v4988
        %v4994 = vunpack.c.l.b16 %v4692
        %v4995 = vunpack.c.l.b16 %v4693
        %v4996 = vunpack.c.l.b16 %v4694
        %v4997 = vunpack.c.l.b16 %v4695
        %v4998 = vpack.c.b16 %v4744, %v4994
        %v4999 = vpack.c.b16 %v4996, %v4995
        %v5000 = vpack.c.b16 %v4997, %v4997
        %v5001 = vrot.slane %v4998, 1
        %v5002 = vsel %vm665, %v5001, %v4956
        %v5003 = vrot.slane %v4999, 1
        %v5004 = vsel %vm665, %v4986, %v5003
        %v5005 = vrot.slane %v5000, 1
        %v5006 = vsel %vm665, %v5003, %v5005
        %v5008 = vunpack.c.l.b16 %v4696
        %v5009 = vpack.c.b16 %v4744, %v5008
        %v5011 = vshrl.u32 %v5009, 16
        %v5013 = vrot.slane %v5011, 1
        %v5014 = vshll.u32 %v5009, 16
        %v5016 = vrot.slane %v5014, 2
        %v5017 = vor.u32 %v5013, %v5016
        %v5018 = vrot.slane %v4820, 1
        %v5019 = vrot.slane %v4816, 2
        %v5020 = vor.u32 %v5018, %v5019
        %v5021 = vsel %vm731, %v5017, %v5020
        %v5022 = vrot.slane %v4828, 1
        %v5023 = vrot.slane %v4824, 2
        %v5024 = vor.u32 %v5022, %v5023
        %v5025 = vsel %vm731, %v5020, %v5024
        %v5026 = vrot.slane %v4836, 1
        %v5027 = vrot.slane %v4832, 2
        %v5028 = vor.u32 %v5026, %v5027
        %v5029 = vsel %vm731, %v5024, %v5028
        %v5030 = vrot.slane %v4844, 1
        %v5031 = vrot.slane %v4840, 2
        %v5032 = vor.u32 %v5030, %v5031
        %v5033 = vsel %vm731, %v5028, %v5032
        %v5034 = vrot.slane %v4852, 1
        %v5035 = vrot.slane %v4848, 2
        %v5036 = vor.u32 %v5034, %v5035
        %v5037 = vsel %vm731, %v5032, %v5036
        %v5038 = vrot.slane %v4860, 1
        %v5039 = vrot.slane %v4856, 2
        %v5040 = vor.u32 %v5038, %v5039
        %v5041 = vsel %vm731, %v5036, %v5040
        %v5042 = vrot.slane %v4868, 1
        %v5043 = vrot.slane %v4864, 2
        %v5044 = vor.u32 %v5042, %v5043
        %v5045 = vsel %vm731, %v5040, %v5044
        %v5046 = vrot.slane %v4876, 1
        %v5047 = vrot.slane %v4872, 2
        %v5048 = vor.u32 %v5046, %v5047
        %v5049 = vsel %vm731, %v5044, %v5048
        %v5050 = vrot.slane %v4884, 1
        %v5051 = vrot.slane %v4880, 2
        %v5052 = vor.u32 %v5050, %v5051
        %v5053 = vsel %vm731, %v5048, %v5052
        %v5054 = vrot.slane %v4892, 1
        %v5055 = vrot.slane %v4888, 2
        %v5056 = vor.u32 %v5054, %v5055
        %v5057 = vsel %vm731, %v5052, %v5056
        %v5058 = vrot.slane %v4900, 1
        %v5059 = vrot.slane %v4896, 2
        %v5060 = vor.u32 %v5058, %v5059
        %v5061 = vsel %vm731, %v5056, %v5060
        %v5062 = vrot.slane %v4908, 1
        %v5063 = vrot.slane %v4904, 2
        %v5064 = vor.u32 %v5062, %v5063
        %v5065 = vsel %vm731, %v5060, %v5064
        %v5066 = vrot.slane %v4916, 1
        %v5067 = vrot.slane %v4912, 2
        %v5068 = vor.u32 %v5066, %v5067
        %v5069 = vsel %vm731, %v5064, %v5068
        %v5070 = vrot.slane %v4924, 1
        %v5071 = vrot.slane %v4920, 2
        %v5072 = vor.u32 %v5070, %v5071
        %v5073 = vsel %vm731, %v5068, %v5072
        %v5074 = vrot.slane %v4932, 1
        %v5075 = vrot.slane %v4928, 2
        %v5076 = vor.u32 %v5074, %v5075
        %v5077 = vsel %vm731, %v5072, %v5076
        %v5078 = vrot.slane %v4940, 1
        %v5079 = vrot.slane %v4936, 2
        %v5080 = vor.u32 %v5078, %v5079
        %v5081 = vsel %vm731, %v5076, %v5080
        %v5083 = vshrl.u32 %v4999, 16
        %v5085 = vrot.slane %v5083, 1
        %v5086 = vshll.u32 %v4999, 16
        %v5088 = vrot.slane %v5086, 2
        %v5089 = vor.u32 %v5085, %v5088
        %v5090 = vsel %vm731, %v5080, %v5089
        %v5092 = vshrl.u32 %v5000, 16
        %v5094 = vrot.slane %v5092, 1
        %v5095 = vshll.u32 %v5000, 16
        %v5097 = vrot.slane %v5095, 2
        %v5098 = vor.u32 %v5094, %v5097
        %v5099 = vsel %vm731, %v5089, %v5098
        %v5101 = vunpack.c.l.b16 %v4697
        %v5102 = vpack.c.b16 %v5101, %v5101
        %v5103 = vrot.slane %v5009, 2
        %v5104 = vrot.slane %v4780, 2
        %v5105 = vsel %vm841, %v5103, %v5104
        %v5106 = vrot.slane %v4781, 2
        %v5107 = vsel %vm841, %v5104, %v5106
        %v5108 = vrot.slane %v4782, 2
        %v5109 = vsel %vm841, %v5106, %v5108
        %v5110 = vrot.slane %v4783, 2
        %v5111 = vsel %vm841, %v5108, %v5110
        %v5112 = vrot.slane %v4784, 2
        %v5113 = vsel %vm841, %v5110, %v5112
        %v5114 = vrot.slane %v4785, 2
        %v5115 = vsel %vm841, %v5112, %v5114
        %v5116 = vrot.slane %v4786, 2
        %v5117 = vsel %vm841, %v5114, %v5116
        %v5118 = vrot.slane %v4787, 2
        %v5119 = vsel %vm841, %v5116, %v5118
        %v5120 = vrot.slane %v4788, 2
        %v5121 = vsel %vm841, %v5118, %v5120
        %v5122 = vrot.slane %v4789, 2
        %v5123 = vsel %vm841, %v5120, %v5122
        %v5124 = vrot.slane %v4790, 2
        %v5125 = vsel %vm841, %v5122, %v5124
        %v5126 = vrot.slane %v4791, 2
        %v5127 = vsel %vm841, %v5124, %v5126
        %v5128 = vrot.slane %v4792, 2
        %v5129 = vsel %vm841, %v5126, %v5128
        %v5130 = vrot.slane %v4793, 2
        %v5131 = vsel %vm841, %v5128, %v5130
        %v5132 = vrot.slane %v4794, 2
        %v5133 = vsel %vm841, %v5130, %v5132
        %v5134 = vrot.slane %v4795, 2
        %v5135 = vsel %vm841, %v5132, %v5134
        %v5136 = vrot.slane %v4999, 2
        %v5137 = vsel %vm841, %v5134, %v5136
        %v5138 = vrot.slane %v5102, 2
        %v5139 = vsel %vm841, %v5136, %v5138
        %v5144 = vunpack.c.l.b16 %v4698
        %v5145 = vunpack.c.l.b16 %v4699
        %v5146 = vunpack.c.l.b16 %v4700
        %v5147 = vunpack.c.l.b16 %v4701
        %v5148 = vpack.c.b16 %v4746, %v5144
        %v5149 = vpack.c.b16 %v5146, %v5145
        %v5150 = vpack.c.b16 %v5147, %v5147
        %v5151 = vrot.slane %v5148, 2
        %v5152 = vsel %vm841, %v5151, %v5106
        %v5153 = vrot.slane %v5149, 2
        %v5154 = vsel %vm841, %v5136, %v5153
        %v5155 = vrot.slane %v5150, 2
        %v5156 = vsel %vm841, %v5153, %v5155
        %v5158 = vunpack.c.l.b16 %v4702
        %v5159 = vpack.c.b16 %v4746, %v5158
        %v5161 = vshrl.u32 %v5159, 16
        %v5163 = vrot.slane %v5161, 2
        %v5164 = vshll.u32 %v5159, 16
        %v5166 = vrot.slane %v5164, 3
        %v5167 = vor.u32 %v5163, %v5166
        %v5168 = vrot.slane %v4828, 2
        %v5169 = vrot.slane %v4824, 3
        %v5170 = vor.u32 %v5168, %v5169
        %v5171 = vsel %vm907, %v5167, %v5170
        %v5172 = vrot.slane %v4836, 2
        %v5173 = vrot.slane %v4832, 3
        %v5174 = vor.u32 %v5172, %v5173
        %v5175 = vsel %vm907, %v5170, %v5174
        %v5176 = vrot.slane %v4844, 2
        %v5177 = vrot.slane %v4840, 3
        %v5178 = vor.u32 %v5176, %v5177
        %v5179 = vsel %vm907, %v5174, %v5178
        %v5180 = vrot.slane %v4852, 2
        %v5181 = vrot.slane %v4848, 3
        %v5182 = vor.u32 %v5180, %v5181
        %v5183 = vsel %vm907, %v5178, %v5182
        %v5184 = vrot.slane %v4860, 2
        %v5185 = vrot.slane %v4856, 3
        %v5186 = vor.u32 %v5184, %v5185
        %v5187 = vsel %vm907, %v5182, %v5186
        %v5188 = vrot.slane %v4868, 2
        %v5189 = vrot.slane %v4864, 3
        %v5190 = vor.u32 %v5188, %v5189
        %v5191 = vsel %vm907, %v5186, %v5190
        %v5192 = vrot.slane %v4876, 2
        %v5193 = vrot.slane %v4872, 3
        %v5194 = vor.u32 %v5192, %v5193
        %v5195 = vsel %vm907, %v5190, %v5194
        %v5196 = vrot.slane %v4884, 2
        %v5197 = vrot.slane %v4880, 3
        %v5198 = vor.u32 %v5196, %v5197
        %v5199 = vsel %vm907, %v5194, %v5198
        %v5200 = vrot.slane %v4892, 2
        %v5201 = vrot.slane %v4888, 3
        %v5202 = vor.u32 %v5200, %v5201
        %v5203 = vsel %vm907, %v5198, %v5202
        %v5204 = vrot.slane %v4900, 2
        %v5205 = vrot.slane %v4896, 3
        %v5206 = vor.u32 %v5204, %v5205
        %v5207 = vsel %vm907, %v5202, %v5206
        %v5208 = vrot.slane %v4908, 2
        %v5209 = vrot.slane %v4904, 3
        %v5210 = vor.u32 %v5208, %v5209
        %v5211 = vsel %vm907, %v5206, %v5210
        %v5212 = vrot.slane %v4916, 2
        %v5213 = vrot.slane %v4912, 3
        %v5214 = vor.u32 %v5212, %v5213
        %v5215 = vsel %vm907, %v5210, %v5214
        %v5216 = vrot.slane %v4924, 2
        %v5217 = vrot.slane %v4920, 3
        %v5218 = vor.u32 %v5216, %v5217
        %v5219 = vsel %vm907, %v5214, %v5218
        %v5220 = vrot.slane %v4932, 2
        %v5221 = vrot.slane %v4928, 3
        %v5222 = vor.u32 %v5220, %v5221
        %v5223 = vsel %vm907, %v5218, %v5222
        %v5224 = vrot.slane %v4940, 2
        %v5225 = vrot.slane %v4936, 3
        %v5226 = vor.u32 %v5224, %v5225
        %v5227 = vsel %vm907, %v5222, %v5226
        %v5228 = vrot.slane %v5083, 2
        %v5229 = vrot.slane %v5086, 3
        %v5230 = vor.u32 %v5228, %v5229
        %v5231 = vsel %vm907, %v5226, %v5230
        %v5233 = vshrl.u32 %v5149, 16
        %v5235 = vrot.slane %v5233, 2
        %v5236 = vshll.u32 %v5149, 16
        %v5238 = vrot.slane %v5236, 3
        %v5239 = vor.u32 %v5235, %v5238
        %v5240 = vsel %vm907, %v5230, %v5239
        %v5242 = vshrl.u32 %v5150, 16
        %v5244 = vrot.slane %v5242, 2
        %v5245 = vshll.u32 %v5150, 16
        %v5247 = vrot.slane %v5245, 3
        %v5248 = vor.u32 %v5244, %v5247
        %v5249 = vsel %vm907, %v5239, %v5248
        %v5251 = vunpack.c.l.b16 %v4703
        %v5252 = vpack.c.b16 %v5251, %v5251
        %v5253 = vrot.slane %v5159, 3
        %v5254 = vrot.slane %v4781, 3
        %v5255 = vsel %vm1017, %v5253, %v5254
        %v5256 = vrot.slane %v4782, 3
        %v5257 = vsel %vm1017, %v5254, %v5256
        %v5258 = vrot.slane %v4783, 3
        %v5259 = vsel %vm1017, %v5256, %v5258
        %v5260 = vrot.slane %v4784, 3
        %v5261 = vsel %vm1017, %v5258, %v5260
        %v5262 = vrot.slane %v4785, 3
        %v5263 = vsel %vm1017, %v5260, %v5262
        %v5264 = vrot.slane %v4786, 3
        %v5265 = vsel %vm1017, %v5262, %v5264
        %v5266 = vrot.slane %v4787, 3
        %v5267 = vsel %vm1017, %v5264, %v5266
        %v5268 = vrot.slane %v4788, 3
        %v5269 = vsel %vm1017, %v5266, %v5268
        %v5270 = vrot.slane %v4789, 3
        %v5271 = vsel %vm1017, %v5268, %v5270
        %v5272 = vrot.slane %v4790, 3
        %v5273 = vsel %vm1017, %v5270, %v5272
        %v5274 = vrot.slane %v4791, 3
        %v5275 = vsel %vm1017, %v5272, %v5274
        %v5276 = vrot.slane %v4792, 3
        %v5277 = vsel %vm1017, %v5274, %v5276
        %v5278 = vrot.slane %v4793, 3
        %v5279 = vsel %vm1017, %v5276, %v5278
        %v5280 = vrot.slane %v4794, 3
        %v5281 = vsel %vm1017, %v5278, %v5280
        %v5282 = vrot.slane %v4795, 3
        %v5283 = vsel %vm1017, %v5280, %v5282
        %v5284 = vrot.slane %v4999, 3
        %v5285 = vsel %vm1017, %v5282, %v5284
        %v5286 = vrot.slane %v5149, 3
        %v5287 = vsel %vm1017, %v5284, %v5286
        %v5288 = vrot.slane %v5252, 3
        %v5289 = vsel %vm1017, %v5286, %v5288
        %v5290 = vld [vmem:[#allocation8] sm:$0xf]
        %v5291 = vld [vmem:[#allocation8 + $0x4] sm:$0xf]
        %v5292 = vld [vmem:[#allocation8 + $0x8] sm:$0xf]
        %v5293 = vld [vmem:[#allocation8 + $0xc] sm:$0xf]
        %v5294 = vld [vmem:[#allocation8 + $0x10] sm:$0xf]
        %v5295 = vld [vmem:[#allocation8 + $0x14] sm:$0xf]
        %v5296 = vld [vmem:[#allocation8 + $0x18] sm:$0xf]
        %v5297 = vld [vmem:[#allocation8 + $0x1c] sm:$0xf]
        %v5298 = vld [vmem:[#allocation8 + $0x20] sm:$0xf]
        %v5299 = vld [vmem:[#allocation8 + $0x24] sm:$0xf]
        %v5300 = vld [vmem:[#allocation8 + $0x28] sm:$0xf]
        %v5301 = vld [vmem:[#allocation8 + $0x2c] sm:$0xf]
        %v5302 = vld [vmem:[#allocation8 + $0x30] sm:$0xf]
        %v5303 = vld [vmem:[#allocation8 + $0x34] sm:$0xf]
        %v5304 = vld [vmem:[#allocation8 + $0x38] sm:$0xf]
        %v5305 = vld [vmem:[#allocation8 + $0x3c] sm:$0xf]
        %v5306 = vld [vmem:[#allocation8 + $0x40] sm:$0xf]
        %v5307 = vld [vmem:[#allocation8 + $0x44] sm:$0xf]
        %v5308 = vld [vmem:[#allocation8 + $0x48] sm:$0xf]
        %v5309 = vld [vmem:[#allocation8 + $0x4c] sm:$0xf]
        %v5310 = vld [vmem:[#allocation8 + $0x50] sm:$0xf]
        %v5311 = vld [vmem:[#allocation8 + $0x54] sm:$0xf]
        %v5312 = vld [vmem:[#allocation8 + $0x58] sm:$0xf]
        %v5313 = vld [vmem:[#allocation8 + $0x5c] sm:$0xf]
        %v5314 = vld [vmem:[#allocation8 + $0x60] sm:$0xf]
        %v5315 = vld [vmem:[#allocation8 + $0x64] sm:$0xf]
        %v5316 = vld [vmem:[#allocation8 + $0x68] sm:$0xf]
        %v5317 = vld [vmem:[#allocation8 + $0x6c] sm:$0xf]
        %v5318 = vld [vmem:[#allocation8 + $0x70] sm:$0xf]
        %v5319 = vld [vmem:[#allocation8 + $0x74] sm:$0xf]
        %v5320 = vld [vmem:[#allocation8 + $0x78] sm:$0xf]
        %v5321 = vld [vmem:[#allocation8 + $0x7c] sm:$0xf]
        %v5322 = vld [vmem:[#allocation8 + $0x80] sm:$0xf]
        %v5323 = vld [vmem:[#allocation8 + $0x84] sm:$0xf]
        %v5324 = vld [vmem:[#allocation8 + $0x88] sm:$0xf]
        %v5325 = vld [vmem:[#allocation8 + $0x8c] sm:$0xf]
        %v5326 = vld [vmem:[#allocation8 + $0x90] sm:$0xf]
        %v5327 = vld [vmem:[#allocation8 + $0x94] sm:$0xf]
        %v5328 = vld [vmem:[#allocation8 + $0x98] sm:$0xf]
        %v5329 = vld [vmem:[#allocation8 + $0x9c] sm:$0xf]
        %v5330 = vld [vmem:[#allocation8 + $0xa0] sm:$0xf]
        %v5331 = vld [vmem:[#allocation8 + $0xa4] sm:$0xf]
        %v5332 = vld [vmem:[#allocation8 + $0xa8] sm:$0xf]
        %v5333 = vld [vmem:[#allocation8 + $0xac] sm:$0xf]
        %v5334 = vld [vmem:[#allocation8 + $0xb0] sm:$0xf]
        %v5335 = vld [vmem:[#allocation8 + $0xb4] sm:$0xf]
        %v5336 = vld [vmem:[#allocation8 + $0xb8] sm:$0xf]
        %v5337 = vld [vmem:[#allocation8 + $0xbc] sm:$0xf]
        %v5338 = vld [vmem:[#allocation8 + $0xc0] sm:$0xf]
        %v5339 = vld [vmem:[#allocation8 + $0xc4] sm:$0xf]
        %v5340 = vld [vmem:[#allocation8 + $0xc8] sm:$0xf]
        %v5341 = vld [vmem:[#allocation8 + $0xcc] sm:$0xf]
        %v5342 = vld [vmem:[#allocation8 + $0xd0] sm:$0xf]
        %v5343 = vld [vmem:[#allocation8 + $0xd4] sm:$0xf]
        %v5344 = vld [vmem:[#allocation8 + $0xd8] sm:$0xf]
        %v5345 = vld [vmem:[#allocation8 + $0xdc] sm:$0xf]
        %v5346 = vld [vmem:[#allocation8 + $0xe0] sm:$0xf]
        %v5347 = vld [vmem:[#allocation8 + $0xe4] sm:$0xf]
        %v5348 = vld [vmem:[#allocation8 + $0xe8] sm:$0xf]
        %v5349 = vld [vmem:[#allocation8 + $0xec] sm:$0xf]
        %v5350 = vld [vmem:[#allocation8 + $0xf0] sm:$0xf]
        %v5351 = vld [vmem:[#allocation8 + $0xf4] sm:$0xf]
        %v5352 = vld [vmem:[#allocation8 + $0xf8] sm:$0xf]
        %v5353 = vld [vmem:[#allocation8 + $0xfc] sm:$0xf]
        %v5354 = vld [vmem:[#allocation8 + $0x100] sm:$0xf]
        %v5355 = vld [vmem:[#allocation8 + $0x104] sm:$0xf]
        %v5356 = vld [vmem:[#allocation8 + $0x108] sm:$0xf]
        %v5357 = vld [vmem:[#allocation8 + $0x10c] sm:$0xf]
        %v5358 = vld [vmem:[#allocation8 + $0x110] sm:$0xf]
        %v5359 = vld [vmem:[#allocation8 + $0x114] sm:$0xf]
        %v5360 = vld [vmem:[#allocation8 + $0x118] sm:$0xf]
        %v5361 = vld [vmem:[#allocation8 + $0x11c] sm:$0xf]
        %v5362 = vld [vmem:[#allocation8 + $0x120] sm:$0xf]
        %v5363 = vld [vmem:[#allocation8 + $0x124] sm:$0xf]
        %v5364 = vld [vmem:[#allocation8 + $0x128] sm:$0xf]
        %v5365 = vld [vmem:[#allocation8 + $0x12c] sm:$0xf]
        %v5366 = vld [vmem:[#allocation8 + $0x130] sm:$0xf]
        %v5367 = vld [vmem:[#allocation8 + $0x134] sm:$0xf]
        %v5368 = vld [vmem:[#allocation8 + $0x138] sm:$0xf]
        %v5369 = vld [vmem:[#allocation8 + $0x13c] sm:$0xf]
        %v5370 = vld [vmem:[#allocation8 + $0x140] sm:$0xf]
        %v5371 = vld [vmem:[#allocation8 + $0x144] sm:$0xf]
        %v5372 = vld [vmem:[#allocation8 + $0x148] sm:$0xf]
        %v5373 = vld [vmem:[#allocation8 + $0x14c] sm:$0xf]
        %v5374 = vld [vmem:[#allocation8 + $0x150] sm:$0xf]
        %v5375 = vld [vmem:[#allocation8 + $0x154] sm:$0xf]
        %v5376 = vld [vmem:[#allocation8 + $0x158] sm:$0xf]
        %v5377 = vld [vmem:[#allocation8 + $0x15c] sm:$0xf]
        %v5378 = vld [vmem:[#allocation8 + $0x160] sm:$0xf]
        %v5379 = vld [vmem:[#allocation8 + $0x164] sm:$0xf]
        %v5380 = vld [vmem:[#allocation8 + $0x168] sm:$0xf]
        %v5381 = vld [vmem:[#allocation8 + $0x16c] sm:$0xf]
        %v5382 = vld [vmem:[#allocation8 + $0x170] sm:$0xf]
        %v5383 = vld [vmem:[#allocation8 + $0x174] sm:$0xf]
        %v5384 = vld [vmem:[#allocation8 + $0x178] sm:$0xf]
        %v5385 = vld [vmem:[#allocation8 + $0x17c] sm:$0xf]
        %v5386 = vld [vmem:[#allocation8 + $0x180] sm:$0xf]
        %v5387 = vld [vmem:[#allocation8 + $0x184] sm:$0xf]
        %v5388 = vld [vmem:[#allocation8 + $0x188] sm:$0xf]
        %v5389 = vld [vmem:[#allocation8 + $0x18c] sm:$0xf]
        %v5390 = vld [vmem:[#allocation8 + $0x190] sm:$0xf]
        %v5391 = vld [vmem:[#allocation8 + $0x194] sm:$0xf]
        %v5392 = vld [vmem:[#allocation8 + $0x198] sm:$0xf]
        %v5393 = vld [vmem:[#allocation8 + $0x19c] sm:$0xf]
        %v5394 = vld [vmem:[#allocation8 + $0x1a0] sm:$0xf]
        %v5395 = vld [vmem:[#allocation8 + $0x1a4] sm:$0xf]
        %v5396 = vld [vmem:[#allocation8 + $0x1a8] sm:$0xf]
        %v5397 = vld [vmem:[#allocation8 + $0x1ac] sm:$0xf]
        %v5398 = vld [vmem:[#allocation8 + $0x1b0] sm:$0xf]
        %v5399 = vld [vmem:[#allocation8 + $0x1b4] sm:$0xf]
        %v5400 = vld [vmem:[#allocation8 + $0x1b8] sm:$0xf]
        %v5401 = vld [vmem:[#allocation8 + $0x1bc] sm:$0xf]
        %v5402 = vld [vmem:[#allocation8 + $0x1c0] sm:$0xf]
        %v5403 = vld [vmem:[#allocation8 + $0x1c4] sm:$0xf]
        %v5404 = vld [vmem:[#allocation8 + $0x1c8] sm:$0xf]
        %v5405 = vld [vmem:[#allocation8 + $0x1cc] sm:$0xf]
        %v5406 = vld [vmem:[#allocation8 + $0x1d0] sm:$0xf]
        %v5407 = vld [vmem:[#allocation8 + $0x1d4] sm:$0xf]
        %v5408 = vld [vmem:[#allocation8 + $0x1d8] sm:$0xf]
        %v5409 = vld [vmem:[#allocation8 + $0x1dc] sm:$0xf]
        %v5410 = vld [vmem:[#allocation8 + $0x1e0] sm:$0xf]
        %v5411 = vld [vmem:[#allocation8 + $0x1e4] sm:$0xf]
        %v5412 = vld [vmem:[#allocation8 + $0x1e8] sm:$0xf]
        %v5413 = vld [vmem:[#allocation8 + $0x1ec] sm:$0xf]
        %v5414 = vld [vmem:[#allocation8 + $0x1f0] sm:$0xf]
        %v5415 = vld [vmem:[#allocation8 + $0x1f4] sm:$0xf]
        %v5416 = vld [vmem:[#allocation8 + $0x1f8] sm:$0xf]
        %v5417 = vld [vmem:[#allocation8 + $0x1fc] sm:$0xf]
        %v5418 = vld [vmem:[#allocation8 + $0x200] sm:$0xf]
        %v5419 = vld [vmem:[#allocation8 + $0x204] sm:$0xf]
        %v5420 = vld [vmem:[#allocation8 + $0x208] sm:$0xf]
        %v5421 = vld [vmem:[#allocation8 + $0x20c] sm:$0xf]
        %v5422 = vld [vmem:[#allocation8 + $0x210] sm:$0xf]
        %v5423 = vld [vmem:[#allocation8 + $0x214] sm:$0xf]
        %v5424 = vld [vmem:[#allocation8 + $0x218] sm:$0xf]
        %v5425 = vld [vmem:[#allocation8 + $0x21c] sm:$0xf]
        %v5426 = vld [vmem:[#allocation8 + $0x220] sm:$0xf]
        %v5427 = vld [vmem:[#allocation8 + $0x224] sm:$0xf]
        %v5428 = vld [vmem:[#allocation8 + $0x228] sm:$0xf]
        %v5429 = vld [vmem:[#allocation8 + $0x22c] sm:$0xf]
        %v5430 = vld [vmem:[#allocation8 + $0x230] sm:$0xf]
        %v5431 = vld [vmem:[#allocation8 + $0x234] sm:$0xf]
        %v5432 = vld [vmem:[#allocation8 + $0x238] sm:$0xf]
        %v5433 = vld [vmem:[#allocation8 + $0x23c] sm:$0xf]
        %v5434 = vld [vmem:[%s5] sm:$0x1]
        %v5436 = vlaneseq
        %v5437 = vshrl.u32 %v5436, 7
        %v5438 = vsub.s32 0, %v5437
        %v5439 = vrot.slane %v5434, %v5438
        %v5442 = vshrl.u32 %v4778, 16
        %v5444 = vshll.u32 %v4778, 16
        %v5446 = vrot.slane %v5444, 1
        %v5447 = vor.u32 %v5442, %v5446
        %v5448 = vsel %vm478, %v5447, %v4810
        %v5450 = vshrl.u32 %v4811, 16
        %v5452 = vshll.u32 %v4811, 16
        %v5454 = vrot.slane %v5452, 1
        %v5455 = vor.u32 %v5450, %v5454
        %v5457 = vshll.u32 %v4819, 16
        %v5459 = vrot.slane %v5457, 1
        %v5460 = vsel %vm478, %v5455, %v5459
        %v5462 = vshrl.u32 %v4955, 16
        %v5464 = vshll.u32 %v4955, 16
        %v5466 = vrot.slane %v5464, 1
        %v5467 = vor.u32 %v5462, %v5466
        %v5469 = vshll.u32 %v4957, 16
        %v5471 = vrot.slane %v5469, 1
        %v5472 = vsel %vm478, %v5467, %v5471
        %v5474 = vshrl.u32 %v5002, 16
        %v5476 = vshll.u32 %v5002, 16
        %v5478 = vrot.slane %v5476, 1
        %v5479 = vor.u32 %v5474, %v5478
        %v5481 = vshll.u32 %v4959, 16
        %v5483 = vrot.slane %v5481, 1
        %v5484 = vsel %vm478, %v5479, %v5483
        %v5486 = vshrl.u32 %v5021, 16
        %v5488 = vshll.u32 %v5021, 16
        %v5490 = vrot.slane %v5488, 1
        %v5491 = vor.u32 %v5486, %v5490
        %v5493 = vshll.u32 %v5025, 16
        %v5495 = vrot.slane %v5493, 1
        %v5496 = vsel %vm478, %v5491, %v5495
        %v5498 = vshrl.u32 %v5105, 16
        %v5500 = vshll.u32 %v5105, 16
        %v5502 = vrot.slane %v5500, 1
        %v5503 = vor.u32 %v5498, %v5502
        %v5505 = vshll.u32 %v5107, 16
        %v5507 = vrot.slane %v5505, 1
        %v5508 = vsel %vm478, %v5503, %v5507
        %v5510 = vshrl.u32 %v5152, 16
        %v5512 = vshll.u32 %v5152, 16
        %v5514 = vrot.slane %v5512, 1
        %v5515 = vor.u32 %v5510, %v5514
        %v5517 = vshll.u32 %v5109, 16
        %v5519 = vrot.slane %v5517, 1
        %v5520 = vsel %vm478, %v5515, %v5519
        %v5522 = vshrl.u32 %v5171, 16
        %v5524 = vshll.u32 %v5171, 16
        %v5526 = vrot.slane %v5524, 1
        %v5527 = vor.u32 %v5522, %v5526
        %v5529 = vshll.u32 %v5175, 16
        %v5531 = vrot.slane %v5529, 1
        %v5532 = vsel %vm478, %v5527, %v5531
        %v5534 = vshrl.u32 %v5255, 16
        %v5536 = vshll.u32 %v5255, 16
        %v5538 = vrot.slane %v5536, 1
        %v5539 = vor.u32 %v5534, %v5538
        %v5541 = vshll.u32 %v5257, 16
        %v5543 = vrot.slane %v5541, 1
        %v5544 = vsel %vm478, %v5539, %v5543
        %v5545 = vshrl.u32 %v4819, 16
        %v5547 = vor.u32 %v5545, %v5459
        %v5549 = vshll.u32 %v4827, 16
        %v5551 = vrot.slane %v5549, 1
        %v5552 = vsel %vm478, %v5547, %v5551
        %v5553 = vshrl.u32 %v4957, 16
        %v5555 = vor.u32 %v5553, %v5471
        %v5556 = vsel %vm478, %v5555, %v5483
        %v5557 = vshrl.u32 %v4959, 16
        %v5559 = vor.u32 %v5557, %v5483
        %v5561 = vshll.u32 %v4961, 16
        %v5563 = vrot.slane %v5561, 1
        %v5564 = vsel %vm478, %v5559, %v5563
        %v5565 = vshrl.u32 %v5025, 16
        %v5567 = vor.u32 %v5565, %v5495
        %v5569 = vshll.u32 %v5029, 16
        %v5571 = vrot.slane %v5569, 1
        %v5572 = vsel %vm478, %v5567, %v5571
        %v5573 = vshrl.u32 %v5107, 16
        %v5575 = vor.u32 %v5573, %v5507
        %v5576 = vsel %vm478, %v5575, %v5519
        %v5577 = vshrl.u32 %v5109, 16
        %v5579 = vor.u32 %v5577, %v5519
        %v5581 = vshll.u32 %v5111, 16
        %v5583 = vrot.slane %v5581, 1
        %v5584 = vsel %vm478, %v5579, %v5583
        %v5585 = vshrl.u32 %v5175, 16
        %v5587 = vor.u32 %v5585, %v5531
        %v5589 = vshll.u32 %v5179, 16
        %v5591 = vrot.slane %v5589, 1
        %v5592 = vsel %vm478, %v5587, %v5591
        %v5593 = vshrl.u32 %v5257, 16
        %v5595 = vor.u32 %v5593, %v5543
        %v5597 = vshll.u32 %v5259, 16
        %v5599 = vrot.slane %v5597, 1
        %v5600 = vsel %vm478, %v5595, %v5599
        %v5601 = vshrl.u32 %v4827, 16
        %v5603 = vor.u32 %v5601, %v5551
        %v5605 = vshll.u32 %v4835, 16
        %v5607 = vrot.slane %v5605, 1
        %v5608 = vsel %vm478, %v5603, %v5607
        %v5609 = vshrl.u32 %v4961, 16
        %v5611 = vor.u32 %v5609, %v5563
        %v5613 = vshll.u32 %v4963, 16
        %v5615 = vrot.slane %v5613, 1
        %v5616 = vsel %vm478, %v5611, %v5615
        %v5617 = vshrl.u32 %v5029, 16
        %v5619 = vor.u32 %v5617, %v5571
        %v5621 = vshll.u32 %v5033, 16
        %v5623 = vrot.slane %v5621, 1
        %v5624 = vsel %vm478, %v5619, %v5623
        %v5625 = vshrl.u32 %v5111, 16
        %v5627 = vor.u32 %v5625, %v5583
        %v5629 = vshll.u32 %v5113, 16
        %v5631 = vrot.slane %v5629, 1
        %v5632 = vsel %vm478, %v5627, %v5631
        %v5633 = vshrl.u32 %v5179, 16
        %v5635 = vor.u32 %v5633, %v5591
        %v5637 = vshll.u32 %v5183, 16
        %v5639 = vrot.slane %v5637, 1
        %v5640 = vsel %vm478, %v5635, %v5639
        %v5641 = vshrl.u32 %v5259, 16
        %v5643 = vor.u32 %v5641, %v5599
        %v5645 = vshll.u32 %v5261, 16
        %v5647 = vrot.slane %v5645, 1
        %v5648 = vsel %vm478, %v5643, %v5647
        %v5649 = vshrl.u32 %v4835, 16
        %v5651 = vor.u32 %v5649, %v5607
        %v5653 = vshll.u32 %v4843, 16
        %v5655 = vrot.slane %v5653, 1
        %v5656 = vsel %vm478, %v5651, %v5655
        %v5657 = vshrl.u32 %v4963, 16
        %v5659 = vor.u32 %v5657, %v5615
        %v5661 = vshll.u32 %v4965, 16
        %v5663 = vrot.slane %v5661, 1
        %v5664 = vsel %vm478, %v5659, %v5663
        %v5665 = vshrl.u32 %v5033, 16
        %v5667 = vor.u32 %v5665, %v5623
        %v5669 = vshll.u32 %v5037, 16
        %v5671 = vrot.slane %v5669, 1
        %v5672 = vsel %vm478, %v5667, %v5671
        %v5673 = vshrl.u32 %v5113, 16
        %v5675 = vor.u32 %v5673, %v5631
        %v5677 = vshll.u32 %v5115, 16
        %v5679 = vrot.slane %v5677, 1
        %v5680 = vsel %vm478, %v5675, %v5679
        %v5681 = vshrl.u32 %v5183, 16
        %v5683 = vor.u32 %v5681, %v5639
        %v5685 = vshll.u32 %v5187, 16
        %v5687 = vrot.slane %v5685, 1
        %v5688 = vsel %vm478, %v5683, %v5687
        %v5689 = vshrl.u32 %v5261, 16
        %v5691 = vor.u32 %v5689, %v5647
        %v5693 = vshll.u32 %v5263, 16
        %v5695 = vrot.slane %v5693, 1
        %v5696 = vsel %vm478, %v5691, %v5695
        %v5697 = vshrl.u32 %v4843, 16
        %v5699 = vor.u32 %v5697, %v5655
        %v5701 = vshll.u32 %v4851, 16
        %v5703 = vrot.slane %v5701, 1
        %v5704 = vsel %vm478, %v5699, %v5703
        %v5705 = vshrl.u32 %v4965, 16
        %v5707 = vor.u32 %v5705, %v5663
        %v5709 = vshll.u32 %v4967, 16
        %v5711 = vrot.slane %v5709, 1
        %v5712 = vsel %vm478, %v5707, %v5711
        %v5713 = vshrl.u32 %v5037, 16
        %v5715 = vor.u32 %v5713, %v5671
        %v5717 = vshll.u32 %v5041, 16
        %v5719 = vrot.slane %v5717, 1
        %v5720 = vsel %vm478, %v5715, %v5719
        %v5721 = vshrl.u32 %v5115, 16
        %v5723 = vor.u32 %v5721, %v5679
        %v5725 = vshll.u32 %v5117, 16
        %v5727 = vrot.slane %v5725, 1
        %v5728 = vsel %vm478, %v5723, %v5727
        %v5729 = vshrl.u32 %v5187, 16
        %v5731 = vor.u32 %v5729, %v5687
        %v5733 = vshll.u32 %v5191, 16
        %v5735 = vrot.slane %v5733, 1
        %v5736 = vsel %vm478, %v5731, %v5735
        %v5737 = vshrl.u32 %v5263, 16
        %v5739 = vor.u32 %v5737, %v5695
        %v5741 = vshll.u32 %v5265, 16
        %v5743 = vrot.slane %v5741, 1
        %v5744 = vsel %vm478, %v5739, %v5743
        %v5745 = vshrl.u32 %v4851, 16
        %v5747 = vor.u32 %v5745, %v5703
        %v5749 = vshll.u32 %v4859, 16
        %v5751 = vrot.slane %v5749, 1
        %v5752 = vsel %vm478, %v5747, %v5751
        %v5753 = vshrl.u32 %v4967, 16
        %v5755 = vor.u32 %v5753, %v5711
        %v5757 = vshll.u32 %v4969, 16
        %v5759 = vrot.slane %v5757, 1
        %v5760 = vsel %vm478, %v5755, %v5759
        %v5761 = vshrl.u32 %v5041, 16
        %v5763 = vor.u32 %v5761, %v5719
        %v5765 = vshll.u32 %v5045, 16
        %v5767 = vrot.slane %v5765, 1
        %v5768 = vsel %vm478, %v5763, %v5767
        %v5769 = vshrl.u32 %v5117, 16
        %v5771 = vor.u32 %v5769, %v5727
        %v5773 = vshll.u32 %v5119, 16
        %v5775 = vrot.slane %v5773, 1
        %v5776 = vsel %vm478, %v5771, %v5775
        %v5777 = vshrl.u32 %v5191, 16
        %v5779 = vor.u32 %v5777, %v5735
        %v5781 = vshll.u32 %v5195, 16
        %v5783 = vrot.slane %v5781, 1
        %v5784 = vsel %vm478, %v5779, %v5783
        %v5785 = vshrl.u32 %v5265, 16
        %v5787 = vor.u32 %v5785, %v5743
        %v5789 = vshll.u32 %v5267, 16
        %v5791 = vrot.slane %v5789, 1
        %v5792 = vsel %vm478, %v5787, %v5791
        %v5793 = vshrl.u32 %v4859, 16
        %v5795 = vor.u32 %v5793, %v5751
        %v5797 = vshll.u32 %v4867, 16
        %v5799 = vrot.slane %v5797, 1
        %v5800 = vsel %vm478, %v5795, %v5799
        %v5801 = vshrl.u32 %v4969, 16
        %v5803 = vor.u32 %v5801, %v5759
        %v5805 = vshll.u32 %v4971, 16
        %v5807 = vrot.slane %v5805, 1
        %v5808 = vsel %vm478, %v5803, %v5807
        %v5809 = vshrl.u32 %v5045, 16
        %v5811 = vor.u32 %v5809, %v5767
        %v5813 = vshll.u32 %v5049, 16
        %v5815 = vrot.slane %v5813, 1
        %v5816 = vsel %vm478, %v5811, %v5815
        %v5817 = vshrl.u32 %v5119, 16
        %v5819 = vor.u32 %v5817, %v5775
        %v5821 = vshll.u32 %v5121, 16
        %v5823 = vrot.slane %v5821, 1
        %v5824 = vsel %vm478, %v5819, %v5823
        %v5825 = vshrl.u32 %v5195, 16
        %v5827 = vor.u32 %v5825, %v5783
        %v5829 = vshll.u32 %v5199, 16
        %v5831 = vrot.slane %v5829, 1
        %v5832 = vsel %vm478, %v5827, %v5831
        %v5833 = vshrl.u32 %v5267, 16
        %v5835 = vor.u32 %v5833, %v5791
        %v5837 = vshll.u32 %v5269, 16
        %v5839 = vrot.slane %v5837, 1
        %v5840 = vsel %vm478, %v5835, %v5839
        %v5841 = vshrl.u32 %v4867, 16
        %v5843 = vor.u32 %v5841, %v5799
        %v5845 = vshll.u32 %v4875, 16
        %v5847 = vrot.slane %v5845, 1
        %v5848 = vsel %vm478, %v5843, %v5847
        %v5849 = vshrl.u32 %v4971, 16
        %v5851 = vor.u32 %v5849, %v5807
        %v5853 = vshll.u32 %v4973, 16
        %v5855 = vrot.slane %v5853, 1
        %v5856 = vsel %vm478, %v5851, %v5855
        %v5857 = vshrl.u32 %v5049, 16
        %v5859 = vor.u32 %v5857, %v5815
        %v5861 = vshll.u32 %v5053, 16
        %v5863 = vrot.slane %v5861, 1
        %v5864 = vsel %vm478, %v5859, %v5863
        %v5865 = vshrl.u32 %v5121, 16
        %v5867 = vor.u32 %v5865, %v5823
        %v5869 = vshll.u32 %v5123, 16
        %v5871 = vrot.slane %v5869, 1
        %v5872 = vsel %vm478, %v5867, %v5871
        %v5873 = vshrl.u32 %v5199, 16
        %v5875 = vor.u32 %v5873, %v5831
        %v5877 = vshll.u32 %v5203, 16
        %v5879 = vrot.slane %v5877, 1
        %v5880 = vsel %vm478, %v5875, %v5879
        %v5881 = vshrl.u32 %v5269, 16
        %v5883 = vor.u32 %v5881, %v5839
        %v5885 = vshll.u32 %v5271, 16
        %v5887 = vrot.slane %v5885, 1
        %v5888 = vsel %vm478, %v5883, %v5887
        %v5889 = vshrl.u32 %v4875, 16
        %v5891 = vor.u32 %v5889, %v5847
        %v5893 = vshll.u32 %v4883, 16
        %v5895 = vrot.slane %v5893, 1
        %v5896 = vsel %vm478, %v5891, %v5895
        %v5897 = vshrl.u32 %v4973, 16
        %v5899 = vor.u32 %v5897, %v5855
        %v5901 = vshll.u32 %v4975, 16
        %v5903 = vrot.slane %v5901, 1
        %v5904 = vsel %vm478, %v5899, %v5903
        %v5905 = vshrl.u32 %v5053, 16
        %v5907 = vor.u32 %v5905, %v5863
        %v5909 = vshll.u32 %v5057, 16
        %v5911 = vrot.slane %v5909, 1
        %v5912 = vsel %vm478, %v5907, %v5911
        %v5913 = vshrl.u32 %v5123, 16
        %v5915 = vor.u32 %v5913, %v5871
        %v5917 = vshll.u32 %v5125, 16
        %v5919 = vrot.slane %v5917, 1
        %v5920 = vsel %vm478, %v5915, %v5919
        %v5921 = vshrl.u32 %v5203, 16
        %v5923 = vor.u32 %v5921, %v5879
        %v5925 = vshll.u32 %v5207, 16
        %v5927 = vrot.slane %v5925, 1
        %v5928 = vsel %vm478, %v5923, %v5927
        %v5929 = vshrl.u32 %v5271, 16
        %v5931 = vor.u32 %v5929, %v5887
        %v5933 = vshll.u32 %v5273, 16
        %v5935 = vrot.slane %v5933, 1
        %v5936 = vsel %vm478, %v5931, %v5935
        %v5937 = vshrl.u32 %v4883, 16
        %v5939 = vor.u32 %v5937, %v5895
        %v5941 = vshll.u32 %v4891, 16
        %v5943 = vrot.slane %v5941, 1
        %v5944 = vsel %vm478, %v5939, %v5943
        %v5945 = vshrl.u32 %v4975, 16
        %v5947 = vor.u32 %v5945, %v5903
        %v5949 = vshll.u32 %v4977, 16
        %v5951 = vrot.slane %v5949, 1
        %v5952 = vsel %vm478, %v5947, %v5951
        %v5953 = vshrl.u32 %v5057, 16
        %v5955 = vor.u32 %v5953, %v5911
        %v5957 = vshll.u32 %v5061, 16
        %v5959 = vrot.slane %v5957, 1
        %v5960 = vsel %vm478, %v5955, %v5959
        %v5961 = vshrl.u32 %v5125, 16
        %v5963 = vor.u32 %v5961, %v5919
        %v5965 = vshll.u32 %v5127, 16
        %v5967 = vrot.slane %v5965, 1
        %v5968 = vsel %vm478, %v5963, %v5967
        %v5969 = vshrl.u32 %v5207, 16
        %v5971 = vor.u32 %v5969, %v5927
        %v5973 = vshll.u32 %v5211, 16
        %v5975 = vrot.slane %v5973, 1
        %v5976 = vsel %vm478, %v5971, %v5975
        %v5977 = vshrl.u32 %v5273, 16
        %v5979 = vor.u32 %v5977, %v5935
        %v5981 = vshll.u32 %v5275, 16
        %v5983 = vrot.slane %v5981, 1
        %v5984 = vsel %vm478, %v5979, %v5983
        %v5985 = vshrl.u32 %v4891, 16
        %v5987 = vor.u32 %v5985, %v5943
        %v5989 = vshll.u32 %v4899, 16
        %v5991 = vrot.slane %v5989, 1
        %v5992 = vsel %vm478, %v5987, %v5991
        %v5993 = vshrl.u32 %v4977, 16
        %v5995 = vor.u32 %v5993, %v5951
        %v5997 = vshll.u32 %v4979, 16
        %v5999 = vrot.slane %v5997, 1
        %v6000 = vsel %vm478, %v5995, %v5999
        %v6001 = vshrl.u32 %v5061, 16
        %v6003 = vor.u32 %v6001, %v5959
        %v6005 = vshll.u32 %v5065, 16
        %v6007 = vrot.slane %v6005, 1
        %v6008 = vsel %vm478, %v6003, %v6007
        %v6009 = vshrl.u32 %v5127, 16
        %v6011 = vor.u32 %v6009, %v5967
        %v6013 = vshll.u32 %v5129, 16
        %v6015 = vrot.slane %v6013, 1
        %v6016 = vsel %vm478, %v6011, %v6015
        %v6017 = vshrl.u32 %v5211, 16
        %v6019 = vor.u32 %v6017, %v5975
        %v6021 = vshll.u32 %v5215, 16
        %v6023 = vrot.slane %v6021, 1
        %v6024 = vsel %vm478, %v6019, %v6023
        %v6025 = vshrl.u32 %v5275, 16
        %v6027 = vor.u32 %v6025, %v5983
        %v6029 = vshll.u32 %v5277, 16
        %v6031 = vrot.slane %v6029, 1
        %v6032 = vsel %vm478, %v6027, %v6031
        %v6033 = vshrl.u32 %v4899, 16
        %v6035 = vor.u32 %v6033, %v5991
        %v6037 = vshll.u32 %v4907, 16
        %v6039 = vrot.slane %v6037, 1
        %v6040 = vsel %vm478, %v6035, %v6039
        %v6041 = vshrl.u32 %v4979, 16
        %v6043 = vor.u32 %v6041, %v5999
        %v6045 = vshll.u32 %v4981, 16
        %v6047 = vrot.slane %v6045, 1
        %v6048 = vsel %vm478, %v6043, %v6047
        %v6049 = vshrl.u32 %v5065, 16
        %v6051 = vor.u32 %v6049, %v6007
        %v6053 = vshll.u32 %v5069, 16
        %v6055 = vrot.slane %v6053, 1
        %v6056 = vsel %vm478, %v6051, %v6055
        %v6057 = vshrl.u32 %v5129, 16
        %v6059 = vor.u32 %v6057, %v6015
        %v6061 = vshll.u32 %v5131, 16
        %v6063 = vrot.slane %v6061, 1
        %v6064 = vsel %vm478, %v6059, %v6063
        %v6065 = vshrl.u32 %v5215, 16
        %v6067 = vor.u32 %v6065, %v6023
        %v6069 = vshll.u32 %v5219, 16
        %v6071 = vrot.slane %v6069, 1
        %v6072 = vsel %vm478, %v6067, %v6071
        %v6073 = vshrl.u32 %v5277, 16
        %v6075 = vor.u32 %v6073, %v6031
        %v6077 = vshll.u32 %v5279, 16
        %v6079 = vrot.slane %v6077, 1
        %v6080 = vsel %vm478, %v6075, %v6079
        %v6081 = vshrl.u32 %v4907, 16
        %v6083 = vor.u32 %v6081, %v6039
        %v6085 = vshll.u32 %v4915, 16
        %v6087 = vrot.slane %v6085, 1
        %v6088 = vsel %vm478, %v6083, %v6087
        %v6089 = vshrl.u32 %v4981, 16
        %v6091 = vor.u32 %v6089, %v6047
        %v6093 = vshll.u32 %v4983, 16
        %v6095 = vrot.slane %v6093, 1
        %v6096 = vsel %vm478, %v6091, %v6095
        %v6097 = vshrl.u32 %v5069, 16
        %v6099 = vor.u32 %v6097, %v6055
        %v6101 = vshll.u32 %v5073, 16
        %v6103 = vrot.slane %v6101, 1
        %v6104 = vsel %vm478, %v6099, %v6103
        %v6105 = vshrl.u32 %v5131, 16
        %v6107 = vor.u32 %v6105, %v6063
        %v6109 = vshll.u32 %v5133, 16
        %v6111 = vrot.slane %v6109, 1
        %v6112 = vsel %vm478, %v6107, %v6111
        %v6113 = vshrl.u32 %v5219, 16
        %v6115 = vor.u32 %v6113, %v6071
        %v6117 = vshll.u32 %v5223, 16
        %v6119 = vrot.slane %v6117, 1
        %v6120 = vsel %vm478, %v6115, %v6119
        %v6121 = vshrl.u32 %v5279, 16
        %v6123 = vor.u32 %v6121, %v6079
        %v6125 = vshll.u32 %v5281, 16
        %v6127 = vrot.slane %v6125, 1
        %v6128 = vsel %vm478, %v6123, %v6127
        %v6129 = vshrl.u32 %v4915, 16
        %v6131 = vor.u32 %v6129, %v6087
        %v6133 = vshll.u32 %v4923, 16
        %v6135 = vrot.slane %v6133, 1
        %v6136 = vsel %vm478, %v6131, %v6135
        %v6137 = vshrl.u32 %v4983, 16
        %v6139 = vor.u32 %v6137, %v6095
        %v6141 = vshll.u32 %v4985, 16
        %v6143 = vrot.slane %v6141, 1
        %v6144 = vsel %vm478, %v6139, %v6143
        %v6145 = vshrl.u32 %v5073, 16
        %v6147 = vor.u32 %v6145, %v6103
        %v6149 = vshll.u32 %v5077, 16
        %v6151 = vrot.slane %v6149, 1
        %v6152 = vsel %vm478, %v6147, %v6151
        %v6153 = vshrl.u32 %v5133, 16
        %v6155 = vor.u32 %v6153, %v6111
        %v6157 = vshll.u32 %v5135, 16
        %v6159 = vrot.slane %v6157, 1
        %v6160 = vsel %vm478, %v6155, %v6159
        %v6161 = vshrl.u32 %v5223, 16
        %v6163 = vor.u32 %v6161, %v6119
        %v6165 = vshll.u32 %v5227, 16
        %v6167 = vrot.slane %v6165, 1
        %v6168 = vsel %vm478, %v6163, %v6167
        %v6169 = vshrl.u32 %v5281, 16
        %v6171 = vor.u32 %v6169, %v6127
        %v6173 = vshll.u32 %v5283, 16
        %v6175 = vrot.slane %v6173, 1
        %v6176 = vsel %vm478, %v6171, %v6175
        %v6177 = vshrl.u32 %v4923, 16
        %v6179 = vor.u32 %v6177, %v6135
        %v6181 = vshll.u32 %v4931, 16
        %v6183 = vrot.slane %v6181, 1
        %v6184 = vsel %vm478, %v6179, %v6183
        %v6185 = vshrl.u32 %v4985, 16
        %v6187 = vor.u32 %v6185, %v6143
        %v6189 = vshll.u32 %v4987, 16
        %v6191 = vrot.slane %v6189, 1
        %v6192 = vsel %vm478, %v6187, %v6191
        %v6193 = vshrl.u32 %v5077, 16
        %v6195 = vor.u32 %v6193, %v6151
        %v6197 = vshll.u32 %v5081, 16
        %v6199 = vrot.slane %v6197, 1
        %v6200 = vsel %vm478, %v6195, %v6199
        %v6201 = vshrl.u32 %v5135, 16
        %v6203 = vor.u32 %v6201, %v6159
        %v6205 = vshll.u32 %v5137, 16
        %v6207 = vrot.slane %v6205, 1
        %v6208 = vsel %vm478, %v6203, %v6207
        %v6209 = vshrl.u32 %v5227, 16
        %v6211 = vor.u32 %v6209, %v6167
        %v6213 = vshll.u32 %v5231, 16
        %v6215 = vrot.slane %v6213, 1
        %v6216 = vsel %vm478, %v6211, %v6215
        %v6217 = vshrl.u32 %v5283, 16
        %v6219 = vor.u32 %v6217, %v6175
        %v6221 = vshll.u32 %v5285, 16
        %v6223 = vrot.slane %v6221, 1
        %v6224 = vsel %vm478, %v6219, %v6223
        %v6225 = vshrl.u32 %v4931, 16
        %v6227 = vor.u32 %v6225, %v6183
        %v6229 = vshll.u32 %v4939, 16
        %v6231 = vrot.slane %v6229, 1
        %v6232 = vsel %vm478, %v6227, %v6231
        %v6233 = vshrl.u32 %v4987, 16
        %v6235 = vor.u32 %v6233, %v6191
        %v6237 = vshll.u32 %v5004, 16
        %v6239 = vrot.slane %v6237, 1
        %v6240 = vsel %vm478, %v6235, %v6239
        %v6241 = vshrl.u32 %v5081, 16
        %v6243 = vor.u32 %v6241, %v6199
        %v6245 = vshll.u32 %v5090, 16
        %v6247 = vrot.slane %v6245, 1
        %v6248 = vsel %vm478, %v6243, %v6247
        %v6249 = vshrl.u32 %v5137, 16
        %v6251 = vor.u32 %v6249, %v6207
        %v6253 = vshll.u32 %v5154, 16
        %v6255 = vrot.slane %v6253, 1
        %v6256 = vsel %vm478, %v6251, %v6255
        %v6257 = vshrl.u32 %v5231, 16
        %v6259 = vor.u32 %v6257, %v6215
        %v6261 = vshll.u32 %v5240, 16
        %v6263 = vrot.slane %v6261, 1
        %v6264 = vsel %vm478, %v6259, %v6263
        %v6265 = vshrl.u32 %v5285, 16
        %v6267 = vor.u32 %v6265, %v6223
        %v6269 = vshll.u32 %v5287, 16
        %v6271 = vrot.slane %v6269, 1
        %v6272 = vsel %vm478, %v6267, %v6271
        %v6273 = vshrl.u32 %v4939, 16
        %v6275 = vor.u32 %v6273, %v6231
        %v6277 = vshll.u32 %v4947, 16
        %v6279 = vrot.slane %v6277, 1
        %v6280 = vsel %vm478, %v6275, %v6279
        %v6282 = vshll.u32 %v4989, 16
        %v6284 = vrot.slane %v6282, 1
        %v6285 = vsel %vm478, %v6235, %v6284
        %v6286 = vshrl.u32 %v5004, 16
        %v6288 = vor.u32 %v6286, %v6239
        %v6290 = vshll.u32 %v5006, 16
        %v6292 = vrot.slane %v6290, 1
        %v6293 = vsel %vm478, %v6288, %v6292
        %v6294 = vshrl.u32 %v5090, 16
        %v6296 = vor.u32 %v6294, %v6247
        %v6298 = vshll.u32 %v5099, 16
        %v6300 = vrot.slane %v6298, 1
        %v6301 = vsel %vm478, %v6296, %v6300
        %v6303 = vshll.u32 %v5139, 16
        %v6305 = vrot.slane %v6303, 1
        %v6306 = vsel %vm478, %v6251, %v6305
        %v6307 = vshrl.u32 %v5154, 16
        %v6309 = vor.u32 %v6307, %v6255
        %v6311 = vshll.u32 %v5156, 16
        %v6313 = vrot.slane %v6311, 1
        %v6314 = vsel %vm478, %v6309, %v6313
        %v6315 = vshrl.u32 %v5240, 16
        %v6317 = vor.u32 %v6315, %v6263
        %v6319 = vshll.u32 %v5249, 16
        %v6321 = vrot.slane %v6319, 1
        %v6322 = vsel %vm478, %v6317, %v6321
        %v6323 = vshrl.u32 %v5287, 16
        %v6325 = vor.u32 %v6323, %v6271
        %v6327 = vshll.u32 %v5289, 16
        %v6329 = vrot.slane %v6327, 1
        %v6330 = vsel %vm478, %v6325, %v6329
        %v6331 = vshrl.u32 %v4947, 16
        %v6333 = vor.u32 %v6331, %v6279
        %v6335 = vshll.u32 %v4948, 16
        %v6337 = vrot.slane %v6335, 1
        %v6338 = vsel %vm478, %v6333, %v6337
        %v6339 = vshrl.u32 %v4989, 16
        %v6341 = vor.u32 %v6339, %v6284
        %v6343 = vshll.u32 %v4988, 16
        %v6345 = vrot.slane %v6343, 1
        %v6346 = vsel %vm478, %v6341, %v6345
        %v6347 = vshrl.u32 %v5006, 16
        %v6349 = vor.u32 %v6347, %v6292
        %v6351 = vshll.u32 %v5005, 16
        %v6353 = vrot.slane %v6351, 1
        %v6354 = vsel %vm478, %v6349, %v6353
        %v6355 = vshrl.u32 %v5099, 16
        %v6357 = vor.u32 %v6355, %v6300
        %v6359 = vshll.u32 %v5094, 16
        %v6361 = vrot.slane %v6359, 1
        %v6362 = vsel %vm478, %v6357, %v6361
        %v6363 = vshrl.u32 %v5139, 16
        %v6365 = vor.u32 %v6363, %v6305
        %v6367 = vshll.u32 %v5138, 16
        %v6369 = vrot.slane %v6367, 1
        %v6370 = vsel %vm478, %v6365, %v6369
        %v6371 = vshrl.u32 %v5156, 16
        %v6373 = vor.u32 %v6371, %v6313
        %v6375 = vshll.u32 %v5155, 16
        %v6377 = vrot.slane %v6375, 1
        %v6378 = vsel %vm478, %v6373, %v6377
        %v6379 = vshrl.u32 %v5249, 16
        %v6381 = vor.u32 %v6379, %v6321
        %v6383 = vshll.u32 %v5244, 16
        %v6385 = vrot.slane %v6383, 1
        %v6386 = vsel %vm478, %v6381, %v6385
        %v6387 = vshrl.u32 %v5289, 16
        %v6389 = vor.u32 %v6387, %v6329
        %v6391 = vshll.u32 %v5288, 16
        %v6393 = vrot.slane %v6391, 1
        %v6394 = vsel %vm478, %v6389, %v6393
        %v6673 = vunpack.c.l.b16 %v5290
        %v6674 = vunpack.c.l.b16 %v5291
        %v6675 = vunpack.c.l.b16 %v5292
        %v6676 = vunpack.c.l.b16 %v5293
        %v6677 = vunpack.c.l.b16 %v5294
        %v6678 = vunpack.c.l.b16 %v5295
        %v6679 = vunpack.c.l.b16 %v5296
        %v6680 = vunpack.c.l.b16 %v5297
        %v6681 = vunpack.c.l.b16 %v5298
        %v6682 = vunpack.c.l.b16 %v5299
        %v6683 = vunpack.c.l.b16 %v5300
        %v6684 = vunpack.c.l.b16 %v5301
        %v6685 = vunpack.c.l.b16 %v5302
        %v6686 = vunpack.c.l.b16 %v5303
        %v6687 = vunpack.c.l.b16 %v5304
        %v6688 = vunpack.c.l.b16 %v5305
        %v6689 = vunpack.c.l.b16 %v5306
        %v6690 = vunpack.c.l.b16 %v5307
        %v6691 = vunpack.c.l.b16 %v5308
        %v6692 = vunpack.c.l.b16 %v5309
        %v6693 = vunpack.c.l.b16 %v5310
        %v6694 = vunpack.c.l.b16 %v5311
        %v6695 = vunpack.c.l.b16 %v5312
        %v6696 = vunpack.c.l.b16 %v5313
        %v6697 = vunpack.c.l.b16 %v5314
        %v6698 = vunpack.c.l.b16 %v5315
        %v6699 = vunpack.c.l.b16 %v5316
        %v6700 = vunpack.c.l.b16 %v5317
        %v6701 = vunpack.c.l.b16 %v5318
        %v6702 = vunpack.c.l.b16 %v5319
        %v6703 = vunpack.c.l.b16 %v5320
        %v6704 = vunpack.c.l.b16 %v5321
        %v6705 = vunpack.c.l.b16 %v5322
        %v6706 = vunpack.c.l.b16 %v5323
        %v6707 = vunpack.c.l.b16 %v5324
        %v6708 = vunpack.c.l.b16 %v5325
        %v6709 = vunpack.c.l.b16 %v5326
        %v6710 = vunpack.c.l.b16 %v5327
        %v6711 = vunpack.c.l.b16 %v5328
        %v6712 = vunpack.c.l.b16 %v5329
        %v6713 = vunpack.c.l.b16 %v5330
        %v6714 = vunpack.c.l.b16 %v5331
        %v6715 = vunpack.c.l.b16 %v5332
        %v6716 = vunpack.c.l.b16 %v5333
        %v6717 = vunpack.c.l.b16 %v5334
        %v6718 = vunpack.c.l.b16 %v5335
        %v6719 = vunpack.c.l.b16 %v5336
        %v6720 = vunpack.c.l.b16 %v5337
        %v6721 = vunpack.c.l.b16 %v5338
        %v6722 = vunpack.c.l.b16 %v5339
        %v6723 = vunpack.c.l.b16 %v5340
        %v6724 = vunpack.c.l.b16 %v5341
        %v6725 = vunpack.c.l.b16 %v5342
        %v6726 = vunpack.c.l.b16 %v5343
        %v6727 = vunpack.c.l.b16 %v5344
        %v6728 = vunpack.c.l.b16 %v5345
        %v6729 = vunpack.c.l.b16 %v5346
        %v6730 = vunpack.c.l.b16 %v5347
        %v6731 = vunpack.c.l.b16 %v5348
        %v6732 = vunpack.c.l.b16 %v5349
        %v6733 = vunpack.c.l.b16 %v5350
        %v6734 = vunpack.c.l.b16 %v5351
        %v6735 = vunpack.c.l.b16 %v5352
        %v6736 = vunpack.c.l.b16 %v5353
        %v6737 = vunpack.c.l.b16 %v5354
        %v6738 = vunpack.c.l.b16 %v5355
        %v6739 = vunpack.c.l.b16 %v5356
        %v6740 = vunpack.c.l.b16 %v5357
        %v6741 = vunpack.c.l.b16 %v5358
        %v6742 = vunpack.c.l.b16 %v5359
        %v6743 = vunpack.c.l.b16 %v5360
        %v6744 = vunpack.c.l.b16 %v5361
        %v6745 = vunpack.c.l.b16 %v5362
        %v6746 = vunpack.c.l.b16 %v5363
        %v6747 = vunpack.c.l.b16 %v5364
        %v6748 = vunpack.c.l.b16 %v5365
        %v6749 = vunpack.c.l.b16 %v5366
        %v6750 = vunpack.c.l.b16 %v5367
        %v6751 = vunpack.c.l.b16 %v5368
        %v6752 = vunpack.c.l.b16 %v5369
        %v6753 = vunpack.c.l.b16 %v5370
        %v6754 = vunpack.c.l.b16 %v5371
        %v6755 = vunpack.c.l.b16 %v5372
        %v6756 = vunpack.c.l.b16 %v5373
        %v6757 = vunpack.c.l.b16 %v5374
        %v6758 = vunpack.c.l.b16 %v5375
        %v6759 = vunpack.c.l.b16 %v5376
        %v6760 = vunpack.c.l.b16 %v5377
        %v6761 = vunpack.c.l.b16 %v5378
        %v6762 = vunpack.c.l.b16 %v5379
        %v6763 = vunpack.c.l.b16 %v5380
        %v6764 = vunpack.c.l.b16 %v5381
        %v6765 = vunpack.c.l.b16 %v5382
        %v6766 = vunpack.c.l.b16 %v5383
        %v6767 = vunpack.c.l.b16 %v5384
        %v6768 = vunpack.c.l.b16 %v5385
        %v6769 = vunpack.c.l.b16 %v5386
        %v6770 = vunpack.c.l.b16 %v5387
        %v6771 = vunpack.c.l.b16 %v5388
        %v6772 = vunpack.c.l.b16 %v5389
        %v6773 = vunpack.c.l.b16 %v5390
        %v6774 = vunpack.c.l.b16 %v5391
        %v6775 = vunpack.c.l.b16 %v5392
        %v6776 = vunpack.c.l.b16 %v5393
        %v6777 = vunpack.c.l.b16 %v5394
        %v6778 = vunpack.c.l.b16 %v5395
        %v6779 = vunpack.c.l.b16 %v5396
        %v6780 = vunpack.c.l.b16 %v5397
        %v6781 = vunpack.c.l.b16 %v5398
        %v6782 = vunpack.c.l.b16 %v5399
        %v6783 = vunpack.c.l.b16 %v5400
        %v6784 = vunpack.c.l.b16 %v5401
        %v6785 = vunpack.c.l.b16 %v5402
        %v6786 = vunpack.c.l.b16 %v5403
        %v6787 = vunpack.c.l.b16 %v5404
        %v6788 = vunpack.c.l.b16 %v5405
        %v6789 = vunpack.c.l.b16 %v5406
        %v6790 = vunpack.c.l.b16 %v5407
        %v6791 = vunpack.c.l.b16 %v5408
        %v6792 = vunpack.c.l.b16 %v5409
        %v6793 = vunpack.c.l.b16 %v5410
        %v6794 = vunpack.c.l.b16 %v5411
        %v6795 = vunpack.c.l.b16 %v5412
        %v6796 = vunpack.c.l.b16 %v5413
        %v6797 = vunpack.c.l.b16 %v5414
        %v6798 = vunpack.c.l.b16 %v5415
        %v6799 = vunpack.c.l.b16 %v5416
        %v6800 = vunpack.c.l.b16 %v5417
        %v6801 = vunpack.c.l.b16 %v5418
        %v6802 = vunpack.c.l.b16 %v5419
        %v6803 = vunpack.c.l.b16 %v5420
        %v6804 = vunpack.c.l.b16 %v5421
        %v6805 = vunpack.c.l.b16 %v5422
        %v6806 = vunpack.c.l.b16 %v5423
        %v6807 = vunpack.c.l.b16 %v5424
        %v6808 = vunpack.c.l.b16 %v5425
        %v6809 = vunpack.c.l.b16 %v5426
        %v6810 = vunpack.c.l.b16 %v5427
        %v6811 = vunpack.c.l.b16 %v5428
        %v6812 = vunpack.c.l.b16 %v5429
        %v6813 = vunpack.c.l.b16 %v5430
        %v6814 = vunpack.c.l.b16 %v5431
        %v6815 = vunpack.c.l.b16 %v5432
        %v6816 = vunpack.c.l.b16 %v5433
        %v6817 = vpack.c.b16 %v6674, %v6673
        %v6818 = vpack.c.b16 %v6676, %v6675
        %v6819 = vpack.c.b16 %v6678, %v6677
        %v6820 = vpack.c.b16 %v6680, %v6679
        %v6821 = vpack.c.b16 %v6682, %v6681
        %v6822 = vpack.c.b16 %v6684, %v6683
        %v6823 = vpack.c.b16 %v6686, %v6685
        %v6824 = vpack.c.b16 %v6688, %v6687
        %v6825 = vpack.c.b16 %v6690, %v6689
        %v6826 = vpack.c.b16 %v6692, %v6691
        %v6827 = vpack.c.b16 %v6694, %v6693
        %v6828 = vpack.c.b16 %v6696, %v6695
        %v6829 = vpack.c.b16 %v6698, %v6697
        %v6830 = vpack.c.b16 %v6700, %v6699
        %v6831 = vpack.c.b16 %v6702, %v6701
        %v6832 = vpack.c.b16 %v6704, %v6703
        %v6833 = vpack.c.b16 %v6706, %v6705
        %v6834 = vpack.c.b16 %v6708, %v6707
        %v6835 = vpack.c.b16 %v6710, %v6709
        %v6836 = vpack.c.b16 %v6712, %v6711
        %v6837 = vpack.c.b16 %v6714, %v6713
        %v6838 = vpack.c.b16 %v6716, %v6715
        %v6839 = vpack.c.b16 %v6718, %v6717
        %v6840 = vpack.c.b16 %v6720, %v6719
        %v6841 = vpack.c.b16 %v6722, %v6721
        %v6842 = vpack.c.b16 %v6724, %v6723
        %v6843 = vpack.c.b16 %v6726, %v6725
        %v6844 = vpack.c.b16 %v6728, %v6727
        %v6845 = vpack.c.b16 %v6730, %v6729
        %v6846 = vpack.c.b16 %v6732, %v6731
        %v6847 = vpack.c.b16 %v6734, %v6733
        %v6848 = vpack.c.b16 %v6736, %v6735
        %v6849 = vpack.c.b16 %v6738, %v6737
        %v6850 = vpack.c.b16 %v6740, %v6739
        %v6851 = vpack.c.b16 %v6742, %v6741
        %v6852 = vpack.c.b16 %v6744, %v6743
        %v6853 = vpack.c.b16 %v6746, %v6745
        %v6854 = vpack.c.b16 %v6748, %v6747
        %v6855 = vpack.c.b16 %v6750, %v6749
        %v6856 = vpack.c.b16 %v6752, %v6751
        %v6857 = vpack.c.b16 %v6754, %v6753
        %v6858 = vpack.c.b16 %v6756, %v6755
        %v6859 = vpack.c.b16 %v6758, %v6757
        %v6860 = vpack.c.b16 %v6760, %v6759
        %v6861 = vpack.c.b16 %v6762, %v6761
        %v6862 = vpack.c.b16 %v6764, %v6763
        %v6863 = vpack.c.b16 %v6766, %v6765
        %v6864 = vpack.c.b16 %v6768, %v6767
        %v6865 = vpack.c.b16 %v6770, %v6769
        %v6866 = vpack.c.b16 %v6772, %v6771
        %v6867 = vpack.c.b16 %v6774, %v6773
        %v6868 = vpack.c.b16 %v6776, %v6775
        %v6869 = vpack.c.b16 %v6778, %v6777
        %v6870 = vpack.c.b16 %v6780, %v6779
        %v6871 = vpack.c.b16 %v6782, %v6781
        %v6872 = vpack.c.b16 %v6784, %v6783
        %v6873 = vpack.c.b16 %v6786, %v6785
        %v6874 = vpack.c.b16 %v6788, %v6787
        %v6875 = vpack.c.b16 %v6790, %v6789
        %v6876 = vpack.c.b16 %v6792, %v6791
        %v6877 = vpack.c.b16 %v6794, %v6793
        %v6878 = vpack.c.b16 %v6796, %v6795
        %v6879 = vpack.c.b16 %v6798, %v6797
        %v6880 = vpack.c.b16 %v6800, %v6799
        %v6881 = vpack.c.b16 %v6802, %v6801
        %v6882 = vpack.c.b16 %v6804, %v6803
        %v6883 = vpack.c.b16 %v6806, %v6805
        %v6884 = vpack.c.b16 %v6808, %v6807
        %v6885 = vpack.c.b16 %v6810, %v6809
        %v6886 = vpack.c.b16 %v6812, %v6811
        %v6887 = vpack.c.b16 %v6814, %v6813
        %v6888 = vpack.c.b16 %v6816, %v6815
        %6961 = vmatprep.subr.bf16.mxu0 0
        %6962 = vmatpush1.bf16.msra.mxu0 %v6817
        %6963 = vmatprep.subr.bf16.mxu0 0
        %6964 = vmatpush1.bf16.msra.mxu0 %v6818
        %6965 = vmatprep.subr.bf16.mxu0 0
        %6966 = vmatpush1.bf16.msra.mxu0 %v6819
        %6967 = vmatprep.subr.bf16.mxu0 0
        %6968 = vmatpush1.bf16.msra.mxu0 %v6820
        %6969 = vmatprep.subr.bf16.mxu0 0
        %6970 = vmatpush1.bf16.msra.mxu0 %v6821
        %6971 = vmatprep.subr.bf16.mxu0 0
        %6972 = vmatpush1.bf16.msra.mxu0 %v6822
        %6973 = vmatprep.subr.bf16.mxu0 0
        %6974 = vmatpush1.bf16.msra.mxu0 %v6823
        %6975 = vmatprep.subr.bf16.mxu0 0
        %6976 = vmatpush1.bf16.msra.mxu0 %v6824
        %6977 = vmatprep.subr.bf16.mxu0 0
        %6978 = vmatpush1.bf16.msra.mxu0 %v6825
        %6979 = vmatprep.subr.bf16.mxu0 0
        %6980 = vmatpush1.bf16.msra.mxu0 %v6826
        %6981 = vmatprep.subr.bf16.mxu0 0
        %6982 = vmatpush1.bf16.msra.mxu0 %v6827
        %6983 = vmatprep.subr.bf16.mxu0 0
        %6984 = vmatpush1.bf16.msra.mxu0 %v6828
        %6985 = vmatprep.subr.bf16.mxu0 0
        %6986 = vmatpush1.bf16.msra.mxu0 %v6829
        %6987 = vmatprep.subr.bf16.mxu0 0
        %6988 = vmatpush1.bf16.msra.mxu0 %v6830
        %6989 = vmatprep.subr.bf16.mxu0 0
        %6990 = vmatpush1.bf16.msra.mxu0 %v6831
        %6991 = vmatprep.subr.bf16.mxu0 0
        %6992 = vmatpush1.bf16.msra.mxu0 %v6832
        %6993 = vmatprep.mubr.bf16.mxu0 %v5460
        %6994 = vmatmul.mubr.bf16.gmra.mrb[0].mxu0 %v5448
        %v6995 = vpop.f32.mrb[0].mxu0
        %v6996 = vadd.f32 %v5439, %v6995
        %v6997 = vpop.f32.mrb[0].mxu0
        %v6998 = vpop.f32.mrb[0].mxu0
        %v6999 = vadd.f32 %v5439, %v6998
        %v7000 = vpop.f32.mrb[0].mxu0
        %7001 = vmatprep.mubr.bf16.mxu0 %v5552
        %7002 = vmatmul.mubr.bf16.gmra.mrb[0].mxu0 %v4819
        %v7003 = vpop.f32.mrb[0].mxu0
        %v7004 = vadd.f32 %v5439, %v7003
        %v7005 = vpop.f32.mrb[0].mxu0
        %v7006 = vpop.f32.mrb[0].mxu0
        %v7007 = vadd.f32 %v5439, %v7006
        %v7008 = vpop.f32.mrb[0].mxu0
        %7009 = vmatprep.mubr.bf16.mxu0 %v5608
        %7010 = vmatmul.mubr.bf16.gmra.mrb[0].mxu0 %v4827
        %v7011 = vpop.f32.mrb[0].mxu0
        %v7012 = vadd.f32 %v5439, %v7011
        %v7013 = vpop.f32.mrb[0].mxu0
        %v7014 = vpop.f32.mrb[0].mxu0
        %v7015 = vadd.f32 %v5439, %v7014
        %v7016 = vpop.f32.mrb[0].mxu0
        %7017 = vmatprep.mubr.bf16.mxu0 %v5656
        %7018 = vmatmul.mubr.bf16.gmra.mrb[0].mxu0 %v4835
        %v7019 = vpop.f32.mrb[0].mxu0
        %v7020 = vadd.f32 %v5439, %v7019
        %v7021 = vpop.f32.mrb[0].mxu0
        %v7022 = vpop.f32.mrb[0].mxu0
        %v7023 = vadd.f32 %v5439, %v7022
        %v7024 = vpop.f32.mrb[0].mxu0
        %7025 = vmatprep.mubr.bf16.mxu0 %v5704
        %7026 = vmatmul.mubr.bf16.gmra.mrb[0].mxu0 %v4843
        %v7027 = vpop.f32.mrb[0].mxu0
        %v7028 = vadd.f32 %v5439, %v7027
        %v7029 = vpop.f32.mrb[0].mxu0
        %v7030 = vpop.f32.mrb[0].mxu0
        %v7031 = vadd.f32 %v5439, %v7030
        %v7032 = vpop.f32.mrb[0].mxu0
        %7033 = vmatprep.mubr.bf16.mxu0 %v5752
        %7034 = vmatmul.mubr.bf16.gmra.mrb[0].mxu0 %v4851
        %v7035 = vpop.f32.mrb[0].mxu0
        %v7036 = vadd.f32 %v5439, %v7035
        %v7037 = vpop.f32.mrb[0].mxu0
        %v7038 = vpop.f32.mrb[0].mxu0
        %v7039 = vadd.f32 %v5439, %v7038
        %v7040 = vpop.f32.mrb[0].mxu0
        %7041 = vmatprep.mubr.bf16.mxu0 %v5800
        %7042 = vmatmul.mubr.bf16.gmra.mrb[0].mxu0 %v4859
        %v7043 = vpop.f32.mrb[0].mxu0
        %v7044 = vadd.f32 %v5439, %v7043
        %v7045 = vpop.f32.mrb[0].mxu0
        %v7046 = vpop.f32.mrb[0].mxu0
        %v7047 = vadd.f32 %v5439, %v7046
        %v7048 = vpop.f32.mrb[0].mxu0
        %7049 = vmatprep.mubr.bf16.mxu0 %v5848
        %7050 = vmatmul.mubr.bf16.gmra.mrb[0].mxu0 %v4867
        %v7051 = vpop.f32.mrb[0].mxu0
        %v7052 = vadd.f32 %v5439, %v7051
        %v7053 = vpop.f32.mrb[0].mxu0
        %v7054 = vpop.f32.mrb[0].mxu0
        %v7055 = vadd.f32 %v5439, %v7054
        %v7056 = vpop.f32.mrb[0].mxu0
        %7057 = vmatprep.mubr.bf16.mxu0 %v5896
        %7058 = vmatmul.mubr.bf16.gmra.mrb[0].mxu0 %v4875
        %v7059 = vpop.f32.mrb[0].mxu0
        %v7060 = vadd.f32 %v5439, %v7059
        %v7061 = vpop.f32.mrb[0].mxu0
        %v7062 = vpop.f32.mrb[0].mxu0
        %v7063 = vadd.f32 %v5439, %v7062
        %v7064 = vpop.f32.mrb[0].mxu0
        %7065 = vmatprep.mubr.bf16.mxu0 %v5944
        %7066 = vmatmul.mubr.bf16.gmra.mrb[0].mxu0 %v4883
        %v7067 = vpop.f32.mrb[0].mxu0
        %v7068 = vadd.f32 %v5439, %v7067
        %v7069 = vpop.f32.mrb[0].mxu0
        %v7070 = vpop.f32.mrb[0].mxu0
        %v7071 = vadd.f32 %v5439, %v7070
        %v7072 = vpop.f32.mrb[0].mxu0
        %7073 = vmatprep.mubr.bf16.mxu0 %v5992
        %7074 = vmatmul.mubr.bf16.gmra.mrb[0].mxu0 %v4891
        %v7075 = vpop.f32.mrb[0].mxu0
        %v7076 = vadd.f32 %v5439, %v7075
        %v7077 = vpop.f32.mrb[0].mxu0
        %v7078 = vpop.f32.mrb[0].mxu0
        %v7079 = vadd.f32 %v5439, %v7078
        %v7080 = vpop.f32.mrb[0].mxu0
        %7081 = vmatprep.mubr.bf16.mxu0 %v6040
        %7082 = vmatmul.mubr.bf16.gmra.mrb[0].mxu0 %v4899
        %v7083 = vpop.f32.mrb[0].mxu0
        %v7084 = vadd.f32 %v5439, %v7083
        %v7085 = vpop.f32.mrb[0].mxu0
        %v7086 = vpop.f32.mrb[0].mxu0
        %v7087 = vadd.f32 %v5439, %v7086
        %v7088 = vpop.f32.mrb[0].mxu0
        %7089 = vmatprep.mubr.bf16.mxu0 %v6088
        %7090 = vmatmul.mubr.bf16.gmra.mrb[0].mxu0 %v4907
        %v7091 = vpop.f32.mrb[0].mxu0
        %v7092 = vadd.f32 %v5439, %v7091
        %v7093 = vpop.f32.mrb[0].mxu0
        %v7094 = vpop.f32.mrb[0].mxu0
        %v7095 = vadd.f32 %v5439, %v7094
        %v7096 = vpop.f32.mrb[0].mxu0
        %7097 = vmatprep.mubr.bf16.mxu0 %v6136
        %7098 = vmatmul.mubr.bf16.gmra.mrb[0].mxu0 %v4915
        %v7099 = vpop.f32.mrb[0].mxu0
        %v7100 = vadd.f32 %v5439, %v7099
        %v7101 = vpop.f32.mrb[0].mxu0
        %v7102 = vpop.f32.mrb[0].mxu0
        %v7103 = vadd.f32 %v5439, %v7102
        %v7104 = vpop.f32.mrb[0].mxu0
        %7105 = vmatprep.mubr.bf16.mxu0 %v6184
        %7106 = vmatmul.mubr.bf16.gmra.mrb[0].mxu0 %v4923
        %v7107 = vpop.f32.mrb[0].mxu0
        %v7108 = vadd.f32 %v5439, %v7107
        %v7109 = vpop.f32.mrb[0].mxu0
        %v7110 = vpop.f32.mrb[0].mxu0
        %v7111 = vadd.f32 %v5439, %v7110
        %v7112 = vpop.f32.mrb[0].mxu0
        %7113 = vmatprep.mubr.bf16.mxu0 %v6232
        %7114 = vmatmul.mubr.bf16.gmra.mrb[0].mxu0 %v4931
        %v7115 = vpop.f32.mrb[0].mxu0
        %v7116 = vadd.f32 %v5439, %v7115
        %v7117 = vpop.f32.mrb[0].mxu0
        %v7118 = vpop.f32.mrb[0].mxu0
        %v7119 = vadd.f32 %v5439, %v7118
        %v7120 = vpop.f32.mrb[0].mxu0
        %7121 = vmatprep.mubr.bf16.mxu0 %v6280
        %7122 = vmatmul.mubr.bf16.gmra.mrb[0].mxu0 %v4939
        %v7123 = vpop.f32.mrb[0].mxu0
        %v7124 = vadd.f32 %v5439, %v7123
        %v7125 = vpop.f32.mrb[0].mxu0
        %v7126 = vpop.f32.mrb[0].mxu0
        %v7127 = vadd.f32 %v5439, %v7126
        %v7128 = vpop.f32.mrb[0].mxu0
        %7129 = vmatprep.mubr.bf16.mxu0 %v6338
        %7130 = vmatmul.mubr.bf16.gmra.mrb[0].mxu0 %v4947
        %v7131 = vpop.f32.mrb[0].mxu0
        %v7132 = vadd.f32 %v5439, %v7131
        %v7133 = vpop.f32.mrb[0].mxu0
        %v7134 = vpop.f32.mrb[0].mxu0
        %v7135 = vadd.f32 %v5439, %v7134
        %v7136 = vpop.f32.mrb[0].mxu0
        %7137 = vdwg.mxu0
        %7138 = vmatprep.subr.bf16.mxu0 0
        %7139 = vmatpush1.bf16.msra.mxu0 %v6833
        %7140 = vmatprep.subr.bf16.mxu0 0
        %7141 = vmatpush1.bf16.msra.mxu0 %v6834
        %7142 = vmatprep.subr.bf16.mxu0 0
        %7143 = vmatpush1.bf16.msra.mxu0 %v6835
        %7144 = vmatprep.subr.bf16.mxu0 0
        %7145 = vmatpush1.bf16.msra.mxu0 %v6836
        %7146 = vmatprep.subr.bf16.mxu0 0
        %7147 = vmatpush1.bf16.msra.mxu0 %v6837
        %7148 = vmatprep.subr.bf16.mxu0 0
        %7149 = vmatpush1.bf16.msra.mxu0 %v6838
        %7150 = vmatprep.subr.bf16.mxu0 0
        %7151 = vmatpush1.bf16.msra.mxu0 %v6839
        %7152 = vmatprep.subr.bf16.mxu0 0
        %7153 = vmatpush1.bf16.msra.mxu0 %v6840
        %7154 = vmatprep.subr.bf16.mxu0 0
        %7155 = vmatpush1.bf16.msra.mxu0 %v6841
        %7156 = vmatprep.subr.bf16.mxu0 0
        %7157 = vmatpush1.bf16.msra.mxu0 %v6842
        %7158 = vmatprep.subr.bf16.mxu0 0
        %7159 = vmatpush1.bf16.msra.mxu0 %v6843
        %7160 = vmatprep.subr.bf16.mxu0 0
        %7161 = vmatpush1.bf16.msra.mxu0 %v6844
        %7162 = vmatprep.subr.bf16.mxu0 0
        %7163 = vmatpush1.bf16.msra.mxu0 %v6845
        %7164 = vmatprep.subr.bf16.mxu0 0
        %7165 = vmatpush1.bf16.msra.mxu0 %v6846
        %7166 = vmatprep.subr.bf16.mxu0 0
        %7167 = vmatpush1.bf16.msra.mxu0 %v6847
        %7168 = vmatprep.subr.bf16.mxu0 0
        %7169 = vmatpush1.bf16.msra.mxu0 %v6848
        %7170 = vmatprep.mubr.bf16.mxu0 %v5484
        %7171 = vmatmul.mubr.bf16.gmra.mrb[0].mxu0 %v5472
        %v7172 = vpop.f32.mrb[0].mxu0
        %v7173 = vadd.f32 %v6996, %v7172
        %v7174 = vpop.f32.mrb[0].mxu0
        %v7175 = vpop.f32.mrb[0].mxu0
        %v7176 = vadd.f32 %v6999, %v7175
        %v7177 = vpop.f32.mrb[0].mxu0
        %7178 = vmatprep.mubr.bf16.mxu0 %v5564
        %7179 = vmatmul.mubr.bf16.gmra.mrb[0].mxu0 %v5556
        %v7180 = vpop.f32.mrb[0].mxu0
        %v7181 = vadd.f32 %v7004, %v7180
        %v7182 = vpop.f32.mrb[0].mxu0
        %v7183 = vpop.f32.mrb[0].mxu0
        %v7184 = vadd.f32 %v7007, %v7183
        %v7185 = vpop.f32.mrb[0].mxu0
        %7186 = vmatprep.mubr.bf16.mxu0 %v5616
        %7187 = vmatmul.mubr.bf16.gmra.mrb[0].mxu0 %v5564
        %v7188 = vpop.f32.mrb[0].mxu0
        %v7189 = vadd.f32 %v7012, %v7188
        %v7190 = vpop.f32.mrb[0].mxu0
        %v7191 = vpop.f32.mrb[0].mxu0
        %v7192 = vadd.f32 %v7015, %v7191
        %v7193 = vpop.f32.mrb[0].mxu0
        %7194 = vmatprep.mubr.bf16.mxu0 %v5664
        %7195 = vmatmul.mubr.bf16.gmra.mrb[0].mxu0 %v5616
        %v7196 = vpop.f32.mrb[0].mxu0
        %v7197 = vadd.f32 %v7020, %v7196
        %v7198 = vpop.f32.mrb[0].mxu0
        %v7199 = vpop.f32.mrb[0].mxu0
        %v7200 = vadd.f32 %v7023, %v7199
        %v7201 = vpop.f32.mrb[0].mxu0
        %7202 = vmatprep.mubr.bf16.mxu0 %v5712
        %7203 = vmatmul.mubr.bf16.gmra.mrb[0].mxu0 %v5664
        %v7204 = vpop.f32.mrb[0].mxu0
        %v7205 = vadd.f32 %v7028, %v7204
        %v7206 = vpop.f32.mrb[0].mxu0
        %v7207 = vpop.f32.mrb[0].mxu0
        %v7208 = vadd.f32 %v7031, %v7207
        %v7209 = vpop.f32.mrb[0].mxu0
        %7210 = vmatprep.mubr.bf16.mxu0 %v5760
        %7211 = vmatmul.mubr.bf16.gmra.mrb[0].mxu0 %v5712
        %v7212 = vpop.f32.mrb[0].mxu0
        %v7213 = vadd.f32 %v7036, %v7212
        %v7214 = vpop.f32.mrb[0].mxu0
        %v7215 = vpop.f32.mrb[0].mxu0
        %v7216 = vadd.f32 %v7039, %v7215
        %v7217 = vpop.f32.mrb[0].mxu0
        %7218 = vmatprep.mubr.bf16.mxu0 %v5808
        %7219 = vmatmul.mubr.bf16.gmra.mrb[0].mxu0 %v5760
        %v7220 = vpop.f32.mrb[0].mxu0
        %v7221 = vadd.f32 %v7044, %v7220
        %v7222 = vpop.f32.mrb[0].mxu0
        %v7223 = vpop.f32.mrb[0].mxu0
        %v7224 = vadd.f32 %v7047, %v7223
        %v7225 = vpop.f32.mrb[0].mxu0
        %7226 = vmatprep.mubr.bf16.mxu0 %v5856
        %7227 = vmatmul.mubr.bf16.gmra.mrb[0].mxu0 %v5808
        %v7228 = vpop.f32.mrb[0].mxu0
        %v7229 = vadd.f32 %v7052, %v7228
        %v7230 = vpop.f32.mrb[0].mxu0
        %v7231 = vpop.f32.mrb[0].mxu0
        %v7232 = vadd.f32 %v7055, %v7231
        %v7233 = vpop.f32.mrb[0].mxu0
        %7234 = vmatprep.mubr.bf16.mxu0 %v5904
        %7235 = vmatmul.mubr.bf16.gmra.mrb[0].mxu0 %v5856
        %v7236 = vpop.f32.mrb[0].mxu0
        %v7237 = vadd.f32 %v7060, %v7236
        %v7238 = vpop.f32.mrb[0].mxu0
        %v7239 = vpop.f32.mrb[0].mxu0
        %v7240 = vadd.f32 %v7063, %v7239
        %v7241 = vpop.f32.mrb[0].mxu0
        %7242 = vmatprep.mubr.bf16.mxu0 %v5952
        %7243 = vmatmul.mubr.bf16.gmra.mrb[0].mxu0 %v5904
        %v7244 = vpop.f32.mrb[0].mxu0
        %v7245 = vadd.f32 %v7068, %v7244
        %v7246 = vpop.f32.mrb[0].mxu0
        %v7247 = vpop.f32.mrb[0].mxu0
        %v7248 = vadd.f32 %v7071, %v7247
        %v7249 = vpop.f32.mrb[0].mxu0
        %7250 = vmatprep.mubr.bf16.mxu0 %v6000
        %7251 = vmatmul.mubr.bf16.gmra.mrb[0].mxu0 %v5952
        %v7252 = vpop.f32.mrb[0].mxu0
        %v7253 = vadd.f32 %v7076, %v7252
        %v7254 = vpop.f32.mrb[0].mxu0
        %v7255 = vpop.f32.mrb[0].mxu0
        %v7256 = vadd.f32 %v7079, %v7255
        %v7257 = vpop.f32.mrb[0].mxu0
        %7258 = vmatprep.mubr.bf16.mxu0 %v6048
        %7259 = vmatmul.mubr.bf16.gmra.mrb[0].mxu0 %v6000
        %v7260 = vpop.f32.mrb[0].mxu0
        %v7261 = vadd.f32 %v7084, %v7260
        %v7262 = vpop.f32.mrb[0].mxu0
        %v7263 = vpop.f32.mrb[0].mxu0
        %v7264 = vadd.f32 %v7087, %v7263
        %v7265 = vpop.f32.mrb[0].mxu0
        %7266 = vmatprep.mubr.bf16.mxu0 %v6096
        %7267 = vmatmul.mubr.bf16.gmra.mrb[0].mxu0 %v6048
        %v7268 = vpop.f32.mrb[0].mxu0
        %v7269 = vadd.f32 %v7092, %v7268
        %v7270 = vpop.f32.mrb[0].mxu0
        %v7271 = vpop.f32.mrb[0].mxu0
        %v7272 = vadd.f32 %v7095, %v7271
        %v7273 = vpop.f32.mrb[0].mxu0
        %7274 = vmatprep.mubr.bf16.mxu0 %v6144
        %7275 = vmatmul.mubr.bf16.gmra.mrb[0].mxu0 %v6096
        %v7276 = vpop.f32.mrb[0].mxu0
        %v7277 = vadd.f32 %v7100, %v7276
        %v7278 = vpop.f32.mrb[0].mxu0
        %v7279 = vpop.f32.mrb[0].mxu0
        %v7280 = vadd.f32 %v7103, %v7279
        %v7281 = vpop.f32.mrb[0].mxu0
        %7282 = vmatprep.mubr.bf16.mxu0 %v6192
        %7283 = vmatmul.mubr.bf16.gmra.mrb[0].mxu0 %v6144
        %v7284 = vpop.f32.mrb[0].mxu0
        %v7285 = vadd.f32 %v7108, %v7284
        %v7286 = vpop.f32.mrb[0].mxu0
        %v7287 = vpop.f32.mrb[0].mxu0
        %v7288 = vadd.f32 %v7111, %v7287
        %v7289 = vpop.f32.mrb[0].mxu0
        %7290 = vmatprep.mubr.bf16.mxu0 %v6240
        %7291 = vmatmul.mubr.bf16.gmra.mrb[0].mxu0 %v6192
        %v7292 = vpop.f32.mrb[0].mxu0
        %v7293 = vadd.f32 %v7116, %v7292
        %v7294 = vpop.f32.mrb[0].mxu0
        %v7295 = vpop.f32.mrb[0].mxu0
        %v7296 = vadd.f32 %v7119, %v7295
        %v7297 = vpop.f32.mrb[0].mxu0
        %7298 = vmatprep.mubr.bf16.mxu0 %v6293
        %7299 = vmatmul.mubr.bf16.gmra.mrb[0].mxu0 %v6285
        %v7300 = vpop.f32.mrb[0].mxu0
        %v7301 = vadd.f32 %v7124, %v7300
        %v7302 = vpop.f32.mrb[0].mxu0
        %v7303 = vpop.f32.mrb[0].mxu0
        %v7304 = vadd.f32 %v7127, %v7303
        %v7305 = vpop.f32.mrb[0].mxu0
        %7306 = vmatprep.mubr.bf16.mxu0 %v6354
        %7307 = vmatmul.mubr.bf16.gmra.mrb[0].mxu0 %v6346
        %v7308 = vpop.f32.mrb[0].mxu0
        %v7309 = vadd.f32 %v7132, %v7308
        %v7310 = vpop.f32.mrb[0].mxu0
        %v7311 = vpop.f32.mrb[0].mxu0
        %v7312 = vadd.f32 %v7135, %v7311
        %v7313 = vpop.f32.mrb[0].mxu0
        %7314 = vdwg.mxu0
        %7315 = vmatprep.subr.bf16.mxu0 0
        %7316 = vmatpush1.bf16.msra.mxu0 %v6849
        %7317 = vmatprep.subr.bf16.mxu0 0
        %7318 = vmatpush1.bf16.msra.mxu0 %v6850
        %7319 = vmatprep.subr.bf16.mxu0 0
        %7320 = vmatpush1.bf16.msra.mxu0 %v6851
        %7321 = vmatprep.subr.bf16.mxu0 0
        %7322 = vmatpush1.bf16.msra.mxu0 %v6852
        %7323 = vmatprep.subr.bf16.mxu0 0
        %7324 = vmatpush1.bf16.msra.mxu0 %v6853
        %7325 = vmatprep.subr.bf16.mxu0 0
        %7326 = vmatpush1.bf16.msra.mxu0 %v6854
        %7327 = vmatprep.subr.bf16.mxu0 0
        %7328 = vmatpush1.bf16.msra.mxu0 %v6855
        %7329 = vmatprep.subr.bf16.mxu0 0
        %7330 = vmatpush1.bf16.msra.mxu0 %v6856
        %7331 = vmatprep.subr.bf16.mxu0 0
        %7332 = vmatpush1.bf16.msra.mxu0 %v6857
        %7333 = vmatprep.subr.bf16.mxu0 0
        %7334 = vmatpush1.bf16.msra.mxu0 %v6858
        %7335 = vmatprep.subr.bf16.mxu0 0
        %7336 = vmatpush1.bf16.msra.mxu0 %v6859
        %7337 = vmatprep.subr.bf16.mxu0 0
        %7338 = vmatpush1.bf16.msra.mxu0 %v6860
        %7339 = vmatprep.subr.bf16.mxu0 0
        %7340 = vmatpush1.bf16.msra.mxu0 %v6861
        %7341 = vmatprep.subr.bf16.mxu0 0
        %7342 = vmatpush1.bf16.msra.mxu0 %v6862
        %7343 = vmatprep.subr.bf16.mxu0 0
        %7344 = vmatpush1.bf16.msra.mxu0 %v6863
        %7345 = vmatprep.subr.bf16.mxu0 0
        %7346 = vmatpush1.bf16.msra.mxu0 %v6864
        %7347 = vmatprep.mubr.bf16.mxu0 %v5508
        %7348 = vmatmul.mubr.bf16.gmra.mrb[0].mxu0 %v5496
        %v7349 = vpop.f32.mrb[0].mxu0
        %v7350 = vadd.f32 %v7173, %v7349
        %v7351 = vpop.f32.mrb[0].mxu0
        %v7352 = vpop.f32.mrb[0].mxu0
        %v7353 = vadd.f32 %v7176, %v7352
        %v7354 = vpop.f32.mrb[0].mxu0
        %7355 = vmatprep.mubr.bf16.mxu0 %v5576
        %7356 = vmatmul.mubr.bf16.gmra.mrb[0].mxu0 %v5572
        %v7357 = vpop.f32.mrb[0].mxu0
        %v7358 = vadd.f32 %v7181, %v7357
        %v7359 = vpop.f32.mrb[0].mxu0
        %v7360 = vpop.f32.mrb[0].mxu0
        %v7361 = vadd.f32 %v7184, %v7360
        %v7362 = vpop.f32.mrb[0].mxu0
        %7363 = vmatprep.mubr.bf16.mxu0 %v5584
        %7364 = vmatmul.mubr.bf16.gmra.mrb[0].mxu0 %v5624
        %v7365 = vpop.f32.mrb[0].mxu0
        %v7366 = vadd.f32 %v7189, %v7365
        %v7367 = vpop.f32.mrb[0].mxu0
        %v7368 = vpop.f32.mrb[0].mxu0
        %v7369 = vadd.f32 %v7192, %v7368
        %v7370 = vpop.f32.mrb[0].mxu0
        %7371 = vmatprep.mubr.bf16.mxu0 %v5632
        %7372 = vmatmul.mubr.bf16.gmra.mrb[0].mxu0 %v5672
        %v7373 = vpop.f32.mrb[0].mxu0
        %v7374 = vadd.f32 %v7197, %v7373
        %v7375 = vpop.f32.mrb[0].mxu0
        %v7376 = vpop.f32.mrb[0].mxu0
        %v7377 = vadd.f32 %v7200, %v7376
        %v7378 = vpop.f32.mrb[0].mxu0
        %7379 = vmatprep.mubr.bf16.mxu0 %v5680
        %7380 = vmatmul.mubr.bf16.gmra.mrb[0].mxu0 %v5720
        %v7381 = vpop.f32.mrb[0].mxu0
        %v7382 = vadd.f32 %v7205, %v7381
        %v7383 = vpop.f32.mrb[0].mxu0
        %v7384 = vpop.f32.mrb[0].mxu0
        %v7385 = vadd.f32 %v7208, %v7384
        %v7386 = vpop.f32.mrb[0].mxu0
        %7387 = vmatprep.mubr.bf16.mxu0 %v5728
        %7388 = vmatmul.mubr.bf16.gmra.mrb[0].mxu0 %v5768
        %v7389 = vpop.f32.mrb[0].mxu0
        %v7390 = vadd.f32 %v7213, %v7389
        %v7391 = vpop.f32.mrb[0].mxu0
        %v7392 = vpop.f32.mrb[0].mxu0
        %v7393 = vadd.f32 %v7216, %v7392
        %v7394 = vpop.f32.mrb[0].mxu0
        %7395 = vmatprep.mubr.bf16.mxu0 %v5776
        %7396 = vmatmul.mubr.bf16.gmra.mrb[0].mxu0 %v5816
        %v7397 = vpop.f32.mrb[0].mxu0
        %v7398 = vadd.f32 %v7221, %v7397
        %v7399 = vpop.f32.mrb[0].mxu0
        %v7400 = vpop.f32.mrb[0].mxu0
        %v7401 = vadd.f32 %v7224, %v7400
        %v7402 = vpop.f32.mrb[0].mxu0
        %7403 = vmatprep.mubr.bf16.mxu0 %v5824
        %7404 = vmatmul.mubr.bf16.gmra.mrb[0].mxu0 %v5864
        %v7405 = vpop.f32.mrb[0].mxu0
        %v7406 = vadd.f32 %v7229, %v7405
        %v7407 = vpop.f32.mrb[0].mxu0
        %v7408 = vpop.f32.mrb[0].mxu0
        %v7409 = vadd.f32 %v7232, %v7408
        %v7410 = vpop.f32.mrb[0].mxu0
        %7411 = vmatprep.mubr.bf16.mxu0 %v5872
        %7412 = vmatmul.mubr.bf16.gmra.mrb[0].mxu0 %v5912
        %v7413 = vpop.f32.mrb[0].mxu0
        %v7414 = vadd.f32 %v7237, %v7413
        %v7415 = vpop.f32.mrb[0].mxu0
        %v7416 = vpop.f32.mrb[0].mxu0
        %v7417 = vadd.f32 %v7240, %v7416
        %v7418 = vpop.f32.mrb[0].mxu0
        %7419 = vmatprep.mubr.bf16.mxu0 %v5920
        %7420 = vmatmul.mubr.bf16.gmra.mrb[0].mxu0 %v5960
        %v7421 = vpop.f32.mrb[0].mxu0
        %v7422 = vadd.f32 %v7245, %v7421
        %v7423 = vpop.f32.mrb[0].mxu0
        %v7424 = vpop.f32.mrb[0].mxu0
        %v7425 = vadd.f32 %v7248, %v7424
        %v7426 = vpop.f32.mrb[0].mxu0
        %7427 = vmatprep.mubr.bf16.mxu0 %v5968
        %7428 = vmatmul.mubr.bf16.gmra.mrb[0].mxu0 %v6008
        %v7429 = vpop.f32.mrb[0].mxu0
        %v7430 = vadd.f32 %v7253, %v7429
        %v7431 = vpop.f32.mrb[0].mxu0
        %v7432 = vpop.f32.mrb[0].mxu0
        %v7433 = vadd.f32 %v7256, %v7432
        %v7434 = vpop.f32.mrb[0].mxu0
        %7435 = vmatprep.mubr.bf16.mxu0 %v6016
        %7436 = vmatmul.mubr.bf16.gmra.mrb[0].mxu0 %v6056
        %v7437 = vpop.f32.mrb[0].mxu0
        %v7438 = vadd.f32 %v7261, %v7437
        %v7439 = vpop.f32.mrb[0].mxu0
        %v7440 = vpop.f32.mrb[0].mxu0
        %v7441 = vadd.f32 %v7264, %v7440
        %v7442 = vpop.f32.mrb[0].mxu0
        %7443 = vmatprep.mubr.bf16.mxu0 %v6064
        %7444 = vmatmul.mubr.bf16.gmra.mrb[0].mxu0 %v6104
        %v7445 = vpop.f32.mrb[0].mxu0
        %v7446 = vadd.f32 %v7269, %v7445
        %v7447 = vpop.f32.mrb[0].mxu0
        %v7448 = vpop.f32.mrb[0].mxu0
        %v7449 = vadd.f32 %v7272, %v7448
        %v7450 = vpop.f32.mrb[0].mxu0
        %7451 = vmatprep.mubr.bf16.mxu0 %v6112
        %7452 = vmatmul.mubr.bf16.gmra.mrb[0].mxu0 %v6152
        %v7453 = vpop.f32.mrb[0].mxu0
        %v7454 = vadd.f32 %v7277, %v7453
        %v7455 = vpop.f32.mrb[0].mxu0
        %v7456 = vpop.f32.mrb[0].mxu0
        %v7457 = vadd.f32 %v7280, %v7456
        %v7458 = vpop.f32.mrb[0].mxu0
        %7459 = vmatprep.mubr.bf16.mxu0 %v6160
        %7460 = vmatmul.mubr.bf16.gmra.mrb[0].mxu0 %v6200
        %v7461 = vpop.f32.mrb[0].mxu0
        %v7462 = vadd.f32 %v7285, %v7461
        %v7463 = vpop.f32.mrb[0].mxu0
        %v7464 = vpop.f32.mrb[0].mxu0
        %v7465 = vadd.f32 %v7288, %v7464
        %v7466 = vpop.f32.mrb[0].mxu0
        %7467 = vmatprep.mubr.bf16.mxu0 %v6208
        %7468 = vmatmul.mubr.bf16.gmra.mrb[0].mxu0 %v6248
        %v7469 = vpop.f32.mrb[0].mxu0
        %v7470 = vadd.f32 %v7293, %v7469
        %v7471 = vpop.f32.mrb[0].mxu0
        %v7472 = vpop.f32.mrb[0].mxu0
        %v7473 = vadd.f32 %v7296, %v7472
        %v7474 = vpop.f32.mrb[0].mxu0
        %7475 = vmatprep.mubr.bf16.mxu0 %v6306
        %7476 = vmatmul.mubr.bf16.gmra.mrb[0].mxu0 %v6301
        %v7477 = vpop.f32.mrb[0].mxu0
        %v7478 = vadd.f32 %v7301, %v7477
        %v7479 = vpop.f32.mrb[0].mxu0
        %v7480 = vpop.f32.mrb[0].mxu0
        %v7481 = vadd.f32 %v7304, %v7480
        %v7482 = vpop.f32.mrb[0].mxu0
        %7483 = vmatprep.mubr.bf16.mxu0 %v6370
        %7484 = vmatmul.mubr.bf16.gmra.mrb[0].mxu0 %v6362
        %v7485 = vpop.f32.mrb[0].mxu0
        %v7486 = vadd.f32 %v7309, %v7485
        %v7487 = vpop.f32.mrb[0].mxu0
        %v7488 = vpop.f32.mrb[0].mxu0
        %v7489 = vadd.f32 %v7312, %v7488
        %v7490 = vpop.f32.mrb[0].mxu0
        %7491 = vdwg.mxu0
        %7492 = vmatprep.subr.bf16.mxu0 0
        %7493 = vmatpush1.bf16.msra.mxu0 %v6865
        %7494 = vmatprep.subr.bf16.mxu0 0
        %7495 = vmatpush1.bf16.msra.mxu0 %v6866
        %7496 = vmatprep.subr.bf16.mxu0 0
        %7497 = vmatpush1.bf16.msra.mxu0 %v6867
        %7498 = vmatprep.subr.bf16.mxu0 0
        %7499 = vmatpush1.bf16.msra.mxu0 %v6868
        %7500 = vmatprep.subr.bf16.mxu0 0
        %7501 = vmatpush1.bf16.msra.mxu0 %v6869
        %7502 = vmatprep.subr.bf16.mxu0 0
        %7503 = vmatpush1.bf16.msra.mxu0 %v6870
        %7504 = vmatprep.subr.bf16.mxu0 0
        %7505 = vmatpush1.bf16.msra.mxu0 %v6871
        %7506 = vmatprep.subr.bf16.mxu0 0
        %7507 = vmatpush1.bf16.msra.mxu0 %v6872
        %7508 = vmatprep.subr.bf16.mxu0 0
        %7509 = vmatpush1.bf16.msra.mxu0 %v6873
        %7510 = vmatprep.subr.bf16.mxu0 0
        %7511 = vmatpush1.bf16.msra.mxu0 %v6874
        %7512 = vmatprep.subr.bf16.mxu0 0
        %7513 = vmatpush1.bf16.msra.mxu0 %v6875
        %7514 = vmatprep.subr.bf16.mxu0 0
        %7515 = vmatpush1.bf16.msra.mxu0 %v6876
        %7516 = vmatprep.subr.bf16.mxu0 0
        %7517 = vmatpush1.bf16.msra.mxu0 %v6877
        %7518 = vmatprep.subr.bf16.mxu0 0
        %7519 = vmatpush1.bf16.msra.mxu0 %v6878
        %7520 = vmatprep.subr.bf16.mxu0 0
        %7521 = vmatpush1.bf16.msra.mxu0 %v6879
        %7522 = vmatprep.subr.bf16.mxu0 0
        %7523 = vmatpush1.bf16.msra.mxu0 %v6880
        %7524 = vmatprep.mubr.bf16.mxu0 %v5532
        %7525 = vmatmul.mubr.bf16.gmra.mrb[0].mxu0 %v5520
        %v7526 = vpop.f32.mrb[0].mxu0
        %v7527 = vadd.f32 %v7350, %v7526
        %v7528 = vpop.f32.mrb[0].mxu0
        %v7529 = vpop.f32.mrb[0].mxu0
        %v7530 = vadd.f32 %v7353, %v7529
        %v7531 = vpop.f32.mrb[0].mxu0
        %7532 = vmatprep.mubr.bf16.mxu0 %v5592
        %7533 = vmatmul.mubr.bf16.gmra.mrb[0].mxu0 %v5584
        %v7534 = vpop.f32.mrb[0].mxu0
        %v7535 = vadd.f32 %v7358, %v7534
        %v7536 = vpop.f32.mrb[0].mxu0
        %v7537 = vpop.f32.mrb[0].mxu0
        %v7538 = vadd.f32 %v7361, %v7537
        %v7539 = vpop.f32.mrb[0].mxu0
        %7540 = vmatprep.mubr.bf16.mxu0 %v5640
        %7541 = vmatmul.mubr.bf16.gmra.mrb[0].mxu0 %v5632
        %v7542 = vpop.f32.mrb[0].mxu0
        %v7543 = vadd.f32 %v7366, %v7542
        %v7544 = vpop.f32.mrb[0].mxu0
        %v7545 = vpop.f32.mrb[0].mxu0
        %v7546 = vadd.f32 %v7369, %v7545
        %v7547 = vpop.f32.mrb[0].mxu0
        %7548 = vmatprep.mubr.bf16.mxu0 %v5688
        %7549 = vmatmul.mubr.bf16.gmra.mrb[0].mxu0 %v5680
        %v7550 = vpop.f32.mrb[0].mxu0
        %v7551 = vadd.f32 %v7374, %v7550
        %v7552 = vpop.f32.mrb[0].mxu0
        %v7553 = vpop.f32.mrb[0].mxu0
        %v7554 = vadd.f32 %v7377, %v7553
        %v7555 = vpop.f32.mrb[0].mxu0
        %7556 = vmatprep.mubr.bf16.mxu0 %v5736
        %7557 = vmatmul.mubr.bf16.gmra.mrb[0].mxu0 %v5728
        %v7558 = vpop.f32.mrb[0].mxu0
        %v7559 = vadd.f32 %v7382, %v7558
        %v7560 = vpop.f32.mrb[0].mxu0
        %v7561 = vpop.f32.mrb[0].mxu0
        %v7562 = vadd.f32 %v7385, %v7561
        %v7563 = vpop.f32.mrb[0].mxu0
        %7564 = vmatprep.mubr.bf16.mxu0 %v5784
        %7565 = vmatmul.mubr.bf16.gmra.mrb[0].mxu0 %v5776
        %v7566 = vpop.f32.mrb[0].mxu0
        %v7567 = vadd.f32 %v7390, %v7566
        %v7568 = vpop.f32.mrb[0].mxu0
        %v7569 = vpop.f32.mrb[0].mxu0
        %v7570 = vadd.f32 %v7393, %v7569
        %v7571 = vpop.f32.mrb[0].mxu0
        %7572 = vmatprep.mubr.bf16.mxu0 %v5832
        %7573 = vmatmul.mubr.bf16.gmra.mrb[0].mxu0 %v5824
        %v7574 = vpop.f32.mrb[0].mxu0
        %v7575 = vadd.f32 %v7398, %v7574
        %v7576 = vpop.f32.mrb[0].mxu0
        %v7577 = vpop.f32.mrb[0].mxu0
        %v7578 = vadd.f32 %v7401, %v7577
        %v7579 = vpop.f32.mrb[0].mxu0
        %7580 = vmatprep.mubr.bf16.mxu0 %v5880
        %7581 = vmatmul.mubr.bf16.gmra.mrb[0].mxu0 %v5872
        %v7582 = vpop.f32.mrb[0].mxu0
        %v7583 = vadd.f32 %v7406, %v7582
        %v7584 = vpop.f32.mrb[0].mxu0
        %v7585 = vpop.f32.mrb[0].mxu0
        %v7586 = vadd.f32 %v7409, %v7585
        %v7587 = vpop.f32.mrb[0].mxu0
        %7588 = vmatprep.mubr.bf16.mxu0 %v5928
        %7589 = vmatmul.mubr.bf16.gmra.mrb[0].mxu0 %v5920
        %v7590 = vpop.f32.mrb[0].mxu0
        %v7591 = vadd.f32 %v7414, %v7590
        %v7592 = vpop.f32.mrb[0].mxu0
        %v7593 = vpop.f32.mrb[0].mxu0
        %v7594 = vadd.f32 %v7417, %v7593
        %v7595 = vpop.f32.mrb[0].mxu0
        %7596 = vmatprep.mubr.bf16.mxu0 %v5976
        %7597 = vmatmul.mubr.bf16.gmra.mrb[0].mxu0 %v5968
        %v7598 = vpop.f32.mrb[0].mxu0
        %v7599 = vadd.f32 %v7422, %v7598
        %v7600 = vpop.f32.mrb[0].mxu0
        %v7601 = vpop.f32.mrb[0].mxu0
        %v7602 = vadd.f32 %v7425, %v7601
        %v7603 = vpop.f32.mrb[0].mxu0
        %7604 = vmatprep.mubr.bf16.mxu0 %v6024
        %7605 = vmatmul.mubr.bf16.gmra.mrb[0].mxu0 %v6016
        %v7606 = vpop.f32.mrb[0].mxu0
        %v7607 = vadd.f32 %v7430, %v7606
        %v7608 = vpop.f32.mrb[0].mxu0
        %v7609 = vpop.f32.mrb[0].mxu0
        %v7610 = vadd.f32 %v7433, %v7609
        %v7611 = vpop.f32.mrb[0].mxu0
        %7612 = vmatprep.mubr.bf16.mxu0 %v6072
        %7613 = vmatmul.mubr.bf16.gmra.mrb[0].mxu0 %v6064
        %v7614 = vpop.f32.mrb[0].mxu0
        %v7615 = vadd.f32 %v7438, %v7614
        %v7616 = vpop.f32.mrb[0].mxu0
        %v7617 = vpop.f32.mrb[0].mxu0
        %v7618 = vadd.f32 %v7441, %v7617
        %v7619 = vpop.f32.mrb[0].mxu0
        %7620 = vmatprep.mubr.bf16.mxu0 %v6120
        %7621 = vmatmul.mubr.bf16.gmra.mrb[0].mxu0 %v6112
        %v7622 = vpop.f32.mrb[0].mxu0
        %v7623 = vadd.f32 %v7446, %v7622
        %v7624 = vpop.f32.mrb[0].mxu0
        %v7625 = vpop.f32.mrb[0].mxu0
        %v7626 = vadd.f32 %v7449, %v7625
        %v7627 = vpop.f32.mrb[0].mxu0
        %7628 = vmatprep.mubr.bf16.mxu0 %v6168
        %7629 = vmatmul.mubr.bf16.gmra.mrb[0].mxu0 %v6160
        %v7630 = vpop.f32.mrb[0].mxu0
        %v7631 = vadd.f32 %v7454, %v7630
        %v7632 = vpop.f32.mrb[0].mxu0
        %v7633 = vpop.f32.mrb[0].mxu0
        %v7634 = vadd.f32 %v7457, %v7633
        %v7635 = vpop.f32.mrb[0].mxu0
        %7636 = vmatprep.mubr.bf16.mxu0 %v6216
        %7637 = vmatmul.mubr.bf16.gmra.mrb[0].mxu0 %v6208
        %v7638 = vpop.f32.mrb[0].mxu0
        %v7639 = vadd.f32 %v7462, %v7638
        %v7640 = vpop.f32.mrb[0].mxu0
        %v7641 = vpop.f32.mrb[0].mxu0
        %v7642 = vadd.f32 %v7465, %v7641
        %v7643 = vpop.f32.mrb[0].mxu0
        %7644 = vmatprep.mubr.bf16.mxu0 %v6264
        %7645 = vmatmul.mubr.bf16.gmra.mrb[0].mxu0 %v6256
        %v7646 = vpop.f32.mrb[0].mxu0
        %v7647 = vadd.f32 %v7470, %v7646
        %v7648 = vpop.f32.mrb[0].mxu0
        %v7649 = vpop.f32.mrb[0].mxu0
        %v7650 = vadd.f32 %v7473, %v7649
        %v7651 = vpop.f32.mrb[0].mxu0
        %7652 = vmatprep.mubr.bf16.mxu0 %v6322
        %7653 = vmatmul.mubr.bf16.gmra.mrb[0].mxu0 %v6314
        %v7654 = vpop.f32.mrb[0].mxu0
        %v7655 = vadd.f32 %v7478, %v7654
        %v7656 = vpop.f32.mrb[0].mxu0
        %v7657 = vpop.f32.mrb[0].mxu0
        %v7658 = vadd.f32 %v7481, %v7657
        %v7659 = vpop.f32.mrb[0].mxu0
        %7660 = vmatprep.mubr.bf16.mxu0 %v6386
        %7661 = vmatmul.mubr.bf16.gmra.mrb[0].mxu0 %v6378
        %v7662 = vpop.f32.mrb[0].mxu0
        %v7663 = vadd.f32 %v7486, %v7662
        %v7664 = vpop.f32.mrb[0].mxu0
        %v7665 = vpop.f32.mrb[0].mxu0
        %v7666 = vadd.f32 %v7489, %v7665
        %v7667 = vpop.f32.mrb[0].mxu0
        %7668 = vdwg.mxu0
        %7669 = vmatprep.subr.bf16.mxu0 0
        %7670 = vmatpush1.bf16.msra.mxu0 %v6881
        %7671 = vmatprep.subr.bf16.mxu0 0
        %7672 = vmatpush1.bf16.msra.mxu0 %v6882
        %7673 = vmatprep.subr.bf16.mxu0 0
        %7674 = vmatpush1.bf16.msra.mxu0 %v6883
        %7675 = vmatprep.subr.bf16.mxu0 0
        %7676 = vmatpush1.bf16.msra.mxu0 %v6884
        %7677 = vmatprep.subr.bf16.mxu0 0
        %7678 = vmatpush1.bf16.msra.mxu0 %v6885
        %7679 = vmatprep.subr.bf16.mxu0 0
        %7680 = vmatpush1.bf16.msra.mxu0 %v6886
        %7681 = vmatprep.subr.bf16.mxu0 0
        %7682 = vmatpush1.bf16.msra.mxu0 %v6887
        %7683 = vmatprep.subr.bf16.mxu0 0
        %7684 = vmatpush1.bf16.msra.mxu0 %v6888
        %7685 = vmatprep.subr.bf16.mxu0 0
        %7686 = vmatpush1.bf16.msra.mxu0 0
        %7687 = vmatprep.subr.bf16.mxu0 0
        %7688 = vmatpush1.bf16.msra.mxu0 0
        %7689 = vmatprep.subr.bf16.mxu0 0
        %7690 = vmatpush1.bf16.msra.mxu0 0
        %7691 = vmatprep.subr.bf16.mxu0 0
        %7692 = vmatpush1.bf16.msra.mxu0 0
        %7693 = vmatprep.subr.bf16.mxu0 0
        %7694 = vmatpush1.bf16.msra.mxu0 0
        %7695 = vmatprep.subr.bf16.mxu0 0
        %7696 = vmatpush1.bf16.msra.mxu0 0
        %7697 = vmatprep.subr.bf16.mxu0 0
        %7698 = vmatpush1.bf16.msra.mxu0 0
        %7699 = vmatprep.subr.bf16.mxu0 0
        %7700 = vmatpush1.bf16.msra.mxu0 0
        %7701 = vmatprep.mubr.bf16.mxu0 0
        %7702 = vmatmul.mubr.bf16.gmra.mrb[0].mxu0 %v5544
        %v7703 = vpop.f32.mrb[0].mxu0
        %v7704 = vadd.f32 %v7527, %v7703
        %v7705 = vpop.f32.mrb[0].mxu0
        %v7706 = vpop.f32.mrb[0].mxu0
        %v7707 = vadd.f32 %v7530, %v7706
        %v7708 = vpop.f32.mrb[0].mxu0
        %7709 = vmatprep.mubr.bf16.mxu0 0
        %7710 = vmatmul.mubr.bf16.gmra.mrb[0].mxu0 %v5600
        %v7711 = vpop.f32.mrb[0].mxu0
        %v7712 = vadd.f32 %v7535, %v7711
        %v7713 = vpop.f32.mrb[0].mxu0
        %v7714 = vpop.f32.mrb[0].mxu0
        %v7715 = vadd.f32 %v7538, %v7714
        %v7716 = vpop.f32.mrb[0].mxu0
        %7717 = vmatprep.mubr.bf16.mxu0 0
        %7718 = vmatmul.mubr.bf16.gmra.mrb[0].mxu0 %v5648
        %v7719 = vpop.f32.mrb[0].mxu0
        %v7720 = vadd.f32 %v7543, %v7719
        %v7721 = vpop.f32.mrb[0].mxu0
        %v7722 = vpop.f32.mrb[0].mxu0
        %v7723 = vadd.f32 %v7546, %v7722
        %v7724 = vpop.f32.mrb[0].mxu0
        %7725 = vmatprep.mubr.bf16.mxu0 0
        %7726 = vmatmul.mubr.bf16.gmra.mrb[0].mxu0 %v5696
        %v7727 = vpop.f32.mrb[0].mxu0
        %v7728 = vadd.f32 %v7551, %v7727
        %v7729 = vpop.f32.mrb[0].mxu0
        %v7730 = vpop.f32.mrb[0].mxu0
        %v7731 = vadd.f32 %v7554, %v7730
        %v7732 = vpop.f32.mrb[0].mxu0
        %7733 = vmatprep.mubr.bf16.mxu0 0
        %7734 = vmatmul.mubr.bf16.gmra.mrb[0].mxu0 %v5744
        %v7735 = vpop.f32.mrb[0].mxu0
        %v7736 = vadd.f32 %v7559, %v7735
        %v7737 = vpop.f32.mrb[0].mxu0
        %v7738 = vpop.f32.mrb[0].mxu0
        %v7739 = vadd.f32 %v7562, %v7738
        %v7740 = vpop.f32.mrb[0].mxu0
        %7741 = vmatprep.mubr.bf16.mxu0 0
        %7742 = vmatmul.mubr.bf16.gmra.mrb[0].mxu0 %v5792
        %v7743 = vpop.f32.mrb[0].mxu0
        %v7744 = vadd.f32 %v7567, %v7743
        %v7745 = vpop.f32.mrb[0].mxu0
        %v7746 = vpop.f32.mrb[0].mxu0
        %v7747 = vadd.f32 %v7570, %v7746
        %v7748 = vpop.f32.mrb[0].mxu0
        %7749 = vmatprep.mubr.bf16.mxu0 0
        %7750 = vmatmul.mubr.bf16.gmra.mrb[0].mxu0 %v5840
        %v7751 = vpop.f32.mrb[0].mxu0
        %v7752 = vadd.f32 %v7575, %v7751
        %v7753 = vpop.f32.mrb[0].mxu0
        %v7754 = vpop.f32.mrb[0].mxu0
        %v7755 = vadd.f32 %v7578, %v7754
        %v7756 = vpop.f32.mrb[0].mxu0
        %7757 = vmatprep.mubr.bf16.mxu0 0
        %7758 = vmatmul.mubr.bf16.gmra.mrb[0].mxu0 %v5888
        %v7759 = vpop.f32.mrb[0].mxu0
        %v7760 = vadd.f32 %v7583, %v7759
        %v7761 = vpop.f32.mrb[0].mxu0
        %v7762 = vpop.f32.mrb[0].mxu0
        %v7763 = vadd.f32 %v7586, %v7762
        %v7764 = vpop.f32.mrb[0].mxu0
        %7765 = vmatprep.mubr.bf16.mxu0 0
        %7766 = vmatmul.mubr.bf16.gmra.mrb[0].mxu0 %v5936
        %v7767 = vpop.f32.mrb[0].mxu0
        %v7768 = vadd.f32 %v7591, %v7767
        %v7769 = vpop.f32.mrb[0].mxu0
        %v7770 = vpop.f32.mrb[0].mxu0
        %v7771 = vadd.f32 %v7594, %v7770
        %v7772 = vpop.f32.mrb[0].mxu0
        %7773 = vmatprep.mubr.bf16.mxu0 0
        %7774 = vmatmul.mubr.bf16.gmra.mrb[0].mxu0 %v5984
        %v7775 = vpop.f32.mrb[0].mxu0
        %v7776 = vadd.f32 %v7599, %v7775
        %v7777 = vpop.f32.mrb[0].mxu0
        %v7778 = vpop.f32.mrb[0].mxu0
        %v7779 = vadd.f32 %v7602, %v7778
        %v7780 = vpop.f32.mrb[0].mxu0
        %7781 = vmatprep.mubr.bf16.mxu0 0
        %7782 = vmatmul.mubr.bf16.gmra.mrb[0].mxu0 %v6032
        %v7783 = vpop.f32.mrb[0].mxu0
        %v7784 = vadd.f32 %v7607, %v7783
        %v7785 = vpop.f32.mrb[0].mxu0
        %v7786 = vpop.f32.mrb[0].mxu0
        %v7787 = vadd.f32 %v7610, %v7786
        %v7788 = vpop.f32.mrb[0].mxu0
        %7789 = vmatprep.mubr.bf16.mxu0 0
        %7790 = vmatmul.mubr.bf16.gmra.mrb[0].mxu0 %v6080
        %v7791 = vpop.f32.mrb[0].mxu0
        %v7792 = vadd.f32 %v7615, %v7791
        %v7793 = vpop.f32.mrb[0].mxu0
        %v7794 = vpop.f32.mrb[0].mxu0
        %v7795 = vadd.f32 %v7618, %v7794
        %v7796 = vpop.f32.mrb[0].mxu0
        %7797 = vmatprep.mubr.bf16.mxu0 0
        %7798 = vmatmul.mubr.bf16.gmra.mrb[0].mxu0 %v6128
        %v7799 = vpop.f32.mrb[0].mxu0
        %v7800 = vadd.f32 %v7623, %v7799
        %v7801 = vpop.f32.mrb[0].mxu0
        %v7802 = vpop.f32.mrb[0].mxu0
        %v7803 = vadd.f32 %v7626, %v7802
        %v7804 = vpop.f32.mrb[0].mxu0
        %7805 = vmatprep.mubr.bf16.mxu0 0
        %7806 = vmatmul.mubr.bf16.gmra.mrb[0].mxu0 %v6176
        %v7807 = vpop.f32.mrb[0].mxu0
        %v7808 = vadd.f32 %v7631, %v7807
        %v7809 = vpop.f32.mrb[0].mxu0
        %v7810 = vpop.f32.mrb[0].mxu0
        %v7811 = vadd.f32 %v7634, %v7810
        %v7812 = vpop.f32.mrb[0].mxu0
        %7813 = vmatprep.mubr.bf16.mxu0 0
        %7814 = vmatmul.mubr.bf16.gmra.mrb[0].mxu0 %v6224
        %v7815 = vpop.f32.mrb[0].mxu0
        %v7816 = vadd.f32 %v7639, %v7815
        %v7817 = vpop.f32.mrb[0].mxu0
        %v7818 = vpop.f32.mrb[0].mxu0
        %v7819 = vadd.f32 %v7642, %v7818
        %v7820 = vpop.f32.mrb[0].mxu0
        %7821 = vmatprep.mubr.bf16.mxu0 0
        %7822 = vmatmul.mubr.bf16.gmra.mrb[0].mxu0 %v6272
        %v7823 = vpop.f32.mrb[0].mxu0
        %v7824 = vadd.f32 %v7647, %v7823
        %v7825 = vpop.f32.mrb[0].mxu0
        %v7826 = vpop.f32.mrb[0].mxu0
        %v7827 = vadd.f32 %v7650, %v7826
        %v7828 = vpop.f32.mrb[0].mxu0
        %7829 = vmatprep.mubr.bf16.mxu0 0
        %7830 = vmatmul.mubr.bf16.gmra.mrb[0].mxu0 %v6330
        %v7831 = vpop.f32.mrb[0].mxu0
        %v7832 = vadd.f32 %v7655, %v7831
        %v7833 = vpop.f32.mrb[0].mxu0
        %v7834 = vpop.f32.mrb[0].mxu0
        %v7835 = vadd.f32 %v7658, %v7834
        %v7836 = vpop.f32.mrb[0].mxu0
        %7837 = vmatprep.mubr.bf16.mxu0 0
        %7838 = vmatmul.mubr.bf16.gmra.mrb[0].mxu0 %v6394
        %v7839 = vpop.f32.mrb[0].mxu0
        %v7840 = vadd.f32 %v7663, %v7839
        %v7841 = vpop.f32.mrb[0].mxu0
        %v7842 = vpop.f32.mrb[0].mxu0
        %v7843 = vadd.f32 %v7666, %v7842
        %v7844 = vpop.f32.mrb[0].mxu0
        %7845 = vdwg.mxu0
        %v7846 = vld [vmem:[%s262 + $0x24] sm:$0xf]
        %v7847 = vld [vmem:[%s262 + $0x28] sm:$0xf]
        %v7848 = vld [vmem:[%s262 + $0x2c] sm:$0xf]
        %v7849 = vld [vmem:[%s262 + $0x30] sm:$0xf]
        %v7850 = vld [vmem:[%s262 + $0x34] sm:$0xf]
        %v7851 = vld [vmem:[%s262 + $0x38] sm:$0xf]
        %v7852 = vld [vmem:[%s262 + $0x3c] sm:$0xf]
        %v7853 = vld [vmem:[%s262 + $0x40] sm:$0xf]
        %v7854 = vld [vmem:[%s262 + $0x44] sm:$0xf]
        %v7855 = vld [vmem:[%s262 + $0x48] sm:$0xf]
        %v7856 = vld [vmem:[%s262 + $0x4c] sm:$0xf]
        %v7857 = vld [vmem:[%s262 + $0x50] sm:$0xf]
        %v7858 = vld [vmem:[%s262 + $0x54] sm:$0xf]
        %v7859 = vld [vmem:[%s262 + $0x58] sm:$0xf]
        %v7860 = vld [vmem:[%s262 + $0x5c] sm:$0xf]
        %v7861 = vld [vmem:[%s262 + $0x60] sm:$0xf]
        %v7862 = vld [vmem:[%s262 + $0x64] sm:$0xf]
        %v7863 = vld [vmem:[%s262 + $0x68] sm:$0xf]
        %v7864 = vld [vmem:[%s262 + $0x6c] sm:$0xf]
        %v7865 = vld [vmem:[%s262 + $0x70] sm:$0xf]
        %v7866 = vld [vmem:[%s262 + $0x74] sm:$0xf]
        %v7867 = vld [vmem:[%s262 + $0x78] sm:$0xf]
        %v7868 = vld [vmem:[%s262 + $0x7c] sm:$0xf]
        %v7869 = vld [vmem:[%s262 + $0x80] sm:$0xf]
        %v7870 = vld [vmem:[%s262 + $0x84] sm:$0xf]
        %v7871 = vld [vmem:[%s262 + $0x88] sm:$0xf]
        %v7872 = vld [vmem:[%s262 + $0x8c] sm:$0xf]
        %v7873 = vld [vmem:[%s262 + $0x90] sm:$0xf]
        %v7874 = vld [vmem:[%s262 + $0x94] sm:$0xf]
        %v7875 = vld [vmem:[%s262 + $0x98] sm:$0xf]
        %v7876 = vld [vmem:[%s262 + $0x9c] sm:$0xf]
        %v7877 = vld [vmem:[%s262 + $0xa0] sm:$0xf]
        %v7878 = vld [vmem:[%s262 + $0xa4] sm:$0xf]
        %v7879 = vld [vmem:[%s262 + $0xa8] sm:$0xf]
        %v7880 = vld [vmem:[%s262 + $0xac] sm:$0xf]
        %v7881 = vld [vmem:[%s262 + $0xb0] sm:$0xf]
        %v7882 = vunpack.c.l.bf16 %v7846
        %v7883 = vunpack.c.l.bf16 %v7847
        %v7884 = vunpack.c.l.bf16 %v7848
        %v7885 = vunpack.c.l.bf16 %v7849
        %v7886 = vunpack.c.l.bf16 %v7850
        %v7887 = vunpack.c.l.bf16 %v7851
        %v7888 = vunpack.c.l.bf16 %v7852
        %v7889 = vunpack.c.l.bf16 %v7853
        %v7890 = vunpack.c.l.bf16 %v7854
        %v7891 = vunpack.c.l.bf16 %v7855
        %v7892 = vunpack.c.l.bf16 %v7856
        %v7893 = vunpack.c.l.bf16 %v7857
        %v7894 = vunpack.c.l.bf16 %v7858
        %v7895 = vunpack.c.l.bf16 %v7859
        %v7896 = vunpack.c.l.bf16 %v7860
        %v7897 = vunpack.c.l.bf16 %v7861
        %v7898 = vunpack.c.l.bf16 %v7862
        %v7899 = vunpack.c.l.bf16 %v7863
        %v7900 = vunpack.c.l.bf16 %v7864
        %v7901 = vunpack.c.l.bf16 %v7865
        %v7902 = vunpack.c.l.bf16 %v7866
        %v7903 = vunpack.c.l.bf16 %v7867
        %v7904 = vunpack.c.l.bf16 %v7868
        %v7905 = vunpack.c.l.bf16 %v7869
        %v7906 = vunpack.c.l.bf16 %v7870
        %v7907 = vunpack.c.l.bf16 %v7871
        %v7908 = vunpack.c.l.bf16 %v7872
        %v7909 = vunpack.c.l.bf16 %v7873
        %v7910 = vunpack.c.l.bf16 %v7874
        %v7911 = vunpack.c.l.bf16 %v7875
        %v7912 = vunpack.c.l.bf16 %v7876
        %v7913 = vunpack.c.l.bf16 %v7877
        %v7914 = vunpack.c.l.bf16 %v7878
        %v7915 = vunpack.c.l.bf16 %v7879
        %v7916 = vunpack.c.l.bf16 %v7880
        %v7917 = vunpack.c.l.bf16 %v7881
        %v7918 = vadd.f32 %v7882, %v7704
        %v7919 = vadd.f32 %v7883, %v7707
        %v7920 = vadd.f32 %v7884, %v7712
        %v7921 = vadd.f32 %v7885, %v7715
        %v7922 = vadd.f32 %v7886, %v7720
        %v7923 = vadd.f32 %v7887, %v7723
        %v7924 = vadd.f32 %v7888, %v7728
        %v7925 = vadd.f32 %v7889, %v7731
        %v7926 = vadd.f32 %v7890, %v7736
        %v7927 = vadd.f32 %v7891, %v7739
        %v7928 = vadd.f32 %v7892, %v7744
        %v7929 = vadd.f32 %v7893, %v7747
        %v7930 = vadd.f32 %v7894, %v7752
        %v7931 = vadd.f32 %v7895, %v7755
        %v7932 = vadd.f32 %v7896, %v7760
        %v7933 = vadd.f32 %v7897, %v7763
        %v7934 = vadd.f32 %v7898, %v7768
        %v7935 = vadd.f32 %v7899, %v7771
        %v7936 = vadd.f32 %v7900, %v7776
        %v7937 = vadd.f32 %v7901, %v7779
        %v7938 = vadd.f32 %v7902, %v7784
        %v7939 = vadd.f32 %v7903, %v7787
        %v7940 = vadd.f32 %v7904, %v7792
        %v7941 = vadd.f32 %v7905, %v7795
        %v7942 = vadd.f32 %v7906, %v7800
        %v7943 = vadd.f32 %v7907, %v7803
        %v7944 = vadd.f32 %v7908, %v7808
        %v7945 = vadd.f32 %v7909, %v7811
        %v7946 = vadd.f32 %v7910, %v7816
        %v7947 = vadd.f32 %v7911, %v7819
        %v7948 = vadd.f32 %v7912, %v7824
        %v7949 = vadd.f32 %v7913, %v7827
        %v7950 = vadd.f32 %v7914, %v7832
        %v7951 = vadd.f32 %v7915, %v7835
        %v7952 = vadd.f32 %v7916, %v7840
        %v7953 = vadd.f32 %v7917, %v7843
        %7954 = vst [vmem:[%s298] sm:$0xff] %v7918
        %7955 = vst [vmem:[%s298 + $0x8] sm:$0xff] %v7919
        %7956 = vst [vmem:[%s298 + $0x10] sm:$0xff] %v7920
        %7957 = vst [vmem:[%s298 + $0x18] sm:$0xff] %v7921
        %7958 = vst [vmem:[%s298 + $0x20] sm:$0xff] %v7922
        %7959 = vst [vmem:[%s298 + $0x28] sm:$0xff] %v7923
        %7960 = vst [vmem:[%s298 + $0x30] sm:$0xff] %v7924
        %7961 = vst [vmem:[%s298 + $0x38] sm:$0xff] %v7925
        %7962 = vst [vmem:[%s298 + $0x40] sm:$0xff] %v7926
        %7963 = vst [vmem:[%s298 + $0x48] sm:$0xff] %v7927
        %7964 = vst [vmem:[%s298 + $0x50] sm:$0xff] %v7928
        %7965 = vst [vmem:[%s298 + $0x58] sm:$0xff] %v7929
        %7966 = vst [vmem:[%s298 + $0x60] sm:$0xff] %v7930
        %7967 = vst [vmem:[%s298 + $0x68] sm:$0xff] %v7931
        %7968 = vst [vmem:[%s298 + $0x70] sm:$0xff] %v7932
        %7969 = vst [vmem:[%s298 + $0x78] sm:$0xff] %v7933
        %7970 = vst [vmem:[%s298 + $0x80] sm:$0xff] %v7934
        %7971 = vst [vmem:[%s298 + $0x88] sm:$0xff] %v7935
        %7972 = vst [vmem:[%s298 + $0x90] sm:$0xff] %v7936
        %7973 = vst [vmem:[%s298 + $0x98] sm:$0xff] %v7937
        %7974 = vst [vmem:[%s298 + $0xa0] sm:$0xff] %v7938
        %7975 = vst [vmem:[%s298 + $0xa8] sm:$0xff] %v7939
        %7976 = vst [vmem:[%s298 + $0xb0] sm:$0xff] %v7940
        %7977 = vst [vmem:[%s298 + $0xb8] sm:$0xff] %v7941
        %7978 = vst [vmem:[%s298 + $0xc0] sm:$0xff] %v7942
        %7979 = vst [vmem:[%s298 + $0xc8] sm:$0xff] %v7943
        %7980 = vst [vmem:[%s298 + $0xd0] sm:$0xff] %v7944
        %7981 = vst [vmem:[%s298 + $0xd8] sm:$0xff] %v7945
        %7982 = vst [vmem:[%s298 + $0xe0] sm:$0xff] %v7946
        %7983 = vst [vmem:[%s298 + $0xe8] sm:$0xff] %v7947
        %7984 = vst [vmem:[%s298 + $0xf0] sm:$0xff] %v7948
        %7985 = vst [vmem:[%s298 + $0xf8] sm:$0xff] %v7949
        %7986 = vst [vmem:[%s298 + $0x100] sm:$0xff] %v7950
        %7987 = vst [vmem:[%s298 + $0x108] sm:$0xff] %v7951
        %7988 = vst [vmem:[%s298 + $0x110] sm:$0xff] %v7952
        %7989 = vst [vmem:[%s298 + $0x118] sm:$0xff] %v7953
        %s7990 = sand.u32 %s163, 1
        %s7991 = scalar_lea.sflag [#allocation5], %s7990
        %s7992 = sand.u32 %s163, 1
        %s7993 = smul.addr %s7992, 288
        %s7994 = scalar_lea.vmem [#allocation9], %s7993
        // Predicated region
        $region57: #{tpu_custom_call.1} parent=43 // pred_check
          %p7995 = pneg %p173
        $region58: #{tpu_custom_call.1} parent=43 // pred_check_branch
          %7997 = sbr.rel (%p7995) target = $region60
        $region59: #{tpu_custom_call.1} parent=43 // pred_region
          %s7999 = ssub.s32 4608, 4608
          %8000 = vsyncadd %s7991, %s7999
          %s8001 = smul.addr %s24, 36
          %s8002 = smul.addr %s8001, 128
          %s8003 = scalar_lea.hbm %s6, %s8002
          %s8004 = sshll.u32 %s7994, 4
          %s8005 = int_to_ptr.vmem [resolvable:$true] %s8004
          %8010 = dma.vmem_to_hbm [thread:$0]  %s8005, 4608, %s8003, %s7991, 128, 128, 8
        $region60: #{tpu_custom_call.1} parent=43 // pred_fallthru
          _
      $region44: #{tpu_custom_call.1} parent=5 // pred_fallthru
        _
      %p8011 = scmp.le.s32.totalorder 2, %s19
      // Predicated region
      $region61: #{tpu_custom_call.1} parent=5 // pred_check
        %p8012 = pneg %p8011
      $region62: #{tpu_custom_call.1} parent=5 // pred_check_branch
        %8014 = sbr.rel (%p8012) target = $region64
      $region63: #{tpu_custom_call.1} parent=5 // pred_region
        %s8015 = ssub.s32 %s19, 2
        // Predicated region
        $region65: #{tpu_custom_call.1} parent=63 // pred_check
          %p8016 = pneg %p179
        $region66: #{tpu_custom_call.1} parent=63 // pred_check_branch
          %8018 = sbr.rel (%p8016) target = $region68
        $region67: #{tpu_custom_call.1} parent=63 // pred_region
          %s8019 = sand.u32 %s164, 1
          %s8020 = scalar_lea.sflag [#allocation5], %s8019
          %s8021 = sand.u32 %s164, 1
          %s8022 = smul.addr %s8021, 288
          %s8023 = scalar_lea.vmem [#allocation9], %s8022
          %8024 = dma.done %s8020, 4608
        $region68: #{tpu_custom_call.1} parent=63 // pred_fallthru
          _
      $region64: #{tpu_custom_call.1} parent=5 // pred_fallthru
        _
    $region6: #{tpu_custom_call.1} parent=1 // loop_footer
      %s23 = sadd.s32 1, %s19
    $region7: #{tpu_custom_call.1} parent=1 // loop_footer_branch
      %18 = sbr.rel target = $region3
    $region8: #{tpu_custom_call.1} parent=1 // loop_exit
      _
    %8025 = vsyncpa [#allocation4], 1
    %s8026 = scalar_lea.sflag [#allocation4], 1
    %8027 = vsyncpa %s8026, 1
    %8028 = vsyncpa [#allocation7], 1
    %8029 = vsyncpa [#allocation5], 1
    %s8030 = scalar_lea.sflag [#allocation5], 1
    %8031 = vsyncpa %s8030, 1

</llo_original>
